<compile_context>
chip_gen: v7x
topology: tpu7x:2x2x1
jax: 0.10.0
libtpu: 0.0.40
codegen_flags: <defaults>
</compile_context>

<pallas_src>
import numpy as np
import jax
import jax.numpy as jnp
from jax.experimental import pallas as pl
from jax.experimental.pallas import tpu as pltpu

# ----- model hyper-parameters (consistent with TSMixerExt2.__init__) -----
B_TOTAL = 16     # total batch in the example
B_TILE = 8       # samples per grid step (B_TILE*L = 128 rows fills the MXU M/K dims)
L = 16           # sequence_length
P = 8            # prediction_length
C = 4            # input_channels == input_size == d_series
H = 8            # hidden_channels
S = 8            # static_channels
FF = 32          # ff_dim
DCORE = 16       # d_core
NUM_BLOCKS = 3   # -> NUM_BLOCKS - 1 = 2 conditional mixer layers (only the last is live)
C_OUT = C        # output_channels defaults to input_channels
LN_EPS = 1e-5

SLAB_W = 128     # packed-parameter slab lane width (lane-dense, full vreg width)


def _gelu(x):
    # tanh-approximate GELU (EUP friendly).
    # TODO(synk): PyTorch F.gelu defaults to the exact erf form; ~1e-3-level deviation.
    return 0.5 * x * (1.0 + jnp.tanh(0.7978845608028654 * (x + 0.044715 * x * x * x)))


def _relu(x):
    return jnp.maximum(x, 0.0)


def make_kernel(layout):
    """Build the Pallas kernel closed over the static packed-parameter layout."""

    def kernel(x_ref, s_ref, slab_ref, out_ref):
        def g(name):
            ro, r, co, c = layout[name]
            return slab_ref[pl.ds(ro, r), pl.ds(co, c)]

        def mxu(a, b):
            # bf16 MXU inputs, f32 accumulation; elementwise math stays f32.
            return jnp.dot(a.astype(jnp.bfloat16), b.astype(jnp.bfloat16),
                           preferred_element_type=jnp.float32)

        def mxu32(a, b):
            # f32 matmul for the LayerNorm statistics (numerical robustness).
            return jnp.dot(a, b, preferred_element_type=jnp.float32)

        x = x_ref[...]                       # (BT*L, C)  batch tile folded onto sublanes
        s = s_ref[...]                       # (BT, S)

        meanp = g('MEANP')                   # (BT*P, BT*P): kron(I_BT, ones(P,P)) / (P*H)

        def ln2d(xs, w_name, b_name):
            # nn.LayerNorm((prediction_length, hidden_channels)) applied per sample.
            # Mean and E[x^2] share one segmented-sum matmul; var = E[x^2] - mu^2.
            # TODO(synk): verify the reference normalizes over the full (seq, channels)
            # slab (2-D LayerNorm shape) rather than the channel dim only.
            rs = jnp.sum(xs, axis=1, keepdims=True)                     # (BT*P, 1)
            rs2 = jnp.sum(xs * xs, axis=1, keepdims=True)               # (BT*P, 1)
            stats = mxu32(meanp, jnp.concatenate([rs, rs2], axis=1))    # (BT*P, 2)
            mu = stats[:, 0:1]
            var = stats[:, 1:2] - mu * mu
            return (xs - mu) * jax.lax.rsqrt(var + LN_EPS) * g(w_name) + g(b_name)

        def cfm(xin, v, pfx):
            # ConditionalFeatureMixing; cat([x, v], -1) @ [[pwx|f1x],[pwv|f1v]] is one
            # matmul feeding both the projection path and fc1.
            xv = jnp.concatenate([xin, v], axis=1)                      # (BT*P, cin+H)
            y = mxu(xv, g(pfx + 'Wbig')) + g(pfx + 'bbig')              # (BT*P, H+FF)
            x_proj = y[:, :H]
            t = _relu(y[:, H:H + FF])
            t = mxu(t, g(pfx + 'f2w')) + g(pfx + 'f2b')
            return ln2d(x_proj + t, pfx + 'lnw', pfx + 'lnb')           # norm_after

        # ---------------- FFTProcessor -----------------------------------------
        # TODO(synk): FFTProcessor source not provided by DSfusion; representative
        # implementation: low-pass filtering along time as a precomputed
        # rDFT->mask->irDFT matrix (block-diagonal over the batch tile) + a channel Linear.
        xf = mxu(g('FILT_BD'), x)                                       # (BT*L, C)
        xf = mxu(xf, g('fft_w')) + g('fft_b')

        # ---------------- STAR (series-core aggregate / redistribute) ----------
        # TODO(synk): DSfusion's two-input STAR source not provided; representative
        # SOFTS-style eval path: core from the FFT branch, redistributed to raw branch.
        gact = _gelu(mxu(xf, g('g1w')) + g('g1b'))                      # (BT*L, C)
        z = mxu(gact, g('g2w')) + g('g2b')                              # (BT*L, DCORE)
        # Softmax-over-time core, segmented per sample via SUML = kron(I_BT, ones(L,L)).
        # The column max is global (not per-sample) purely for numerical stability; it
        # cancels exactly in the numer/denom ratio, so semantics are unchanged.
        m = jnp.max(z, axis=0, keepdims=True)
        e = jnp.exp(z - m)
        sums = mxu(g('SUML'), jnp.concatenate([e, z * e], axis=1))      # (BT*L, 2*DCORE)
        denom = sums[:, :DCORE]                                         # per-sample sum(e)
        numer = sums[:, DCORE:]                                         # per-sample sum(z*e)
        core_rows = numer * pl.reciprocal(denom, approx=True)           # (BT*L, DCORE)
        fused = _gelu(mxu(jnp.concatenate([x, core_rows], axis=1), g('g3w')) + g('g3b'))
        x_star = mxu(fused, g('g4w')) + g('g4b')                        # (BT*L, C)

        # ---------------- fc_hist: Linear over the time axis -------------------
        xh = mxu(g('HW_BD'), x_star) + g('HB_T')                        # (BT*P, C)

        # ---- fr_static projections of BOTH ConditionalFeatureMixing layers ----
        s_rows = mxu(g('EXPP'), s)                                      # (BT*P, S)
        v_all = mxu(s_rows, g('FRW')) + g('FRB')                        # (BT*P, 2H)

        # ---------------- feature_mixing_hist -----------------------------------
        x_fm = cfm(xh, v_all[:, :H], 'cfm0_')                           # (BT*P, H)

        # ---------------- conditional mixer stack -------------------------------
        # The reference forward feeds x_hist (= x_fm) into every mixer layer and keeps
        # only the final layer's output, so earlier layers are dead code; computing the
        # last layer only is bit-identical to running the full loop.
        xr = _relu(mxu(g('TMW_BD'), x_fm) + g('TMB_T'))                 # time mixing
        y = ln2d(x_fm + xr, 'tln_w', 'tln_b')
        x_last = cfm(y, v_all[:, H:2 * H], 'cfm1_')                     # (BT*P, H)

        # ---------------- fc_out -------------------------------------------------
        out_ref[...] = mxu(x_last, g('ow')) + g('ob')                   # (BT*P, C_OUT)

    return kernel


def tsmixer_ext2_forward(x_hist, x_static, slab, layout):
    nb = B_TOTAL // B_TILE
    x2d = x_hist.reshape(B_TOTAL * L, C)          # fold batch onto the sublane axis
    out2d = pl.pallas_call(
        make_kernel(layout),
        out_shape=jax.ShapeDtypeStruct((B_TOTAL * P, C_OUT), jnp.float32),
        grid=(nb,),
        in_specs=[
            pl.BlockSpec((B_TILE * L, C), lambda i: (i, 0)),
            pl.BlockSpec((B_TILE, S), lambda i: (i, 0)),
            pl.BlockSpec(slab.shape, lambda i: (0, 0)),   # resident across grid steps
        ],
        out_specs=pl.BlockSpec((B_TILE * P, C_OUT), lambda i: (i, 0)),
        compiler_params=pltpu.CompilerParams(dimension_semantics=("parallel",)),
    )(x2d, x_static, slab)
    return out2d.reshape(B_TOTAL, P, C_OUT)


def _pack(entries):
    """Shelf-pack (name, 2-D array) parameters into one (rows, SLAB_W) f32 slab.

    Shelves are 8-row-aligned row bands; parameters are placed side-by-side along the
    128-lane axis inside a shelf (lane-dense packing).  Returns
    (slab, {name: (row_off, rows, col_off, cols)}) with static Python-int offsets.
    """
    shelves = []          # each: [row_off, row_height, used_cols]
    layout, placed = {}, []
    next_row = 0
    for name, arr in entries:
        arr = np.asarray(arr, np.float32)
        assert arr.ndim == 2 and arr.shape[1] <= SLAB_W, (name, arr.shape)
        r, c = arr.shape
        rpad = -(-r // 8) * 8
        home = None
        for sh in shelves:
            if sh[1] >= rpad and sh[2] + c <= SLAB_W:
                home = sh
                break
        if home is None:
            home = [next_row, rpad, 0]
            shelves.append(home)
            next_row += rpad
        row_off, col_off = home[0], home[2]
        home[2] += c
        layout[name] = (row_off, r, col_off, c)
        placed.append((arr, row_off, col_off))
    slab = np.zeros((next_row, SLAB_W), np.float32)
    for arr, ro, co in placed:
        slab[ro:ro + arr.shape[0], co:co + arr.shape[1]] = arr
    return jnp.asarray(slab), layout


def build_params(key):
    keys = iter(jax.random.split(key, 64))

    def rnd(shape, scale=0.2):
        return np.asarray(scale * jax.random.normal(next(keys), shape), np.float32)

    eye_bt = np.eye(B_TILE, dtype=np.float32)

    # FFTProcessor low-pass operator: rDFT -> keep lowest half of bins -> irDFT (L, L).
    eye_l = np.eye(L, dtype=np.float32)
    R = np.fft.rfft(eye_l, axis=0)
    keep = max(1, (L // 2 + 1) // 2)
    mask = np.zeros((L // 2 + 1, 1))
    mask[:keep] = 1.0
    filt = np.fft.irfft(mask * R, n=L, axis=0).astype(np.float32)

    fc_hist_w, fc_hist_b = rnd((P, L)), rnd((P, 1))
    tm_w, tm_b = rnd((P, P)), rnd((P, 1))

    def tile_bt(a):   # tile a per-sample (rows, ...) tensor over the batch-tile rows
        return np.tile(np.asarray(a, np.float32), (B_TILE, 1))

    def cfm_raw(cin):
        return dict(
            frw=rnd((S, H)), frb=rnd((1, H)),
            pwx=rnd((cin, H)), pwv=rnd((H, H)), pb=rnd((1, H)),
            f1x=rnd((cin, FF)), f1v=rnd((H, FF)), f1b=rnd((1, FF)),
            f2w=rnd((FF, H)), f2b=rnd((1, H)),
            lnw=np.ones((P, H), np.float32), lnb=np.zeros((P, H), np.float32),
        )

    cfm0, cfm1 = cfm_raw(C), cfm_raw(H)

    def fuse_cfm(p):
        # One weight for both the projection and fc1 paths on the concatenated [x|v] input.
        w_big = np.block([[p['pwx'], p['f1x']], [p['pwv'], p['f1v']]])   # (cin+H, H+FF)
        b_big = np.concatenate([p['pb'], p['f1b']], axis=1)             # (1, H+FF)
        return w_big, b_big

    w_big0, b_big0 = fuse_cfm(cfm0)
    w_big1, b_big1 = fuse_cfm(cfm1)

    # STAR weights (representative two-input SOFTS-style STAR, see kernel TODO).
    g1w, g1b = rnd((C, C)), rnd((1, C))
    g2w, g2b = rnd((C, DCORE)), rnd((1, DCORE))
    g3wx, g3wc, g3b = rnd((C, C)), rnd((DCORE, C)), rnd((1, C))
    g4w, g4b = rnd((C, C)), rnd((1, C))

    entries = [
        # --- batch-tile-folded structural constants (exact per-sample semantics) ---
        ('FILT_BD', np.kron(eye_bt, filt)),                                   # (BT*L, BT*L)
        ('SUML',    np.kron(eye_bt, np.ones((L, L), np.float32))),            # per-sample time sums
        ('HW_BD',   np.kron(eye_bt, fc_hist_w)),                              # (BT*P, BT*L)
        ('MEANP',   np.kron(eye_bt, np.ones((P, P), np.float32)) / float(P * H)),
        ('EXPP',    np.kron(eye_bt, np.ones((P, 1), np.float32))),            # (BT*P, BT)
        ('HB_T',    tile_bt(fc_hist_b)),                                      # (BT*P, 1)
        ('TMW_BD',  np.kron(eye_bt, tm_w)),                                   # (BT*P, BT*P)
        ('TMB_T',   tile_bt(tm_b)),
        # --- FFTProcessor channel linear ---
        ('fft_w', rnd((C, C))), ('fft_b', rnd((1, C))),
        # --- STAR (redistribute weight fused as [g3wx; g3wc]) ---
        ('g1w', g1w), ('g1b', g1b),
        ('g2w', g2w), ('g2b', g2b),
        ('g3w', np.concatenate([g3wx, g3wc], axis=0)), ('g3b', g3b),
        ('g4w', g4w), ('g4b', g4b),
        # --- both fr_static projections fused along lanes ---
        ('FRW', np.concatenate([cfm0['frw'], cfm1['frw']], axis=1)),          # (S, 2H)
        ('FRB', np.concatenate([cfm0['frb'], cfm1['frb']], axis=1)),          # (1, 2H)
        # --- time-mixing LayerNorm of the (only live) last mixer layer ---
        ('tln_w', tile_bt(np.ones((P, H), np.float32))),
        ('tln_b', tile_bt(np.zeros((P, H), np.float32))),
        # --- feature_mixing_hist (cfm0) and last mixer layer's feature mixing (cfm1) ---
        ('cfm0_Wbig', w_big0), ('cfm0_bbig', b_big0),
        ('cfm0_f2w', cfm0['f2w']), ('cfm0_f2b', cfm0['f2b']),
        ('cfm0_lnw', tile_bt(cfm0['lnw'])), ('cfm0_lnb', tile_bt(cfm0['lnb'])),
        ('cfm1_Wbig', w_big1), ('cfm1_bbig', b_big1),
        ('cfm1_f2w', cfm1['f2w']), ('cfm1_f2b', cfm1['f2b']),
        ('cfm1_lnw', tile_bt(cfm1['lnw'])), ('cfm1_lnb', tile_bt(cfm1['lnb'])),
        # --- fc_out ---
        ('ow', rnd((H, C_OUT))), ('ob', rnd((1, C_OUT))),
    ]
    # NOTE: mixer layers before the last never influence the output in the reference
    # forward (each layer consumes x_hist; only the last result reaches fc_out), so
    # their parameters are omitted entirely.
    return _pack(entries)


if __name__ == "__main__":
    key = jax.random.PRNGKey(0)
    k_x, k_s, k_p = jax.random.split(key, 3)
    x_hist = jax.random.normal(k_x, (B_TOTAL, L, C), dtype=jnp.float32)
    x_static = jax.random.normal(k_s, (B_TOTAL, S), dtype=jnp.float32)
    slab, layout = build_params(k_p)

    out = tsmixer_ext2_forward(x_hist, x_static, slab, layout)
    out = jax.block_until_ready(out)
    assert out.shape == (B_TOTAL, P, C_OUT), out.shape
    assert bool(jnp.all(jnp.isfinite(out)))
    print("KERNEL_OK")
</pallas_src>

<mosaic_0001>
module attributes {stable_mosaic.version = 11 : i64} {
  func.func @kernel(%arg0: i32, %arg1: memref<128x4xf32, #tpu.memory_space<vmem>>, %arg2: memref<8x8xf32, #tpu.memory_space<vmem>>, %arg3: memref<560x128xf32, #tpu.memory_space<vmem>>, %arg4: memref<64x4xf32, #tpu.memory_space<vmem>>) attributes {dimension_semantics = [#tpu.dimension_semantics<parallel>], iteration_bounds = array<i64: 2>, scalar_prefetch = 0 : i64, scratch_operands = 0 : i64, tpu.core_type = #tpu.core_type<tc>, window_params = [{transform_indices = @transform_0, window_bounds = array<i64: 128, 4>}, {transform_indices = @transform_1, window_bounds = array<i64: 8, 8>}, {pipeline_mode = #tpu.pipeline_mode<synchronous>, transform_indices = @transform_2, window_bounds = array<i64: 560, 128>}, {transform_indices = @transform_3, window_bounds = array<i64: 64, 4>}]} {
    %c0 = arith.constant 0 : index
    %c0_0 = arith.constant 0 : index
    %0 = vector.load %arg1[%c0, %c0_0] : memref<128x4xf32, #tpu.memory_space<vmem>>, vector<128x4xf32>
    %c0_1 = arith.constant 0 : index
    %c0_2 = arith.constant 0 : index
    %1 = vector.load %arg2[%c0_1, %c0_2] : memref<8x8xf32, #tpu.memory_space<vmem>>, vector<8x8xf32>
    %c320 = arith.constant 320 : index
    %c0_3 = arith.constant 0 : index
    %2 = vector.load %arg3[%c320, %c0_3] : memref<560x128xf32, #tpu.memory_space<vmem>>, vector<64x64xf32>
    %c0_4 = arith.constant 0 : index
    %c0_5 = arith.constant 0 : index
    %3 = vector.load %arg3[%c0_4, %c0_5] : memref<560x128xf32, #tpu.memory_space<vmem>>, vector<128x128xf32>
    %4 = arith.truncf %3 : vector<128x128xf32> to vector<128x128xbf16>
    %5 = arith.truncf %0 : vector<128x4xf32> to vector<128x4xbf16>
    %cst = arith.constant dense<0.000000e+00> : vector<128x4xf32>
    %6 = tpu.matmul %4, %5, %cst {dimension_numbers = #tpu.dot_dimension_numbers<[1], [0], [0], [1], [0, 0, 1, 1], [], []>} : vector<128x128xbf16>, vector<128x4xbf16>, vector<128x4xf32> -> vector<128x4xf32>
    %c320_6 = arith.constant 320 : index
    %c74 = arith.constant 74 : index
    %7 = vector.load %arg3[%c320_6, %c74] : memref<560x128xf32, #tpu.memory_space<vmem>>, vector<4x4xf32>
    %8 = arith.truncf %6 : vector<128x4xf32> to vector<128x4xbf16>
    %9 = arith.truncf %7 : vector<4x4xf32> to vector<4x4xbf16>
    %cst_7 = arith.constant dense<0.000000e+00> : vector<128x4xf32>
    %10 = tpu.matmul %8, %9, %cst_7 {dimension_numbers = #tpu.dot_dimension_numbers<[1], [0], [0], [1], [0, 0, 1, 1], [], []>} : vector<128x4xbf16>, vector<4x4xbf16>, vector<128x4xf32> -> vector<128x4xf32>
    %c320_8 = arith.constant 320 : index
    %c78 = arith.constant 78 : index
    %11 = vector.load %arg3[%c320_8, %c78] : memref<560x128xf32, #tpu.memory_space<vmem>>, vector<1x4xf32>
    %12 = vector.broadcast %11 : vector<1x4xf32> to vector<128x4xf32>
    %13 = arith.addf %10, %12 : vector<128x4xf32>
    %c320_9 = arith.constant 320 : index
    %c82 = arith.constant 82 : index
    %14 = vector.load %arg3[%c320_9, %c82] : memref<560x128xf32, #tpu.memory_space<vmem>>, vector<4x4xf32>
    %15 = arith.truncf %13 : vector<128x4xf32> to vector<128x4xbf16>
    %16 = arith.truncf %14 : vector<4x4xf32> to vector<4x4xbf16>
    %cst_10 = arith.constant dense<0.000000e+00> : vector<128x4xf32>
    %17 = tpu.matmul %15, %16, %cst_10 {dimension_numbers = #tpu.dot_dimension_numbers<[1], [0], [0], [1], [0, 0, 1, 1], [], []>} : vector<128x4xbf16>, vector<4x4xbf16>, vector<128x4xf32> -> vector<128x4xf32>
    %c320_11 = arith.constant 320 : index
    %c86 = arith.constant 86 : index
    %18 = vector.load %arg3[%c320_11, %c86] : memref<560x128xf32, #tpu.memory_space<vmem>>, vector<1x4xf32>
    %19 = vector.broadcast %18 : vector<1x4xf32> to vector<128x4xf32>
    %20 = arith.addf %17, %19 : vector<128x4xf32>
    %cst_12 = arith.constant 5.000000e-01 : f32
    %21 = vector.broadcast %cst_12 : f32 to vector<128x4xf32>
    %22 = arith.mulf %21, %20 : vector<128x4xf32>
    %cst_13 = arith.constant 4.471500e-02 : f32
    %23 = vector.broadcast %cst_13 : f32 to vector<128x4xf32>
    %24 = arith.mulf %23, %20 : vector<128x4xf32>
    %25 = arith.mulf %24, %20 : vector<128x4xf32>
    %26 = arith.mulf %25, %20 : vector<128x4xf32>
    %27 = arith.addf %20, %26 : vector<128x4xf32>
    %cst_14 = arith.constant 0.797884583 : f32
    %28 = vector.broadcast %cst_14 : f32 to vector<128x4xf32>
    %29 = arith.mulf %28, %27 : vector<128x4xf32>
    %30 = math.tanh %29 : vector<128x4xf32>
    %cst_15 = arith.constant 1.000000e+00 : f32
    %31 = vector.broadcast %cst_15 : f32 to vector<128x4xf32>
    %32 = arith.addf %31, %30 : vector<128x4xf32>
    %33 = arith.mulf %22, %32 : vector<128x4xf32>
    %c320_16 = arith.constant 320 : index
    %c90 = arith.constant 90 : index
    %34 = vector.load %arg3[%c320_16, %c90] : memref<560x128xf32, #tpu.memory_space<vmem>>, vector<4x16xf32>
    %35 = arith.truncf %33 : vector<128x4xf32> to vector<128x4xbf16>
    %36 = arith.truncf %34 : vector<4x16xf32> to vector<4x16xbf16>
    %cst_17 = arith.constant dense<0.000000e+00> : vector<128x16xf32>
    %37 = tpu.matmul %35, %36, %cst_17 {dimension_numbers = #tpu.dot_dimension_numbers<[1], [0], [0], [1], [0, 0, 1, 1], [], []>} : vector<128x4xbf16>, vector<4x16xbf16>, vector<128x16xf32> -> vector<128x16xf32>
    %c320_18 = arith.constant 320 : index
    %c106 = arith.constant 106 : index
    %38 = vector.load %arg3[%c320_18, %c106] : memref<560x128xf32, #tpu.memory_space<vmem>>, vector<1x16xf32>
    %39 = vector.broadcast %38 : vector<1x16xf32> to vector<128x16xf32>
    %40 = arith.addf %37, %39 : vector<128x16xf32>
    %cst_19 = arith.constant dense<0xFF800000> : vector<16xf32>
    %41 = vector.multi_reduction <maximumf>, %40, %cst_19 [0] : vector<128x16xf32> to vector<16xf32>
    %42 = vector.shape_cast %41 : vector<16xf32> to vector<1x16xf32>
    %43 = vector.broadcast %42 : vector<1x16xf32> to vector<128x16xf32>
    %44 = arith.subf %40, %43 : vector<128x16xf32>
    %45 = math.exp %44 : vector<128x16xf32>
    %c128 = arith.constant 128 : index
    %c0_20 = arith.constant 0 : index
    %46 = vector.load %arg3[%c128, %c0_20] : memref<560x128xf32, #tpu.memory_space<vmem>>, vector<128x128xf32>
    %47 = arith.mulf %40, %45 : vector<128x16xf32>
    %48 = tpu.concatenate %45, %47 in 1 : vector<128x16xf32>, vector<128x16xf32> -> vector<128x32xf32>
    %49 = arith.truncf %46 : vector<128x128xf32> to vector<128x128xbf16>
    %50 = arith.truncf %48 : vector<128x32xf32> to vector<128x32xbf16>
    %cst_21 = arith.constant dense<0.000000e+00> : vector<128x32xf32>
    %51 = tpu.matmul %49, %50, %cst_21 {dimension_numbers = #tpu.dot_dimension_numbers<[1], [0], [0], [1], [0, 0, 1, 1], [], []>} : vector<128x128xbf16>, vector<128x32xbf16>, vector<128x32xf32> -> vector<128x32xf32>
    %52 = vector.extract_strided_slice %51 {offsets = [0, 0], sizes = [128, 16], strides = [1, 1]} : vector<128x32xf32> to vector<128x16xf32>
    %53 = vector.extract_strided_slice %51 {offsets = [0, 16], sizes = [128, 16], strides = [1, 1]} : vector<128x32xf32> to vector<128x16xf32>
    %54 = tpu.reciprocal %52 {approx = true} : vector<128x16xf32> -> vector<128x16xf32>
    %55 = arith.mulf %53, %54 : vector<128x16xf32>
    %56 = tpu.concatenate %0, %55 in 1 : vector<128x4xf32>, vector<128x16xf32> -> vector<128x20xf32>
    %c320_22 = arith.constant 320 : index
    %c122 = arith.constant 122 : index
    %57 = vector.load %arg3[%c320_22, %c122] : memref<560x128xf32, #tpu.memory_space<vmem>>, vector<20x4xf32>
    %58 = arith.truncf %56 : vector<128x20xf32> to vector<128x20xbf16>
    %59 = arith.truncf %57 : vector<20x4xf32> to vector<20x4xbf16>
    %cst_23 = arith.constant dense<0.000000e+00> : vector<128x4xf32>
    %60 = tpu.matmul %58, %59, %cst_23 {dimension_numbers = #tpu.dot_dimension_numbers<[1], [0], [0], [1], [0, 0, 1, 1], [], []>} : vector<128x20xbf16>, vector<20x4xbf16>, vector<128x4xf32> -> vector<128x4xf32>
    %c384 = arith.constant 384 : index
    %c64 = arith.constant 64 : index
    %61 = vector.load %arg3[%c384, %c64] : memref<560x128xf32, #tpu.memory_space<vmem>>, vector<1x4xf32>
    %62 = vector.broadcast %61 : vector<1x4xf32> to vector<128x4xf32>
    %63 = arith.addf %60, %62 : vector<128x4xf32>
    %cst_24 = arith.constant 5.000000e-01 : f32
    %64 = vector.broadcast %cst_24 : f32 to vector<128x4xf32>
    %65 = arith.mulf %64, %63 : vector<128x4xf32>
    %cst_25 = arith.constant 4.471500e-02 : f32
    %66 = vector.broadcast %cst_25 : f32 to vector<128x4xf32>
    %67 = arith.mulf %66, %63 : vector<128x4xf32>
    %68 = arith.mulf %67, %63 : vector<128x4xf32>
    %69 = arith.mulf %68, %63 : vector<128x4xf32>
    %70 = arith.addf %63, %69 : vector<128x4xf32>
    %cst_26 = arith.constant 0.797884583 : f32
    %71 = vector.broadcast %cst_26 : f32 to vector<128x4xf32>
    %72 = arith.mulf %71, %70 : vector<128x4xf32>
    %73 = math.tanh %72 : vector<128x4xf32>
    %cst_27 = arith.constant 1.000000e+00 : f32
    %74 = vector.broadcast %cst_27 : f32 to vector<128x4xf32>
    %75 = arith.addf %74, %73 : vector<128x4xf32>
    %76 = arith.mulf %65, %75 : vector<128x4xf32>
    %c384_28 = arith.constant 384 : index
    %c68 = arith.constant 68 : index
    %77 = vector.load %arg3[%c384_28, %c68] : memref<560x128xf32, #tpu.memory_space<vmem>>, vector<4x4xf32>
    %78 = arith.truncf %76 : vector<128x4xf32> to vector<128x4xbf16>
    %79 = arith.truncf %77 : vector<4x4xf32> to vector<4x4xbf16>
    %cst_29 = arith.constant dense<0.000000e+00> : vector<128x4xf32>
    %80 = tpu.matmul %78, %79, %cst_29 {dimension_numbers = #tpu.dot_dimension_numbers<[1], [0], [0], [1], [0, 0, 1, 1], [], []>} : vector<128x4xbf16>, vector<4x4xbf16>, vector<128x4xf32> -> vector<128x4xf32>
    %c384_30 = arith.constant 384 : index
    %c72 = arith.constant 72 : index
    %81 = vector.load %arg3[%c384_30, %c72] : memref<560x128xf32, #tpu.memory_space<vmem>>, vector<1x4xf32>
    %82 = vector.broadcast %81 : vector<1x4xf32> to vector<128x4xf32>
    %83 = arith.addf %80, %82 : vector<128x4xf32>
    %c256 = arith.constant 256 : index
    %c0_31 = arith.constant 0 : index
    %84 = vector.load %arg3[%c256, %c0_31] : memref<560x128xf32, #tpu.memory_space<vmem>>, vector<64x128xf32>
    %85 = arith.truncf %84 : vector<64x128xf32> to vector<64x128xbf16>
    %86 = arith.truncf %83 : vector<128x4xf32> to vector<128x4xbf16>
    %cst_32 = arith.constant dense<0.000000e+00> : vector<64x4xf32>
    %87 = tpu.matmul %85, %86, %cst_32 {dimension_numbers = #tpu.dot_dimension_numbers<[1], [0], [0], [1], [0, 0, 1, 1], [], []>} : vector<64x128xbf16>, vector<128x4xbf16>, vector<64x4xf32> -> vector<64x4xf32>
    %c320_33 = arith.constant 320 : index
    %c72_34 = arith.constant 72 : index
    %88 = vector.load %arg3[%c320_33, %c72_34] : memref<560x128xf32, #tpu.memory_space<vmem>>, vector<64x1xf32>
    %89 = vector.broadcast %88 : vector<64x1xf32> to vector<64x4xf32>
    %90 = arith.addf %87, %89 : vector<64x4xf32>
    %c320_35 = arith.constant 320 : index
    %c64_36 = arith.constant 64 : index
    %91 = vector.load %arg3[%c320_35, %c64_36] : memref<560x128xf32, #tpu.memory_space<vmem>>, vector<64x8xf32>
    %92 = arith.truncf %91 : vector<64x8xf32> to vector<64x8xbf16>
    %93 = arith.truncf %1 : vector<8x8xf32> to vector<8x8xbf16>
    %cst_37 = arith.constant dense<0.000000e+00> : vector<64x8xf32>
    %94 = tpu.matmul %92, %93, %cst_37 {dimension_numbers = #tpu.dot_dimension_numbers<[1], [0], [0], [1], [0, 0, 1, 1], [], []>} : vector<64x8xbf16>, vector<8x8xbf16>, vector<64x8xf32> -> vector<64x8xf32>
    %c384_38 = arith.constant 384 : index
    %c76 = arith.constant 76 : index
    %95 = vector.load %arg3[%c384_38, %c76] : memref<560x128xf32, #tpu.memory_space<vmem>>, vector<8x16xf32>
    %96 = arith.truncf %94 : vector<64x8xf32> to vector<64x8xbf16>
    %97 = arith.truncf %95 : vector<8x16xf32> to vector<8x16xbf16>
    %cst_39 = arith.constant dense<0.000000e+00> : vector<64x16xf32>
    %98 = tpu.matmul %96, %97, %cst_39 {dimension_numbers = #tpu.dot_dimension_numbers<[1], [0], [0], [1], [0, 0, 1, 1], [], []>} : vector<64x8xbf16>, vector<8x16xbf16>, vector<64x16xf32> -> vector<64x16xf32>
    %c384_40 = arith.constant 384 : index
    %c92 = arith.constant 92 : index
    %99 = vector.load %arg3[%c384_40, %c92] : memref<560x128xf32, #tpu.memory_space<vmem>>, vector<1x16xf32>
    %100 = vector.broadcast %99 : vector<1x16xf32> to vector<64x16xf32>
    %101 = arith.addf %98, %100 : vector<64x16xf32>
    %102 = vector.extract_strided_slice %101 {offsets = [0, 0], sizes = [64, 8], strides = [1, 1]} : vector<64x16xf32> to vector<64x8xf32>
    %103 = tpu.concatenate %90, %102 in 1 : vector<64x4xf32>, vector<64x8xf32> -> vector<64x12xf32>
    %c448 = arith.constant 448 : index
    %c0_41 = arith.constant 0 : index
    %104 = vector.load %arg3[%c448, %c0_41] : memref<560x128xf32, #tpu.memory_space<vmem>>, vector<12x40xf32>
    %105 = arith.truncf %103 : vector<64x12xf32> to vector<64x12xbf16>
    %106 = arith.truncf %104 : vector<12x40xf32> to vector<12x40xbf16>
    %cst_42 = arith.constant dense<0.000000e+00> : vector<64x40xf32>
    %107 = tpu.matmul %105, %106, %cst_42 {dimension_numbers = #tpu.dot_dimension_numbers<[1], [0], [0], [1], [0, 0, 1, 1], [], []>} : vector<64x12xbf16>, vector<12x40xbf16>, vector<64x40xf32> -> vector<64x40xf32>
    %c448_43 = arith.constant 448 : index
    %c40 = arith.constant 40 : index
    %108 = vector.load %arg3[%c448_43, %c40] : memref<560x128xf32, #tpu.memory_space<vmem>>, vector<1x40xf32>
    %109 = vector.broadcast %108 : vector<1x40xf32> to vector<64x40xf32>
    %110 = arith.addf %107, %109 : vector<64x40xf32>
    %111 = vector.extract_strided_slice %110 {offsets = [0, 0], sizes = [64, 8], strides = [1, 1]} : vector<64x40xf32> to vector<64x8xf32>
    %112 = vector.extract_strided_slice %110 {offsets = [0, 8], sizes = [64, 32], strides = [1, 1]} : vector<64x40xf32> to vector<64x32xf32>
    %cst_44 = arith.constant 0.000000e+00 : f32
    %113 = vector.broadcast %cst_44 : f32 to vector<64x32xf32>
    %114 = arith.maximumf %112, %113 : vector<64x32xf32>
    %c464 = arith.constant 464 : index
    %c0_45 = arith.constant 0 : index
    %115 = vector.load %arg3[%c464, %c0_45] : memref<560x128xf32, #tpu.memory_space<vmem>>, vector<32x8xf32>
    %116 = arith.truncf %114 : vector<64x32xf32> to vector<64x32xbf16>
    %117 = arith.truncf %115 : vector<32x8xf32> to vector<32x8xbf16>
    %cst_46 = arith.constant dense<0.000000e+00> : vector<64x8xf32>
    %118 = tpu.matmul %116, %117, %cst_46 {dimension_numbers = #tpu.dot_dimension_numbers<[1], [0], [0], [1], [0, 0, 1, 1], [], []>} : vector<64x32xbf16>, vector<32x8xbf16>, vector<64x8xf32> -> vector<64x8xf32>
    %c448_47 = arith.constant 448 : index
    %c80 = arith.constant 80 : index
    %119 = vector.load %arg3[%c448_47, %c80] : memref<560x128xf32, #tpu.memory_space<vmem>>, vector<1x8xf32>
    %120 = vector.broadcast %119 : vector<1x8xf32> to vector<64x8xf32>
    %121 = arith.addf %118, %120 : vector<64x8xf32>
    %122 = arith.addf %111, %121 : vector<64x8xf32>
    %cst_48 = arith.constant dense<0.000000e+00> : vector<64xf32>
    %123 = vector.multi_reduction <add>, %122, %cst_48 [1] : vector<64x8xf32> to vector<64xf32>
    %124 = vector.shape_cast %123 : vector<64xf32> to vector<64x1xf32>
    %125 = arith.mulf %122, %122 : vector<64x8xf32>
    %cst_49 = arith.constant dense<0.000000e+00> : vector<64xf32>
    %126 = vector.multi_reduction <add>, %125, %cst_49 [1] : vector<64x8xf32> to vector<64xf32>
    %127 = vector.shape_cast %126 : vector<64xf32> to vector<64x1xf32>
    %128 = tpu.concatenate %124, %127 in 1 : vector<64x1xf32>, vector<64x1xf32> -> vector<64x2xf32>
    %cst_50 = arith.constant dense<0.000000e+00> : vector<64x2xf32>
    %129 = tpu.matmul %2, %128, %cst_50 {dimension_numbers = #tpu.dot_dimension_numbers<[1], [0], [0], [1], [0, 0, 1, 1], [], []>} : vector<64x64xf32>, vector<64x2xf32>, vector<64x2xf32> -> vector<64x2xf32>
    %130 = vector.extract_strided_slice %129 {offsets = [0, 0], sizes = [64, 1], strides = [1, 1]} : vector<64x2xf32> to vector<64x1xf32>
    %131 = vector.extract_strided_slice %129 {offsets = [0, 1], sizes = [64, 1], strides = [1, 1]} : vector<64x2xf32> to vector<64x1xf32>
    %132 = arith.mulf %130, %130 : vector<64x1xf32>
    %133 = arith.subf %131, %132 : vector<64x1xf32>
    %134 = vector.broadcast %130 : vector<64x1xf32> to vector<64x8xf32>
    %135 = arith.subf %122, %134 : vector<64x8xf32>
    %cst_51 = arith.constant 9.99999974E-6 : f32
    %136 = vector.broadcast %cst_51 : f32 to vector<64x1xf32>
    %137 = arith.addf %133, %136 : vector<64x1xf32>
    %138 = math.rsqrt %137 : vector<64x1xf32>
    %139 = vector.broadcast %138 : vector<64x1xf32> to vector<64x8xf32>
    %140 = arith.mulf %135, %139 : vector<64x8xf32>
    %c496 = arith.constant 496 : index
    %c0_52 = arith.constant 0 : index
    %141 = vector.load %arg3[%c496, %c0_52] : memref<560x128xf32, #tpu.memory_space<vmem>>, vector<64x8xf32>
    %142 = arith.mulf %140, %141 : vector<64x8xf32>
    %c496_53 = arith.constant 496 : index
    %c8 = arith.constant 8 : index
    %143 = vector.load %arg3[%c496_53, %c8] : memref<560x128xf32, #tpu.memory_space<vmem>>, vector<64x8xf32>
    %144 = arith.addf %142, %143 : vector<64x8xf32>
    %c384_54 = arith.constant 384 : index
    %c0_55 = arith.constant 0 : index
    %145 = vector.load %arg3[%c384_54, %c0_55] : memref<560x128xf32, #tpu.memory_space<vmem>>, vector<64x64xf32>
    %146 = arith.truncf %145 : vector<64x64xf32> to vector<64x64xbf16>
    %147 = arith.truncf %144 : vector<64x8xf32> to vector<64x8xbf16>
    %cst_56 = arith.constant dense<0.000000e+00> : vector<64x8xf32>
    %148 = tpu.matmul %146, %147, %cst_56 {dimension_numbers = #tpu.dot_dimension_numbers<[1], [0], [0], [1], [0, 0, 1, 1], [], []>} : vector<64x64xbf16>, vector<64x8xbf16>, vector<64x8xf32> -> vector<64x8xf32>
    %c320_57 = arith.constant 320 : index
    %c73 = arith.constant 73 : index
    %149 = vector.load %arg3[%c320_57, %c73] : memref<560x128xf32, #tpu.memory_space<vmem>>, vector<64x1xf32>
    %150 = vector.broadcast %149 : vector<64x1xf32> to vector<64x8xf32>
    %151 = arith.addf %148, %150 : vector<64x8xf32>
    %cst_58 = arith.constant 0.000000e+00 : f32
    %152 = vector.broadcast %cst_58 : f32 to vector<64x8xf32>
    %153 = arith.maximumf %151, %152 : vector<64x8xf32>
    %154 = arith.addf %144, %153 : vector<64x8xf32>
    %cst_59 = arith.constant dense<0.000000e+00> : vector<64xf32>
    %155 = vector.multi_reduction <add>, %154, %cst_59 [1] : vector<64x8xf32> to vector<64xf32>
    %156 = vector.shape_cast %155 : vector<64xf32> to vector<64x1xf32>
    %157 = arith.mulf %154, %154 : vector<64x8xf32>
    %cst_60 = arith.constant dense<0.000000e+00> : vector<64xf32>
    %158 = vector.multi_reduction <add>, %157, %cst_60 [1] : vector<64x8xf32> to vector<64xf32>
    %159 = vector.shape_cast %158 : vector<64xf32> to vector<64x1xf32>
    %160 = tpu.concatenate %156, %159 in 1 : vector<64x1xf32>, vector<64x1xf32> -> vector<64x2xf32>
    %cst_61 = arith.constant dense<0.000000e+00> : vector<64x2xf32>
    %161 = tpu.matmul %2, %160, %cst_61 {dimension_numbers = #tpu.dot_dimension_numbers<[1], [0], [0], [1], [0, 0, 1, 1], [], []>} : vector<64x64xf32>, vector<64x2xf32>, vector<64x2xf32> -> vector<64x2xf32>
    %162 = vector.extract_strided_slice %161 {offsets = [0, 0], sizes = [64, 1], strides = [1, 1]} : vector<64x2xf32> to vector<64x1xf32>
    %163 = vector.extract_strided_slice %161 {offsets = [0, 1], sizes = [64, 1], strides = [1, 1]} : vector<64x2xf32> to vector<64x1xf32>
    %164 = arith.mulf %162, %162 : vector<64x1xf32>
    %165 = arith.subf %163, %164 : vector<64x1xf32>
    %166 = vector.broadcast %162 : vector<64x1xf32> to vector<64x8xf32>
    %167 = arith.subf %154, %166 : vector<64x8xf32>
    %cst_62 = arith.constant 9.99999974E-6 : f32
    %168 = vector.broadcast %cst_62 : f32 to vector<64x1xf32>
    %169 = arith.addf %165, %168 : vector<64x1xf32>
    %170 = math.rsqrt %169 : vector<64x1xf32>
    %171 = vector.broadcast %170 : vector<64x1xf32> to vector<64x8xf32>
    %172 = arith.mulf %167, %171 : vector<64x8xf32>
    %c384_63 = arith.constant 384 : index
    %c108 = arith.constant 108 : index
    %173 = vector.load %arg3[%c384_63, %c108] : memref<560x128xf32, #tpu.memory_space<vmem>>, vector<64x8xf32>
    %174 = arith.mulf %172, %173 : vector<64x8xf32>
    %c384_64 = arith.constant 384 : index
    %c116 = arith.constant 116 : index
    %175 = vector.load %arg3[%c384_64, %c116] : memref<560x128xf32, #tpu.memory_space<vmem>>, vector<64x8xf32>
    %176 = arith.addf %174, %175 : vector<64x8xf32>
    %177 = vector.extract_strided_slice %101 {offsets = [0, 8], sizes = [64, 8], strides = [1, 1]} : vector<64x16xf32> to vector<64x8xf32>
    %178 = tpu.concatenate %176, %177 in 1 : vector<64x8xf32>, vector<64x8xf32> -> vector<64x16xf32>
    %c448_65 = arith.constant 448 : index
    %c88 = arith.constant 88 : index
    %179 = vector.load %arg3[%c448_65, %c88] : memref<560x128xf32, #tpu.memory_space<vmem>>, vector<16x40xf32>
    %180 = arith.truncf %178 : vector<64x16xf32> to vector<64x16xbf16>
    %181 = arith.truncf %179 : vector<16x40xf32> to vector<16x40xbf16>
    %cst_66 = arith.constant dense<0.000000e+00> : vector<64x40xf32>
    %182 = tpu.matmul %180, %181, %cst_66 {dimension_numbers = #tpu.dot_dimension_numbers<[1], [0], [0], [1], [0, 0, 1, 1], [], []>} : vector<64x16xbf16>, vector<16x40xbf16>, vector<64x40xf32> -> vector<64x40xf32>
    %c464_67 = arith.constant 464 : index
    %c8_68 = arith.constant 8 : index
    %183 = vector.load %arg3[%c464_67, %c8_68] : memref<560x128xf32, #tpu.memory_space<vmem>>, vector<1x40xf32>
    %184 = vector.broadcast %183 : vector<1x40xf32> to vector<64x40xf32>
    %185 = arith.addf %182, %184 : vector<64x40xf32>
    %186 = vector.extract_strided_slice %185 {offsets = [0, 0], sizes = [64, 8], strides = [1, 1]} : vector<64x40xf32> to vector<64x8xf32>
    %187 = vector.extract_strided_slice %185 {offsets = [0, 8], sizes = [64, 32], strides = [1, 1]} : vector<64x40xf32> to vector<64x32xf32>
    %cst_69 = arith.constant 0.000000e+00 : f32
    %188 = vector.broadcast %cst_69 : f32 to vector<64x32xf32>
    %189 = arith.maximumf %187, %188 : vector<64x32xf32>
    %c464_70 = arith.constant 464 : index
    %c48 = arith.constant 48 : index
    %190 = vector.load %arg3[%c464_70, %c48] : memref<560x128xf32, #tpu.memory_space<vmem>>, vector<32x8xf32>
    %191 = arith.truncf %189 : vector<64x32xf32> to vector<64x32xbf16>
    %192 = arith.truncf %190 : vector<32x8xf32> to vector<32x8xbf16>
    %cst_71 = arith.constant dense<0.000000e+00> : vector<64x8xf32>
    %193 = tpu.matmul %191, %192, %cst_71 {dimension_numbers = #tpu.dot_dimension_numbers<[1], [0], [0], [1], [0, 0, 1, 1], [], []>} : vector<64x32xbf16>, vector<32x8xbf16>, vector<64x8xf32> -> vector<64x8xf32>
    %c464_72 = arith.constant 464 : index
    %c56 = arith.constant 56 : index
    %194 = vector.load %arg3[%c464_72, %c56] : memref<560x128xf32, #tpu.memory_space<vmem>>, vector<1x8xf32>
    %195 = vector.broadcast %194 : vector<1x8xf32> to vector<64x8xf32>
    %196 = arith.addf %193, %195 : vector<64x8xf32>
    %197 = arith.addf %186, %196 : vector<64x8xf32>
    %cst_73 = arith.constant dense<0.000000e+00> : vector<64xf32>
    %198 = vector.multi_reduction <add>, %197, %cst_73 [1] : vector<64x8xf32> to vector<64xf32>
    %199 = vector.shape_cast %198 : vector<64xf32> to vector<64x1xf32>
    %200 = arith.mulf %197, %197 : vector<64x8xf32>
    %cst_74 = arith.constant dense<0.000000e+00> : vector<64xf32>
    %201 = vector.multi_reduction <add>, %200, %cst_74 [1] : vector<64x8xf32> to vector<64xf32>
    %202 = vector.shape_cast %201 : vector<64xf32> to vector<64x1xf32>
    %203 = tpu.concatenate %199, %202 in 1 : vector<64x1xf32>, vector<64x1xf32> -> vector<64x2xf32>
    %cst_75 = arith.constant dense<0.000000e+00> : vector<64x2xf32>
    %204 = tpu.matmul %2, %203, %cst_75 {dimension_numbers = #tpu.dot_dimension_numbers<[1], [0], [0], [1], [0, 0, 1, 1], [], []>} : vector<64x64xf32>, vector<64x2xf32>, vector<64x2xf32> -> vector<64x2xf32>
    %205 = vector.extract_strided_slice %204 {offsets = [0, 0], sizes = [64, 1], strides = [1, 1]} : vector<64x2xf32> to vector<64x1xf32>
    %206 = vector.extract_strided_slice %204 {offsets = [0, 1], sizes = [64, 1], strides = [1, 1]} : vector<64x2xf32> to vector<64x1xf32>
    %207 = arith.mulf %205, %205 : vector<64x1xf32>
    %208 = arith.subf %206, %207 : vector<64x1xf32>
    %209 = vector.broadcast %205 : vector<64x1xf32> to vector<64x8xf32>
    %210 = arith.subf %197, %209 : vector<64x8xf32>
    %cst_76 = arith.constant 9.99999974E-6 : f32
    %211 = vector.broadcast %cst_76 : f32 to vector<64x1xf32>
    %212 = arith.addf %208, %211 : vector<64x1xf32>
    %213 = math.rsqrt %212 : vector<64x1xf32>
    %214 = vector.broadcast %213 : vector<64x1xf32> to vector<64x8xf32>
    %215 = arith.mulf %210, %214 : vector<64x8xf32>
    %c496_77 = arith.constant 496 : index
    %c16 = arith.constant 16 : index
    %216 = vector.load %arg3[%c496_77, %c16] : memref<560x128xf32, #tpu.memory_space<vmem>>, vector<64x8xf32>
    %217 = arith.mulf %215, %216 : vector<64x8xf32>
    %c496_78 = arith.constant 496 : index
    %c24 = arith.constant 24 : index
    %218 = vector.load %arg3[%c496_78, %c24] : memref<560x128xf32, #tpu.memory_space<vmem>>, vector<64x8xf32>
    %219 = arith.addf %217, %218 : vector<64x8xf32>
    %c384_79 = arith.constant 384 : index
    %c124 = arith.constant 124 : index
    %220 = vector.load %arg3[%c384_79, %c124] : memref<560x128xf32, #tpu.memory_space<vmem>>, vector<8x4xf32>
    %221 = arith.truncf %219 : vector<64x8xf32> to vector<64x8xbf16>
    %222 = arith.truncf %220 : vector<8x4xf32> to vector<8x4xbf16>
    %cst_80 = arith.constant dense<0.000000e+00> : vector<64x4xf32>
    %223 = tpu.matmul %221, %222, %cst_80 {dimension_numbers = #tpu.dot_dimension_numbers<[1], [0], [0], [1], [0, 0, 1, 1], [], []>} : vector<64x8xbf16>, vector<8x4xbf16>, vector<64x4xf32> -> vector<64x4xf32>
    %c464_81 = arith.constant 464 : index
    %c64_82 = arith.constant 64 : index
    %224 = vector.load %arg3[%c464_81, %c64_82] : memref<560x128xf32, #tpu.memory_space<vmem>>, vector<1x4xf32>
    %225 = vector.broadcast %224 : vector<1x4xf32> to vector<64x4xf32>
    %226 = arith.addf %223, %225 : vector<64x4xf32>
    %c0_83 = arith.constant 0 : index
    %c0_84 = arith.constant 0 : index
    %227 = vector.load %arg4[%c0_83, %c0_84] : memref<64x4xf32, #tpu.memory_space<vmem>>, vector<64x4xf32>
    tpu.vector_store %arg4[%c0_83, %c0_84], %226 {strides = array<i32>} : memref<64x4xf32, #tpu.memory_space<vmem>>, vector<64x4xf32>,
    return
  }
  func.func @transform_0(%arg0: i32) -> (i32, i32) {
    %c0_i32 = arith.constant 0 : i32
    %c0_i32_0 = arith.constant 0 : i32
    return %arg0, %c0_i32 : i32, i32
  }
  func.func @transform_1(%arg0: i32) -> (i32, i32) {
    %c0_i32 = arith.constant 0 : i32
    %c0_i32_0 = arith.constant 0 : i32
    return %arg0, %c0_i32 : i32, i32
  }
  func.func @transform_2(%arg0: i32) -> (i32, i32) {
    %c0_i32 = arith.constant 0 : i32
    %c0_i32_0 = arith.constant 0 : i32
    %c0_i32_1 = arith.constant 0 : i32
    return %c0_i32, %c0_i32_0 : i32, i32
  }
  func.func @transform_3(%arg0: i32) -> (i32, i32) {
    %c0_i32 = arith.constant 0 : i32
    %c0_i32_0 = arith.constant 0 : i32
    return %arg0, %c0_i32 : i32, i32
  }
}

</mosaic_0001>

<llo_original>
// kernel: tpu_custom_call.1
$region0: #{tpu_custom_call.1}
  #allocation0 [shape = 'u32[]', space=smem, size = 0x4, offset = 0x4, fixed_abs, tag = 'smem constant byte address 0x4 - core index']
  #allocation1 [shape = 'u32[144,128]{1,0:T(1,128)}', space=vmem, size = 0x12000, scoped, tag = 'internal scratch']
  %s0 = inlined_call_operand.vmem [shape: f32[256,4], index: 0, kind: input, shape index: {}]
  %s1 = inlined_call_operand.vmem [shape: f32[16,8], index: 1, kind: input, shape index: {}]
  %s2 = inlined_call_operand.hbm [shape: f32[560,128], index: 2, kind: input, shape index: {}]
  %s3 = inlined_call_operand.vmem [shape: f32[128,4], index: 3, kind: output, shape index: {}]
  %s4 = sld [smem:[#allocation0]]
  $region49: #{tpu_custom_call.1} parent=0
    _
  %s6 = ssub.s32 1, %s4
  %s7 = scalar_select 0, %s6, %s4
  $region1: #{tpu_custom_call.1} parent=0
    #allocation2 [shape = 'u8[286720]{0}', space=vmem, size = 0x46000, scoped, tag = 'input window, operand 2, single buffered']
    #allocation3 [shape = 's32[2]{0}', space=sflag, size = 0x8, scoped, tag = 'scoped memory for tpu_custom_call.1']
    %8 = vsyncpa [#allocation3], 0
    loop: start=0, step=1, limit=4
    $region2: #{tpu_custom_call.1} parent=1 // loop_pre_header
      _
    $region3: #{tpu_custom_call.1} parent=1 // loop_header
      %s10 = sphi 0, %s14
      %p11 = scmp.ge.s32.totalorder %s10, 4
      %s20 = sphi 0, %s22
      %s23 = sphi 0, %s20
      %s24 = sphi 0, %s23
      %s40 = sphi 0, %s24
      %s46 = sphi 0, %s48
      %s49 = sphi 0, %s46
      %s50 = sphi 0, %s49
      %s66 = sphi 0, %s50
      %s70 = sphi 0, %s70
      %s72 = sphi 0, %s70
      %s73 = sphi 0, %s72
      %s87 = sphi 0, %s73
      %s93 = sphi 0, %s95
      %s96 = sphi 0, %s93
      %s97 = sphi 0, %s96
      %s113 = sphi 0, %s97
    $region4: #{tpu_custom_call.1} parent=1 // loop_header_branch
      %13 = sbr.rel (%p11) target = $region8
    $region5: #{tpu_custom_call.1} parent=1 // loop_body
      %s15 = ssub.s32 %s10, 1
      %s16 = ssub.s32 %s10, 2
      %s17 = sadd.s32 %s10, 1
      %s18 = ssub.s32 %s10, %s17
      %p19 = scmp.eq.s32.totalorder %s18, 0
      %s21 = sadd.s32 %s20, 1
      %s22 = scalar_select %p19, %s20, %s21
      %p25 = pneg %p19
      %p26 = scmp.eq.s32.totalorder %s10, 1
      %p27 = por %p25, %p26
      %p28 = scmp.ne.s32.totalorder %s20, %s23
      %p29 = scmp.eq.s32.totalorder %s10, 0
      %p30 = por %p28, %p29
      %p31 = scmp.ne.s32.totalorder %s20, %s23
      %p32 = scmp.eq.s32.totalorder %s15, 1
      %p33 = por %p31, %p32
      %p34 = scmp.ne.s32.totalorder %s23, %s24
      %p35 = scmp.eq.s32.totalorder %s15, 0
      %p36 = por %p34, %p35
      %p37 = scmp.ne.s32.totalorder %s23, %s24
      %p38 = scmp.eq.s32.totalorder %s16, 1
      %p39 = por %p37, %p38
      %p41 = scmp.ne.s32.totalorder %s24, %s40
      %p42 = scmp.eq.s32.totalorder %s16, 0
      %p43 = por %p41, %p42
      %s44 = ssub.s32 %s10, %s17
      %p45 = scmp.eq.s32.totalorder %s44, 0
      %s47 = sadd.s32 %s46, 1
      %s48 = scalar_select %p45, %s46, %s47
      %p51 = pneg %p45
      %p52 = scmp.eq.s32.totalorder %s10, 1
      %p53 = por %p51, %p52
      %p54 = scmp.ne.s32.totalorder %s46, %s49
      %p55 = scmp.eq.s32.totalorder %s10, 0
      %p56 = por %p54, %p55
      %p57 = scmp.ne.s32.totalorder %s46, %s49
      %p58 = scmp.eq.s32.totalorder %s15, 1
      %p59 = por %p57, %p58
      %p60 = scmp.ne.s32.totalorder %s49, %s50
      %p61 = scmp.eq.s32.totalorder %s15, 0
      %p62 = por %p60, %p61
      %p63 = scmp.ne.s32.totalorder %s49, %s50
      %p64 = scmp.eq.s32.totalorder %s16, 1
      %p65 = por %p63, %p64
      %p67 = scmp.ne.s32.totalorder %s50, %s66
      %p68 = scmp.eq.s32.totalorder %s16, 0
      %p69 = por %p67, %p68
      %s71 = sadd.s32 %s70, 1
      %p74 = scmp.eq.s32.totalorder %s10, 1
      %p75 = scmp.ne.s32.totalorder %s70, %s72
      %p76 = scmp.eq.s32.totalorder %s10, 0
      %p77 = por %p75, %p76
      %p78 = scmp.ne.s32.totalorder %s70, %s72
      %p79 = scmp.eq.s32.totalorder %s15, 1
      %p80 = por %p78, %p79
      %p81 = scmp.ne.s32.totalorder %s72, %s73
      %p82 = scmp.eq.s32.totalorder %s15, 0
      %p83 = por %p81, %p82
      %p84 = scmp.ne.s32.totalorder %s72, %s73
      %p85 = scmp.eq.s32.totalorder %s16, 1
      %p86 = por %p84, %p85
      %p88 = scmp.ne.s32.totalorder %s73, %s87
      %p89 = scmp.eq.s32.totalorder %s16, 0
      %p90 = por %p88, %p89
      %s91 = ssub.s32 %s10, %s17
      %p92 = scmp.eq.s32.totalorder %s91, 0
      %s94 = sadd.s32 %s93, 1
      %s95 = scalar_select %p92, %s93, %s94
      %p98 = pneg %p92
      %p99 = scmp.eq.s32.totalorder %s10, 1
      %p100 = por %p98, %p99
      %p101 = scmp.ne.s32.totalorder %s93, %s96
      %p102 = scmp.eq.s32.totalorder %s10, 0
      %p103 = por %p101, %p102
      %p104 = scmp.ne.s32.totalorder %s93, %s96
      %p105 = scmp.eq.s32.totalorder %s15, 1
      %p106 = por %p104, %p105
      %p107 = scmp.ne.s32.totalorder %s96, %s97
      %p108 = scmp.eq.s32.totalorder %s15, 0
      %p109 = por %p107, %p108
      %p110 = scmp.ne.s32.totalorder %s96, %s97
      %p111 = scmp.eq.s32.totalorder %s16, 1
      %p112 = por %p110, %p111
      %p114 = scmp.ne.s32.totalorder %s97, %s113
      %p115 = scmp.eq.s32.totalorder %s16, 0
      %p116 = por %p114, %p115
      %p117 = scmp.le.s32.totalorder 1, %s10
      %p118 = scmp.lt.s32.totalorder %s10, 3
      %p119 = pnand %p117, %p118
      %p120 = pneg %p119
      // Predicated region
      $region9: #{tpu_custom_call.1} parent=5 // pred_check
        _
      $region10: #{tpu_custom_call.1} parent=5 // pred_check_branch
        %122 = sbr.rel (%p119) target = $region12
      $region11: #{tpu_custom_call.1} parent=5 // pred_region
        %s123 = ssub.s32 %s10, 1
        // Predicated region
        $region13: #{tpu_custom_call.1} parent=11 // pred_check
          %p124 = pneg %p83
        $region14: #{tpu_custom_call.1} parent=11 // pred_check_branch
          %126 = sbr.rel (%p124) target = $region16
        $region15: #{tpu_custom_call.1} parent=11 // pred_region
          %s128 = ssub.s32 8960, 8960
          %129 = vsyncadd [#allocation3], %s128
          %s130 = sshll.u32 [#allocation2], 4
          %s131 = int_to_ptr.vmem [resolvable:$true] %s130
          %136 = dma.hbm_to_vmem [thread:$0]  %s2, 8960, %s131, [#allocation3], 128, 128, 8
        $region16: #{tpu_custom_call.1} parent=11 // pred_fallthru
          _
      $region12: #{tpu_custom_call.1} parent=5 // pred_fallthru
        _
      %p137 = scmp.lt.s32.totalorder %s10, 2
      // Predicated region
      $region17: #{tpu_custom_call.1} parent=5 // pred_check
        %p138 = pneg %p137
      $region18: #{tpu_custom_call.1} parent=5 // pred_check_branch
        %140 = sbr.rel (%p138) target = $region20
      $region19: #{tpu_custom_call.1} parent=5 // pred_region
        // Predicated region
        $region21: #{tpu_custom_call.1} parent=19 // pred_check
          %p141 = pneg %p30
        $region22: #{tpu_custom_call.1} parent=19 // pred_check_branch
          %143 = sbr.rel (%p141) target = $region24
        $region23: #{tpu_custom_call.1} parent=19 // pred_region
          %s144 = smul.u32 16, %s10
          %p145 = scmp.lt.s32.totalorder %s144, 31
          %s146 = scalar_select %p145, %s144, 31
          %s147 = smul.addr %s146, 8
          %s148 = scalar_lea.vmem %s0, %s147
          %s149 = smul.u32 16, %s10
        $region24: #{tpu_custom_call.1} parent=19 // pred_fallthru
          _
        // Predicated region
        $region25: #{tpu_custom_call.1} parent=19 // pred_check
          %p150 = pneg %p56
        $region26: #{tpu_custom_call.1} parent=19 // pred_check_branch
          %152 = sbr.rel (%p150) target = $region28
        $region27: #{tpu_custom_call.1} parent=19 // pred_region
          %p153 = scmp.lt.s32.totalorder %s10, 1
          %s154 = scalar_select %p153, %s10, 1
          %s155 = smul.addr %s154, 8
          %s156 = scalar_lea.vmem %s1, %s155
        $region28: #{tpu_custom_call.1} parent=19 // pred_fallthru
          _
      $region20: #{tpu_custom_call.1} parent=5 // pred_fallthru
        _
      %p157 = scmp.le.s32.totalorder 1, %s10
      %p158 = scmp.lt.s32.totalorder %s10, 3
      %p159 = pnand %p157, %p158
      %p160 = pneg %p159
      // Predicated region
      $region29: #{tpu_custom_call.1} parent=5 // pred_check
        _
      $region30: #{tpu_custom_call.1} parent=5 // pred_check_branch
        %162 = sbr.rel (%p159) target = $region32
      $region31: #{tpu_custom_call.1} parent=5 // pred_region
        %s163 = ssub.s32 %s10, 1
        // Predicated region
        $region33: #{tpu_custom_call.1} parent=31 // pred_check
          %p164 = pneg %p83
        $region34: #{tpu_custom_call.1} parent=31 // pred_check_branch
          %166 = sbr.rel (%p164) target = $region36
        $region35: #{tpu_custom_call.1} parent=31 // pred_region
          %167 = dma.done [#allocation3], 8960
        $region36: #{tpu_custom_call.1} parent=31 // pred_fallthru
          _
        %s168 = smul.u32 16, %s15
        %p169 = scmp.lt.s32.totalorder %s168, 31
        %s170 = scalar_select %p169, %s168, 31
        %s171 = smul.addr %s170, 8
        %s172 = scalar_lea.vmem %s0, %s171
        %p173 = pneg %p36
        %p174 = pneg %p33
        %p175 = scmp.lt.s32.totalorder %s15, 1
        %s176 = scalar_select %p175, %s15, 1
        %s177 = smul.addr %s176, 8
        %s178 = scalar_lea.vmem %s1, %s177
        %p179 = pneg %p62
        %p180 = pneg %p59
        %p181 = pneg %p83
        %p182 = pneg %p80
        %p183 = pneg %p109
        %p184 = pneg %p106
        %s185 = smul.u32 8, %s15
        %p186 = scmp.lt.s32.totalorder %s185, 15
        %s187 = scalar_select %p186, %s185, 15
        %s188 = smul.addr %s187, 8
        %s189 = scalar_lea.vmem %s3, %s188
        %s190 = smul.u32 16, %s15
        %p191 = scmp.lt.s32.totalorder %s190, 31
        %s192 = scalar_select %p191, %s190, 31
        %s193 = smul.addr %s192, 8
        %s194 = scalar_lea.vmem %s0, %s193
        %s195 = smul.u32 16, %s15
        %p196 = scmp.lt.s32.totalorder %s15, 1
        %s197 = scalar_select %p196, %s15, 1
        %s198 = smul.addr %s197, 8
        %s199 = scalar_lea.vmem %s1, %s198
        %s200 = smul.u32 8, %s15
        %p201 = scmp.lt.s32.totalorder %s200, 15
        %s202 = scalar_select %p201, %s200, 15
        %s203 = smul.addr %s202, 8
        %s204 = scalar_lea.vmem %s3, %s203
        %s205 = smul.u32 8, %s15
        %v207 = vld [vmem:[%s194] sm:$0xff]
        %v208 = vld [vmem:[%s194 + $0x8] sm:$0xff]
        %v209 = vld [vmem:[%s194 + $0x10] sm:$0xff]
        %v210 = vld [vmem:[%s194 + $0x18] sm:$0xff]
        %v211 = vld [vmem:[%s194 + $0x20] sm:$0xff]
        %v212 = vld [vmem:[%s194 + $0x28] sm:$0xff]
        %v213 = vld [vmem:[%s194 + $0x30] sm:$0xff]
        %v214 = vld [vmem:[%s194 + $0x38] sm:$0xff]
        %v215 = vld [vmem:[%s194 + $0x40] sm:$0xff]
        %v216 = vld [vmem:[%s194 + $0x48] sm:$0xff]
        %v217 = vld [vmem:[%s194 + $0x50] sm:$0xff]
        %v218 = vld [vmem:[%s194 + $0x58] sm:$0xff]
        %v219 = vld [vmem:[%s194 + $0x60] sm:$0xff]
        %v220 = vld [vmem:[%s194 + $0x68] sm:$0xff]
        %v221 = vld [vmem:[%s194 + $0x70] sm:$0xff]
        %v222 = vld [vmem:[%s194 + $0x78] sm:$0xff]
        %v223 = vld [vmem:[%s199] sm:$0xff]
        %v224 = vld [vmem:[#allocation2 + $0x140] sm:$0xff]
        %v225 = vld [vmem:[#allocation2 + $0x148] sm:$0xff]
        %v226 = vld [vmem:[#allocation2 + $0x150] sm:$0xff]
        %v227 = vld [vmem:[#allocation2 + $0x158] sm:$0xff]
        %v228 = vld [vmem:[#allocation2 + $0x160] sm:$0xff]
        %v229 = vld [vmem:[#allocation2 + $0x168] sm:$0xff]
        %v230 = vld [vmem:[#allocation2 + $0x170] sm:$0xff]
        %v231 = vld [vmem:[#allocation2 + $0x178] sm:$0xff]
        %v232 = vld [vmem:[#allocation2] sm:$0xff]
        %v233 = vld [vmem:[#allocation2 + $0x8] sm:$0xff]
        %v234 = vld [vmem:[#allocation2 + $0x10] sm:$0xff]
        %v235 = vld [vmem:[#allocation2 + $0x18] sm:$0xff]
        %v236 = vld [vmem:[#allocation2 + $0x20] sm:$0xff]
        %v237 = vld [vmem:[#allocation2 + $0x28] sm:$0xff]
        %v238 = vld [vmem:[#allocation2 + $0x30] sm:$0xff]
        %v239 = vld [vmem:[#allocation2 + $0x38] sm:$0xff]
        %v240 = vld [vmem:[#allocation2 + $0x40] sm:$0xff]
        %v241 = vld [vmem:[#allocation2 + $0x48] sm:$0xff]
        %v242 = vld [vmem:[#allocation2 + $0x50] sm:$0xff]
        %v243 = vld [vmem:[#allocation2 + $0x58] sm:$0xff]
        %v244 = vld [vmem:[#allocation2 + $0x60] sm:$0xff]
        %v245 = vld [vmem:[#allocation2 + $0x68] sm:$0xff]
        %v246 = vld [vmem:[#allocation2 + $0x70] sm:$0xff]
        %v247 = vld [vmem:[#allocation2 + $0x78] sm:$0xff]
        %v248 = vpack.c.bf16 %v233, %v232
        %v249 = vpack.c.bf16 %v235, %v234
        %v250 = vpack.c.bf16 %v237, %v236
        %v251 = vpack.c.bf16 %v239, %v238
        %v252 = vpack.c.bf16 %v241, %v240
        %v253 = vpack.c.bf16 %v243, %v242
        %v254 = vpack.c.bf16 %v245, %v244
        %v255 = vpack.c.bf16 %v247, %v246
        %v256 = vpack.c.bf16 %v208, %v207
        %v257 = vpack.c.bf16 %v210, %v209
        %v258 = vpack.c.bf16 %v212, %v211
        %v259 = vpack.c.bf16 %v214, %v213
        %v260 = vpack.c.bf16 %v216, %v215
        %v261 = vpack.c.bf16 %v218, %v217
        %v262 = vpack.c.bf16 %v220, %v219
        %v263 = vpack.c.bf16 %v222, %v221
        %264 = vmatprep.subr.bf16.mxu0 0
        %265 = vmatpush1.bf16.msra.mxu0 %v256
        %266 = vmatprep.subr.bf16.mxu0 0
        %267 = vmatpush1.bf16.msra.mxu0 %v257
        %268 = vmatprep.subr.bf16.mxu0 0
        %269 = vmatpush1.bf16.msra.mxu0 %v258
        %270 = vmatprep.subr.bf16.mxu0 0
        %271 = vmatpush1.bf16.msra.mxu0 %v259
        %272 = vmatprep.subr.bf16.mxu0 0
        %273 = vmatpush1.bf16.msra.mxu0 %v260
        %274 = vmatprep.subr.bf16.mxu0 0
        %275 = vmatpush1.bf16.msra.mxu0 %v261
        %276 = vmatprep.subr.bf16.mxu0 0
        %277 = vmatpush1.bf16.msra.mxu0 %v262
        %278 = vmatprep.subr.bf16.mxu0 0
        %279 = vmatpush1.bf16.msra.mxu0 %v263
        %280 = vmatprep.subr.bf16.mxu0 0
        %281 = vmatpush1.bf16.msra.mxu0 0
        %282 = vmatprep.subr.bf16.mxu0 0
        %283 = vmatpush1.bf16.msra.mxu0 0
        %284 = vmatprep.subr.bf16.mxu0 0
        %285 = vmatpush1.bf16.msra.mxu0 0
        %286 = vmatprep.subr.bf16.mxu0 0
        %287 = vmatpush1.bf16.msra.mxu0 0
        %288 = vmatprep.subr.bf16.mxu0 0
        %289 = vmatpush1.bf16.msra.mxu0 0
        %290 = vmatprep.subr.bf16.mxu0 0
        %291 = vmatpush1.bf16.msra.mxu0 0
        %292 = vmatprep.subr.bf16.mxu0 0
        %293 = vmatpush1.bf16.msra.mxu0 0
        %294 = vmatprep.subr.bf16.mxu0 0
        %295 = vmatpush1.bf16.msra.mxu0 0
        %296 = vmatprep.mubr.bf16.mxu0 0
        %297 = vmatmul.mubr.bf16.gmra.mrb[0].mxu0 %v248
        %v298 = vpop.f32.mrb[0].mxu0
        %v299 = vadd.f32 0.0, %v298
        %v300 = vpop.f32.mrb[0].mxu0
        %v301 = vpop.f32.mrb[0].mxu0
        %v302 = vadd.f32 0.0, %v301
        %v303 = vpop.f32.mrb[0].mxu0
        %304 = vmatprep.mubr.bf16.mxu0 0
        %305 = vmatmul.mubr.bf16.gmra.mrb[0].mxu0 %v249
        %v306 = vpop.f32.mrb[0].mxu0
        %v307 = vadd.f32 0.0, %v306
        %v308 = vpop.f32.mrb[0].mxu0
        %v309 = vpop.f32.mrb[0].mxu0
        %v310 = vadd.f32 0.0, %v309
        %v311 = vpop.f32.mrb[0].mxu0
        %312 = vmatprep.mubr.bf16.mxu0 0
        %313 = vmatmul.mubr.bf16.gmra.mrb[0].mxu0 %v250
        %v314 = vpop.f32.mrb[0].mxu0
        %v315 = vadd.f32 0.0, %v314
        %v316 = vpop.f32.mrb[0].mxu0
        %v317 = vpop.f32.mrb[0].mxu0
        %v318 = vadd.f32 0.0, %v317
        %v319 = vpop.f32.mrb[0].mxu0
        %320 = vmatprep.mubr.bf16.mxu0 0
        %321 = vmatmul.mubr.bf16.gmra.mrb[0].mxu0 %v251
        %v322 = vpop.f32.mrb[0].mxu0
        %v323 = vadd.f32 0.0, %v322
        %v324 = vpop.f32.mrb[0].mxu0
        %v325 = vpop.f32.mrb[0].mxu0
        %v326 = vadd.f32 0.0, %v325
        %v327 = vpop.f32.mrb[0].mxu0
        %328 = vmatprep.mubr.bf16.mxu0 0
        %329 = vmatmul.mubr.bf16.gmra.mrb[0].mxu0 %v252
        %v330 = vpop.f32.mrb[0].mxu0
        %v331 = vadd.f32 0.0, %v330
        %v332 = vpop.f32.mrb[0].mxu0
        %v333 = vpop.f32.mrb[0].mxu0
        %v334 = vadd.f32 0.0, %v333
        %v335 = vpop.f32.mrb[0].mxu0
        %336 = vmatprep.mubr.bf16.mxu0 0
        %337 = vmatmul.mubr.bf16.gmra.mrb[0].mxu0 %v253
        %v338 = vpop.f32.mrb[0].mxu0
        %v339 = vadd.f32 0.0, %v338
        %v340 = vpop.f32.mrb[0].mxu0
        %v341 = vpop.f32.mrb[0].mxu0
        %v342 = vadd.f32 0.0, %v341
        %v343 = vpop.f32.mrb[0].mxu0
        %344 = vmatprep.mubr.bf16.mxu0 0
        %345 = vmatmul.mubr.bf16.gmra.mrb[0].mxu0 %v254
        %v346 = vpop.f32.mrb[0].mxu0
        %v347 = vadd.f32 0.0, %v346
        %v348 = vpop.f32.mrb[0].mxu0
        %v349 = vpop.f32.mrb[0].mxu0
        %v350 = vadd.f32 0.0, %v349
        %v351 = vpop.f32.mrb[0].mxu0
        %352 = vmatprep.mubr.bf16.mxu0 0
        %353 = vmatmul.mubr.bf16.gmra.mrb[0].mxu0 %v255
        %v354 = vpop.f32.mrb[0].mxu0
        %v355 = vadd.f32 0.0, %v354
        %v356 = vpop.f32.mrb[0].mxu0
        %v357 = vpop.f32.mrb[0].mxu0
        %v358 = vadd.f32 0.0, %v357
        %v359 = vpop.f32.mrb[0].mxu0
        %360 = vdwg.mxu0
        %v361 = vld [vmem:[#allocation2 + $0x140] sm:$0xf]
        %v362 = vpack.c.bf16 %v302, %v299
        %v363 = vpack.c.bf16 %v310, %v307
        %v364 = vpack.c.bf16 %v318, %v315
        %v365 = vpack.c.bf16 %v326, %v323
        %v366 = vpack.c.bf16 %v334, %v331
        %v367 = vpack.c.bf16 %v342, %v339
        %v368 = vpack.c.bf16 %v350, %v347
        %v369 = vpack.c.bf16 %v358, %v355
        %v370 = vpack.c.bf16 %v361, %v361
        %v371 = vld [vmem:[#allocation2 + $0x140] sm:$0x1]
        %v372 = vlaneseq
        %v373 = vshrl.u32 %v372, 7
        %v374 = vsub.s32 0, %v373
        %v375 = vrot.slane %v371, %v374
        %377 = vrot.lane.b32.xlu0 %v370, 54
        %v378 = vpop.permute.xlu0 %377
        %380 = vrot.lane.b32.xlu0 %v375, 50
        %v381 = vpop.permute.xlu0 %380
        %vm383 = vcmask 31744
        %v385 = vsel %vm383, %v362, 0
        %v388 = vsel %vm383, %v363, 0
        %v391 = vsel %vm383, %v364, 0
        %v394 = vsel %vm383, %v365, 0
        %v397 = vsel %vm383, %v366, 0
        %v400 = vsel %vm383, %v367, 0
        %v403 = vsel %vm383, %v368, 0
        %v406 = vsel %vm383, %v369, 0
        %vm408 = vcmask 1041408
        %v410 = vsel %vm408, %v378, 0
        %412 = vmatprep.subr.bf16.mxu0 0
        %413 = vmatpush1.bf16.msra.mxu0 %v410
        %414 = vmatprep.subr.bf16.mxu0 0
        %415 = vmatpush1.bf16.msra.mxu0 0
        %416 = vmatprep.subr.bf16.mxu0 0
        %417 = vmatpush1.bf16.msra.mxu0 0
        %418 = vmatprep.subr.bf16.mxu0 0
        %419 = vmatpush1.bf16.msra.mxu0 0
        %420 = vmatprep.subr.bf16.mxu0 0
        %421 = vmatpush1.bf16.msra.mxu0 0
        %422 = vmatprep.subr.bf16.mxu0 0
        %423 = vmatpush1.bf16.msra.mxu0 0
        %424 = vmatprep.subr.bf16.mxu0 0
        %425 = vmatpush1.bf16.msra.mxu0 0
        %426 = vmatprep.subr.bf16.mxu0 0
        %427 = vmatpush1.bf16.msra.mxu0 0
        %428 = vmatprep.subr.bf16.mxu0 0
        %429 = vmatpush1.bf16.msra.mxu0 0
        %430 = vmatprep.subr.bf16.mxu0 0
        %431 = vmatpush1.bf16.msra.mxu0 0
        %432 = vmatprep.subr.bf16.mxu0 0
        %433 = vmatpush1.bf16.msra.mxu0 0
        %434 = vmatprep.subr.bf16.mxu0 0
        %435 = vmatpush1.bf16.msra.mxu0 0
        %436 = vmatprep.subr.bf16.mxu0 0
        %437 = vmatpush1.bf16.msra.mxu0 0
        %438 = vmatprep.subr.bf16.mxu0 0
        %439 = vmatpush1.bf16.msra.mxu0 0
        %440 = vmatprep.subr.bf16.mxu0 0
        %441 = vmatpush1.bf16.msra.mxu0 0
        %442 = vmatprep.subr.bf16.mxu0 0
        %443 = vmatpush1.bf16.msra.mxu0 0
        %444 = vmatprep.mubr.bf16.mxu0 0
        %445 = vmatmul.mubr.bf16.gmra.mrb[0].mxu0 %v385
        %v446 = vpop.f32.mrb[0].mxu0
        %v447 = vadd.f32 %v381, %v446
        %v448 = vpop.f32.mrb[0].mxu0
        %v449 = vpop.f32.mrb[0].mxu0
        %v450 = vadd.f32 %v381, %v449
        %v451 = vpop.f32.mrb[0].mxu0
        %452 = vmatprep.mubr.bf16.mxu0 0
        %453 = vmatmul.mubr.bf16.gmra.mrb[0].mxu0 %v388
        %v454 = vpop.f32.mrb[0].mxu0
        %v455 = vadd.f32 %v381, %v454
        %v456 = vpop.f32.mrb[0].mxu0
        %v457 = vpop.f32.mrb[0].mxu0
        %v458 = vadd.f32 %v381, %v457
        %v459 = vpop.f32.mrb[0].mxu0
        %460 = vmatprep.mubr.bf16.mxu0 0
        %461 = vmatmul.mubr.bf16.gmra.mrb[0].mxu0 %v391
        %v462 = vpop.f32.mrb[0].mxu0
        %v463 = vadd.f32 %v381, %v462
        %v464 = vpop.f32.mrb[0].mxu0
        %v465 = vpop.f32.mrb[0].mxu0
        %v466 = vadd.f32 %v381, %v465
        %v467 = vpop.f32.mrb[0].mxu0
        %468 = vmatprep.mubr.bf16.mxu0 0
        %469 = vmatmul.mubr.bf16.gmra.mrb[0].mxu0 %v394
        %v470 = vpop.f32.mrb[0].mxu0
        %v471 = vadd.f32 %v381, %v470
        %v472 = vpop.f32.mrb[0].mxu0
        %v473 = vpop.f32.mrb[0].mxu0
        %v474 = vadd.f32 %v381, %v473
        %v475 = vpop.f32.mrb[0].mxu0
        %476 = vmatprep.mubr.bf16.mxu0 0
        %477 = vmatmul.mubr.bf16.gmra.mrb[0].mxu0 %v397
        %v478 = vpop.f32.mrb[0].mxu0
        %v479 = vadd.f32 %v381, %v478
        %v480 = vpop.f32.mrb[0].mxu0
        %v481 = vpop.f32.mrb[0].mxu0
        %v482 = vadd.f32 %v381, %v481
        %v483 = vpop.f32.mrb[0].mxu0
        %484 = vmatprep.mubr.bf16.mxu0 0
        %485 = vmatmul.mubr.bf16.gmra.mrb[0].mxu0 %v400
        %v486 = vpop.f32.mrb[0].mxu0
        %v487 = vadd.f32 %v381, %v486
        %v488 = vpop.f32.mrb[0].mxu0
        %v489 = vpop.f32.mrb[0].mxu0
        %v490 = vadd.f32 %v381, %v489
        %v491 = vpop.f32.mrb[0].mxu0
        %492 = vmatprep.mubr.bf16.mxu0 0
        %493 = vmatmul.mubr.bf16.gmra.mrb[0].mxu0 %v403
        %v494 = vpop.f32.mrb[0].mxu0
        %v495 = vadd.f32 %v381, %v494
        %v496 = vpop.f32.mrb[0].mxu0
        %v497 = vpop.f32.mrb[0].mxu0
        %v498 = vadd.f32 %v381, %v497
        %v499 = vpop.f32.mrb[0].mxu0
        %500 = vmatprep.mubr.bf16.mxu0 0
        %501 = vmatmul.mubr.bf16.gmra.mrb[0].mxu0 %v406
        %v502 = vpop.f32.mrb[0].mxu0
        %v503 = vadd.f32 %v381, %v502
        %v504 = vpop.f32.mrb[0].mxu0
        %v505 = vpop.f32.mrb[0].mxu0
        %v506 = vadd.f32 %v381, %v505
        %v507 = vpop.f32.mrb[0].mxu0
        %508 = vdwg.mxu0
        %v509 = vpack.c.bf16 %v450, %v447
        %v510 = vpack.c.bf16 %v458, %v455
        %v511 = vpack.c.bf16 %v466, %v463
        %v512 = vpack.c.bf16 %v474, %v471
        %v513 = vpack.c.bf16 %v482, %v479
        %v514 = vpack.c.bf16 %v490, %v487
        %v515 = vpack.c.bf16 %v498, %v495
        %v516 = vpack.c.bf16 %v506, %v503
        %517 = vrot.lane.b32.xlu0 %v370, 46
        %v518 = vpop.permute.xlu0 %517
        %519 = vrot.lane.b32.xlu0 %v375, 42
        %v520 = vpop.permute.xlu0 %519
        %v523 = vsel %vm383, %v509, 0
        %v526 = vsel %vm383, %v510, 0
        %v529 = vsel %vm383, %v511, 0
        %v532 = vsel %vm383, %v512, 0
        %v535 = vsel %vm383, %v513, 0
        %v538 = vsel %vm383, %v514, 0
        %v541 = vsel %vm383, %v515, 0
        %v544 = vsel %vm383, %v516, 0
        %v547 = vsel %vm408, %v518, 0
        %549 = vmatprep.subr.bf16.mxu0 0
        %550 = vmatpush1.bf16.msra.mxu0 %v547
        %551 = vmatprep.subr.bf16.mxu0 0
        %552 = vmatpush1.bf16.msra.mxu0 0
        %553 = vmatprep.subr.bf16.mxu0 0
        %554 = vmatpush1.bf16.msra.mxu0 0
        %555 = vmatprep.subr.bf16.mxu0 0
        %556 = vmatpush1.bf16.msra.mxu0 0
        %557 = vmatprep.subr.bf16.mxu0 0
        %558 = vmatpush1.bf16.msra.mxu0 0
        %559 = vmatprep.subr.bf16.mxu0 0
        %560 = vmatpush1.bf16.msra.mxu0 0
        %561 = vmatprep.subr.bf16.mxu0 0
        %562 = vmatpush1.bf16.msra.mxu0 0
        %563 = vmatprep.subr.bf16.mxu0 0
        %564 = vmatpush1.bf16.msra.mxu0 0
        %565 = vmatprep.subr.bf16.mxu0 0
        %566 = vmatpush1.bf16.msra.mxu0 0
        %567 = vmatprep.subr.bf16.mxu0 0
        %568 = vmatpush1.bf16.msra.mxu0 0
        %569 = vmatprep.subr.bf16.mxu0 0
        %570 = vmatpush1.bf16.msra.mxu0 0
        %571 = vmatprep.subr.bf16.mxu0 0
        %572 = vmatpush1.bf16.msra.mxu0 0
        %573 = vmatprep.subr.bf16.mxu0 0
        %574 = vmatpush1.bf16.msra.mxu0 0
        %575 = vmatprep.subr.bf16.mxu0 0
        %576 = vmatpush1.bf16.msra.mxu0 0
        %577 = vmatprep.subr.bf16.mxu0 0
        %578 = vmatpush1.bf16.msra.mxu0 0
        %579 = vmatprep.subr.bf16.mxu0 0
        %580 = vmatpush1.bf16.msra.mxu0 0
        %581 = vmatprep.mubr.bf16.mxu0 0
        %582 = vmatmul.mubr.bf16.gmra.mrb[0].mxu0 %v523
        %v583 = vpop.f32.mrb[0].mxu0
        %v584 = vadd.f32 %v520, %v583
        %v585 = vpop.f32.mrb[0].mxu0
        %v586 = vpop.f32.mrb[0].mxu0
        %v587 = vadd.f32 %v520, %v586
        %v588 = vpop.f32.mrb[0].mxu0
        %589 = vmatprep.mubr.bf16.mxu0 0
        %590 = vmatmul.mubr.bf16.gmra.mrb[0].mxu0 %v526
        %v591 = vpop.f32.mrb[0].mxu0
        %v592 = vadd.f32 %v520, %v591
        %v593 = vpop.f32.mrb[0].mxu0
        %v594 = vpop.f32.mrb[0].mxu0
        %v595 = vadd.f32 %v520, %v594
        %v596 = vpop.f32.mrb[0].mxu0
        %597 = vmatprep.mubr.bf16.mxu0 0
        %598 = vmatmul.mubr.bf16.gmra.mrb[0].mxu0 %v529
        %v599 = vpop.f32.mrb[0].mxu0
        %v600 = vadd.f32 %v520, %v599
        %v601 = vpop.f32.mrb[0].mxu0
        %v602 = vpop.f32.mrb[0].mxu0
        %v603 = vadd.f32 %v520, %v602
        %v604 = vpop.f32.mrb[0].mxu0
        %605 = vmatprep.mubr.bf16.mxu0 0
        %606 = vmatmul.mubr.bf16.gmra.mrb[0].mxu0 %v532
        %v607 = vpop.f32.mrb[0].mxu0
        %v608 = vadd.f32 %v520, %v607
        %v609 = vpop.f32.mrb[0].mxu0
        %v610 = vpop.f32.mrb[0].mxu0
        %v611 = vadd.f32 %v520, %v610
        %v612 = vpop.f32.mrb[0].mxu0
        %613 = vmatprep.mubr.bf16.mxu0 0
        %614 = vmatmul.mubr.bf16.gmra.mrb[0].mxu0 %v535
        %v615 = vpop.f32.mrb[0].mxu0
        %v616 = vadd.f32 %v520, %v615
        %v617 = vpop.f32.mrb[0].mxu0
        %v618 = vpop.f32.mrb[0].mxu0
        %v619 = vadd.f32 %v520, %v618
        %v620 = vpop.f32.mrb[0].mxu0
        %621 = vmatprep.mubr.bf16.mxu0 0
        %622 = vmatmul.mubr.bf16.gmra.mrb[0].mxu0 %v538
        %v623 = vpop.f32.mrb[0].mxu0
        %v624 = vadd.f32 %v520, %v623
        %v625 = vpop.f32.mrb[0].mxu0
        %v626 = vpop.f32.mrb[0].mxu0
        %v627 = vadd.f32 %v520, %v626
        %v628 = vpop.f32.mrb[0].mxu0
        %629 = vmatprep.mubr.bf16.mxu0 0
        %630 = vmatmul.mubr.bf16.gmra.mrb[0].mxu0 %v541
        %v631 = vpop.f32.mrb[0].mxu0
        %v632 = vadd.f32 %v520, %v631
        %v633 = vpop.f32.mrb[0].mxu0
        %v634 = vpop.f32.mrb[0].mxu0
        %v635 = vadd.f32 %v520, %v634
        %v636 = vpop.f32.mrb[0].mxu0
        %637 = vmatprep.mubr.bf16.mxu0 0
        %638 = vmatmul.mubr.bf16.gmra.mrb[0].mxu0 %v544
        %v639 = vpop.f32.mrb[0].mxu0
        %v640 = vadd.f32 %v520, %v639
        %v641 = vpop.f32.mrb[0].mxu0
        %v642 = vpop.f32.mrb[0].mxu0
        %v643 = vadd.f32 %v520, %v642
        %v644 = vpop.f32.mrb[0].mxu0
        %645 = vdwg.mxu0
        %v646 = vmul.f32 %v584, 0.5
        %v647 = vmul.f32 %v587, 0.5
        %v648 = vmul.f32 %v592, 0.5
        %v649 = vmul.f32 %v595, 0.5
        %v650 = vmul.f32 %v600, 0.5
        %v651 = vmul.f32 %v603, 0.5
        %v652 = vmul.f32 %v608, 0.5
        %v653 = vmul.f32 %v611, 0.5
        %v654 = vmul.f32 %v616, 0.5
        %v655 = vmul.f32 %v619, 0.5
        %v656 = vmul.f32 %v624, 0.5
        %v657 = vmul.f32 %v627, 0.5
        %v658 = vmul.f32 %v632, 0.5
        %v659 = vmul.f32 %v635, 0.5
        %v660 = vmul.f32 %v640, 0.5
        %v661 = vmul.f32 %v643, 0.5
        %v662 = vmul.f32 %v584, 0.044715
        %v663 = vmul.f32 %v587, 0.044715
        %v664 = vmul.f32 %v592, 0.044715
        %v665 = vmul.f32 %v595, 0.044715
        %v666 = vmul.f32 %v600, 0.044715
        %v667 = vmul.f32 %v603, 0.044715
        %v668 = vmul.f32 %v608, 0.044715
        %v669 = vmul.f32 %v611, 0.044715
        %v670 = vmul.f32 %v616, 0.044715
        %v671 = vmul.f32 %v619, 0.044715
        %v672 = vmul.f32 %v624, 0.044715
        %v673 = vmul.f32 %v627, 0.044715
        %v674 = vmul.f32 %v632, 0.044715
        %v675 = vmul.f32 %v635, 0.044715
        %v676 = vmul.f32 %v640, 0.044715
        %v677 = vmul.f32 %v643, 0.044715
        %v678 = vmul.f32 %v662, %v584
        %v679 = vmul.f32 %v663, %v587
        %v680 = vmul.f32 %v664, %v592
        %v681 = vmul.f32 %v665, %v595
        %v682 = vmul.f32 %v666, %v600
        %v683 = vmul.f32 %v667, %v603
        %v684 = vmul.f32 %v668, %v608
        %v685 = vmul.f32 %v669, %v611
        %v686 = vmul.f32 %v670, %v616
        %v687 = vmul.f32 %v671, %v619
        %v688 = vmul.f32 %v672, %v624
        %v689 = vmul.f32 %v673, %v627
        %v690 = vmul.f32 %v674, %v632
        %v691 = vmul.f32 %v675, %v635
        %v692 = vmul.f32 %v676, %v640
        %v693 = vmul.f32 %v677, %v643
        %v694 = vmul.f32 %v678, %v584
        %v695 = vmul.f32 %v679, %v587
        %v696 = vmul.f32 %v680, %v592
        %v697 = vmul.f32 %v681, %v595
        %v698 = vmul.f32 %v682, %v600
        %v699 = vmul.f32 %v683, %v603
        %v700 = vmul.f32 %v684, %v608
        %v701 = vmul.f32 %v685, %v611
        %v702 = vmul.f32 %v686, %v616
        %v703 = vmul.f32 %v687, %v619
        %v704 = vmul.f32 %v688, %v624
        %v705 = vmul.f32 %v689, %v627
        %v706 = vmul.f32 %v690, %v632
        %v707 = vmul.f32 %v691, %v635
        %v708 = vmul.f32 %v692, %v640
        %v709 = vmul.f32 %v693, %v643
        %v710 = vadd.f32 %v584, %v694
        %v711 = vadd.f32 %v587, %v695
        %v712 = vadd.f32 %v592, %v696
        %v713 = vadd.f32 %v595, %v697
        %v714 = vadd.f32 %v600, %v698
        %v715 = vadd.f32 %v603, %v699
        %v716 = vadd.f32 %v608, %v700
        %v717 = vadd.f32 %v611, %v701
        %v718 = vadd.f32 %v616, %v702
        %v719 = vadd.f32 %v619, %v703
        %v720 = vadd.f32 %v624, %v704
        %v721 = vadd.f32 %v627, %v705
        %v722 = vadd.f32 %v632, %v706
        %v723 = vadd.f32 %v635, %v707
        %v724 = vadd.f32 %v640, %v708
        %v725 = vadd.f32 %v643, %v709
        %v726 = vmul.f32 %v710, 0.7978846
        %v727 = vmul.f32 %v711, 0.7978846
        %v728 = vmul.f32 %v712, 0.7978846
        %v729 = vmul.f32 %v713, 0.7978846
        %v730 = vmul.f32 %v714, 0.7978846
        %v731 = vmul.f32 %v715, 0.7978846
        %v732 = vmul.f32 %v716, 0.7978846
        %v733 = vmul.f32 %v717, 0.7978846
        %v734 = vmul.f32 %v718, 0.7978846
        %v735 = vmul.f32 %v719, 0.7978846
        %v736 = vmul.f32 %v720, 0.7978846
        %v737 = vmul.f32 %v721, 0.7978846
        %v738 = vmul.f32 %v722, 0.7978846
        %v739 = vmul.f32 %v723, 0.7978846
        %v740 = vmul.f32 %v724, 0.7978846
        %v741 = vmul.f32 %v725, 0.7978846
        %v742 = vtanh.pop %v726
        %v743 = vtanh.pop %v727
        %v744 = vtanh.pop %v728
        %v745 = vtanh.pop %v729
        %v746 = vtanh.pop %v730
        %v747 = vtanh.pop %v731
        %v748 = vtanh.pop %v732
        %v749 = vtanh.pop %v733
        %v750 = vtanh.pop %v734
        %v751 = vtanh.pop %v735
        %v752 = vtanh.pop %v736
        %v753 = vtanh.pop %v737
        %v754 = vtanh.pop %v738
        %v755 = vtanh.pop %v739
        %v756 = vtanh.pop %v740
        %v757 = vtanh.pop %v741
        %v758 = vadd.f32 %v742, 1.0
        %v759 = vadd.f32 %v743, 1.0
        %v760 = vadd.f32 %v744, 1.0
        %v761 = vadd.f32 %v745, 1.0
        %v762 = vadd.f32 %v746, 1.0
        %v763 = vadd.f32 %v747, 1.0
        %v764 = vadd.f32 %v748, 1.0
        %v765 = vadd.f32 %v749, 1.0
        %v766 = vadd.f32 %v750, 1.0
        %v767 = vadd.f32 %v751, 1.0
        %v768 = vadd.f32 %v752, 1.0
        %v769 = vadd.f32 %v753, 1.0
        %v770 = vadd.f32 %v754, 1.0
        %v771 = vadd.f32 %v755, 1.0
        %v772 = vadd.f32 %v756, 1.0
        %v773 = vadd.f32 %v757, 1.0
        %v774 = vmul.f32 %v646, %v758
        %v775 = vmul.f32 %v647, %v759
        %v776 = vmul.f32 %v648, %v760
        %v777 = vmul.f32 %v649, %v761
        %v778 = vmul.f32 %v650, %v762
        %v779 = vmul.f32 %v651, %v763
        %v780 = vmul.f32 %v652, %v764
        %v781 = vmul.f32 %v653, %v765
        %v782 = vmul.f32 %v654, %v766
        %v783 = vmul.f32 %v655, %v767
        %v784 = vmul.f32 %v656, %v768
        %v785 = vmul.f32 %v657, %v769
        %v786 = vmul.f32 %v658, %v770
        %v787 = vmul.f32 %v659, %v771
        %v788 = vmul.f32 %v660, %v772
        %v789 = vmul.f32 %v661, %v773
        %v790 = vpack.c.bf16 %v775, %v774
        %v791 = vpack.c.bf16 %v777, %v776
        %v792 = vpack.c.bf16 %v779, %v778
        %v793 = vpack.c.bf16 %v781, %v780
        %v794 = vpack.c.bf16 %v783, %v782
        %v795 = vpack.c.bf16 %v785, %v784
        %v796 = vpack.c.bf16 %v787, %v786
        %v797 = vpack.c.bf16 %v789, %v788
        %798 = vrot.lane.b32.xlu0 %v370, 38
        %v799 = vpop.permute.xlu0 %798
        %800 = vrot.lane.b32.xlu0 %v375, 22
        %v801 = vpop.permute.xlu0 %800
        %v804 = vsel %vm383, %v790, 0
        %v807 = vsel %vm383, %v791, 0
        %v810 = vsel %vm383, %v792, 0
        %v813 = vsel %vm383, %v793, 0
        %v816 = vsel %vm383, %v794, 0
        %v819 = vsel %vm383, %v795, 0
        %v822 = vsel %vm383, %v796, 0
        %v825 = vsel %vm383, %v797, 0
        %v828 = vsel %vm408, %v799, 0
        %830 = vmatprep.subr.bf16.mxu0 0
        %831 = vmatpush1.bf16.msra.mxu0 %v828
        %832 = vmatprep.subr.bf16.mxu0 0
        %833 = vmatpush1.bf16.msra.mxu0 0
        %834 = vmatprep.subr.bf16.mxu0 0
        %835 = vmatpush1.bf16.msra.mxu0 0
        %836 = vmatprep.subr.bf16.mxu0 0
        %837 = vmatpush1.bf16.msra.mxu0 0
        %838 = vmatprep.subr.bf16.mxu0 0
        %839 = vmatpush1.bf16.msra.mxu0 0
        %840 = vmatprep.subr.bf16.mxu0 0
        %841 = vmatpush1.bf16.msra.mxu0 0
        %842 = vmatprep.subr.bf16.mxu0 0
        %843 = vmatpush1.bf16.msra.mxu0 0
        %844 = vmatprep.subr.bf16.mxu0 0
        %845 = vmatpush1.bf16.msra.mxu0 0
        %846 = vmatprep.subr.bf16.mxu0 0
        %847 = vmatpush1.bf16.msra.mxu0 0
        %848 = vmatprep.subr.bf16.mxu0 0
        %849 = vmatpush1.bf16.msra.mxu0 0
        %850 = vmatprep.subr.bf16.mxu0 0
        %851 = vmatpush1.bf16.msra.mxu0 0
        %852 = vmatprep.subr.bf16.mxu0 0
        %853 = vmatpush1.bf16.msra.mxu0 0
        %854 = vmatprep.subr.bf16.mxu0 0
        %855 = vmatpush1.bf16.msra.mxu0 0
        %856 = vmatprep.subr.bf16.mxu0 0
        %857 = vmatpush1.bf16.msra.mxu0 0
        %858 = vmatprep.subr.bf16.mxu0 0
        %859 = vmatpush1.bf16.msra.mxu0 0
        %860 = vmatprep.subr.bf16.mxu0 0
        %861 = vmatpush1.bf16.msra.mxu0 0
        %862 = vmatprep.mubr.bf16.mxu0 0
        %863 = vmatmul.mubr.bf16.gmra.mrb[0].mxu0 %v804
        %v864 = vpop.f32.mrb[0].mxu0
        %v865 = vadd.f32 %v801, %v864
        %v866 = vpop.f32.mrb[0].mxu0
        %v867 = vpop.f32.mrb[0].mxu0
        %v868 = vadd.f32 %v801, %v867
        %v869 = vpop.f32.mrb[0].mxu0
        %870 = vmatprep.mubr.bf16.mxu0 0
        %871 = vmatmul.mubr.bf16.gmra.mrb[0].mxu0 %v807
        %v872 = vpop.f32.mrb[0].mxu0
        %v873 = vadd.f32 %v801, %v872
        %v874 = vpop.f32.mrb[0].mxu0
        %v875 = vpop.f32.mrb[0].mxu0
        %v876 = vadd.f32 %v801, %v875
        %v877 = vpop.f32.mrb[0].mxu0
        %878 = vmatprep.mubr.bf16.mxu0 0
        %879 = vmatmul.mubr.bf16.gmra.mrb[0].mxu0 %v810
        %v880 = vpop.f32.mrb[0].mxu0
        %v881 = vadd.f32 %v801, %v880
        %v882 = vpop.f32.mrb[0].mxu0
        %v883 = vpop.f32.mrb[0].mxu0
        %v884 = vadd.f32 %v801, %v883
        %v885 = vpop.f32.mrb[0].mxu0
        %886 = vmatprep.mubr.bf16.mxu0 0
        %887 = vmatmul.mubr.bf16.gmra.mrb[0].mxu0 %v813
        %v888 = vpop.f32.mrb[0].mxu0
        %v889 = vadd.f32 %v801, %v888
        %v890 = vpop.f32.mrb[0].mxu0
        %v891 = vpop.f32.mrb[0].mxu0
        %v892 = vadd.f32 %v801, %v891
        %v893 = vpop.f32.mrb[0].mxu0
        %894 = vmatprep.mubr.bf16.mxu0 0
        %895 = vmatmul.mubr.bf16.gmra.mrb[0].mxu0 %v816
        %v896 = vpop.f32.mrb[0].mxu0
        %v897 = vadd.f32 %v801, %v896
        %v898 = vpop.f32.mrb[0].mxu0
        %v899 = vpop.f32.mrb[0].mxu0
        %v900 = vadd.f32 %v801, %v899
        %v901 = vpop.f32.mrb[0].mxu0
        %902 = vmatprep.mubr.bf16.mxu0 0
        %903 = vmatmul.mubr.bf16.gmra.mrb[0].mxu0 %v819
        %v904 = vpop.f32.mrb[0].mxu0
        %v905 = vadd.f32 %v801, %v904
        %v906 = vpop.f32.mrb[0].mxu0
        %v907 = vpop.f32.mrb[0].mxu0
        %v908 = vadd.f32 %v801, %v907
        %v909 = vpop.f32.mrb[0].mxu0
        %910 = vmatprep.mubr.bf16.mxu0 0
        %911 = vmatmul.mubr.bf16.gmra.mrb[0].mxu0 %v822
        %v912 = vpop.f32.mrb[0].mxu0
        %v913 = vadd.f32 %v801, %v912
        %v914 = vpop.f32.mrb[0].mxu0
        %v915 = vpop.f32.mrb[0].mxu0
        %v916 = vadd.f32 %v801, %v915
        %v917 = vpop.f32.mrb[0].mxu0
        %918 = vmatprep.mubr.bf16.mxu0 0
        %919 = vmatmul.mubr.bf16.gmra.mrb[0].mxu0 %v825
        %v920 = vpop.f32.mrb[0].mxu0
        %v921 = vadd.f32 %v801, %v920
        %v922 = vpop.f32.mrb[0].mxu0
        %v923 = vpop.f32.mrb[0].mxu0
        %v924 = vadd.f32 %v801, %v923
        %v925 = vpop.f32.mrb[0].mxu0
        %926 = vdwg.mxu0
        %vm927 = vcmask 130048
        %v928 = vsel %vm927, %v865, -inf
        %v929 = vsel %vm927, %v868, -inf
        %v930 = vsel %vm927, %v873, -inf
        %v931 = vsel %vm927, %v876, -inf
        %v932 = vsel %vm927, %v881, -inf
        %v933 = vmax.f32 %v928, %v932
        %v934 = vsel %vm927, %v884, -inf
        %v935 = vmax.f32 %v929, %v934
        %v936 = vsel %vm927, %v889, -inf
        %v937 = vmax.f32 %v930, %v936
        %v938 = vsel %vm927, %v892, -inf
        %v939 = vmax.f32 %v931, %v938
        %v940 = vsel %vm927, %v897, -inf
        %v941 = vmax.f32 %v933, %v940
        %v942 = vsel %vm927, %v900, -inf
        %v943 = vmax.f32 %v935, %v942
        %v944 = vsel %vm927, %v905, -inf
        %v945 = vmax.f32 %v937, %v944
        %v946 = vsel %vm927, %v908, -inf
        %v947 = vmax.f32 %v939, %v946
        %v948 = vsel %vm927, %v913, -inf
        %v949 = vmax.f32 %v941, %v948
        %v950 = vsel %vm927, %v916, -inf
        %v951 = vmax.f32 %v943, %v950
        %v952 = vsel %vm927, %v921, -inf
        %v953 = vmax.f32 %v945, %v952
        %v954 = vsel %vm927, %v924, -inf
        %v955 = vmax.f32 %v947, %v954
        %v956 = vmax.f32 %v949, %v951
        %v957 = vmax.f32 %v953, %v955
        %v958 = vmax.f32 %v956, %v957
        %v959 = vrot.slane %v958, 4
        %v960 = vmax.f32 %v958, %v959
        %v961 = vrot.slane %v960, 2
        %v962 = vmax.f32 %v960, %v961
        %v963 = vrot.slane %v962, 1
        %v964 = vmax.f32 %v962, %v963
        %v965 = vsub.f32 %v865, %v964
        %v966 = vsub.f32 %v868, %v964
        %v967 = vsub.f32 %v873, %v964
        %v968 = vsub.f32 %v876, %v964
        %v969 = vsub.f32 %v881, %v964
        %v970 = vsub.f32 %v884, %v964
        %v971 = vsub.f32 %v889, %v964
        %v972 = vsub.f32 %v892, %v964
        %v973 = vsub.f32 %v897, %v964
        %v974 = vsub.f32 %v900, %v964
        %v975 = vsub.f32 %v905, %v964
        %v976 = vsub.f32 %v908, %v964
        %v977 = vsub.f32 %v913, %v964
        %v978 = vsub.f32 %v916, %v964
        %v979 = vsub.f32 %v921, %v964
        %v980 = vsub.f32 %v924, %v964
        %v981 = vmul.f32 %v965, 1.442695
        %v982 = vpow.pop %v981
        %v983 = vmul.f32 %v966, 1.442695
        %v984 = vpow.pop %v983
        %v985 = vmul.f32 %v967, 1.442695
        %v986 = vpow.pop %v985
        %v987 = vmul.f32 %v968, 1.442695
        %v988 = vpow.pop %v987
        %v989 = vmul.f32 %v969, 1.442695
        %v990 = vpow.pop %v989
        %v991 = vmul.f32 %v970, 1.442695
        %v992 = vpow.pop %v991
        %v993 = vmul.f32 %v971, 1.442695
        %v994 = vpow.pop %v993
        %v995 = vmul.f32 %v972, 1.442695
        %v996 = vpow.pop %v995
        %v997 = vmul.f32 %v973, 1.442695
        %v998 = vpow.pop %v997
        %v999 = vmul.f32 %v974, 1.442695
        %v1000 = vpow.pop %v999
        %v1001 = vmul.f32 %v975, 1.442695
        %v1002 = vpow.pop %v1001
        %v1003 = vmul.f32 %v976, 1.442695
        %v1004 = vpow.pop %v1003
        %v1005 = vmul.f32 %v977, 1.442695
        %v1006 = vpow.pop %v1005
        %v1007 = vmul.f32 %v978, 1.442695
        %v1008 = vpow.pop %v1007
        %v1009 = vmul.f32 %v979, 1.442695
        %v1010 = vpow.pop %v1009
        %v1011 = vmul.f32 %v980, 1.442695
        %v1012 = vpow.pop %v1011
        %v1013 = vld [vmem:[#allocation2 + $0x80] sm:$0xff]
        %v1014 = vld [vmem:[#allocation2 + $0x88] sm:$0xff]
        %v1015 = vld [vmem:[#allocation2 + $0x90] sm:$0xff]
        %v1016 = vld [vmem:[#allocation2 + $0x98] sm:$0xff]
        %v1017 = vld [vmem:[#allocation2 + $0xa0] sm:$0xff]
        %v1018 = vld [vmem:[#allocation2 + $0xa8] sm:$0xff]
        %v1019 = vld [vmem:[#allocation2 + $0xb0] sm:$0xff]
        %v1020 = vld [vmem:[#allocation2 + $0xb8] sm:$0xff]
        %v1021 = vld [vmem:[#allocation2 + $0xc0] sm:$0xff]
        %v1022 = vld [vmem:[#allocation2 + $0xc8] sm:$0xff]
        %v1023 = vld [vmem:[#allocation2 + $0xd0] sm:$0xff]
        %v1024 = vld [vmem:[#allocation2 + $0xd8] sm:$0xff]
        %v1025 = vld [vmem:[#allocation2 + $0xe0] sm:$0xff]
        %v1026 = vld [vmem:[#allocation2 + $0xe8] sm:$0xff]
        %v1027 = vld [vmem:[#allocation2 + $0xf0] sm:$0xff]
        %v1028 = vld [vmem:[#allocation2 + $0xf8] sm:$0xff]
        %v1029 = vmul.f32 %v865, %v982
        %v1030 = vmul.f32 %v868, %v984
        %v1031 = vmul.f32 %v873, %v986
        %v1032 = vmul.f32 %v876, %v988
        %v1033 = vmul.f32 %v881, %v990
        %v1034 = vmul.f32 %v884, %v992
        %v1035 = vmul.f32 %v889, %v994
        %v1036 = vmul.f32 %v892, %v996
        %v1037 = vmul.f32 %v897, %v998
        %v1038 = vmul.f32 %v900, %v1000
        %v1039 = vmul.f32 %v905, %v1002
        %v1040 = vmul.f32 %v908, %v1004
        %v1041 = vmul.f32 %v913, %v1006
        %v1042 = vmul.f32 %v916, %v1008
        %v1043 = vmul.f32 %v921, %v1010
        %v1044 = vmul.f32 %v924, %v1012
        %1061 = vrot.lane.b32.xlu0 %v1029, 16
        %v1062 = vpop.permute.xlu0 %1061
        %1063 = vrot.lane.b32.xlu0 %v1030, 16
        %v1064 = vpop.permute.xlu0 %1063
        %1065 = vrot.lane.b32.xlu0 %v1031, 16
        %v1066 = vpop.permute.xlu0 %1065
        %1067 = vrot.lane.b32.xlu0 %v1032, 16
        %v1068 = vpop.permute.xlu0 %1067
        %1069 = vrot.lane.b32.xlu0 %v1033, 16
        %v1070 = vpop.permute.xlu0 %1069
        %1071 = vrot.lane.b32.xlu0 %v1034, 16
        %v1072 = vpop.permute.xlu0 %1071
        %1073 = vrot.lane.b32.xlu0 %v1035, 16
        %v1074 = vpop.permute.xlu0 %1073
        %1075 = vrot.lane.b32.xlu0 %v1036, 16
        %v1076 = vpop.permute.xlu0 %1075
        %1077 = vrot.lane.b32.xlu0 %v1037, 16
        %v1078 = vpop.permute.xlu0 %1077
        %1079 = vrot.lane.b32.xlu0 %v1038, 16
        %v1080 = vpop.permute.xlu0 %1079
        %1081 = vrot.lane.b32.xlu0 %v1039, 16
        %v1082 = vpop.permute.xlu0 %1081
        %1083 = vrot.lane.b32.xlu0 %v1040, 16
        %v1084 = vpop.permute.xlu0 %1083
        %1085 = vrot.lane.b32.xlu0 %v1041, 16
        %v1086 = vpop.permute.xlu0 %1085
        %1087 = vrot.lane.b32.xlu0 %v1042, 16
        %v1088 = vpop.permute.xlu0 %1087
        %1089 = vrot.lane.b32.xlu0 %v1043, 16
        %v1090 = vpop.permute.xlu0 %1089
        %1091 = vrot.lane.b32.xlu0 %v1044, 16
        %v1092 = vpop.permute.xlu0 %1091
        %v1109 = vsel %vm927, %v982, %v1062
        %v1110 = vsel %vm927, %v984, %v1064
        %v1111 = vsel %vm927, %v986, %v1066
        %v1112 = vsel %vm927, %v988, %v1068
        %v1113 = vsel %vm927, %v990, %v1070
        %v1114 = vsel %vm927, %v992, %v1072
        %v1115 = vsel %vm927, %v994, %v1074
        %v1116 = vsel %vm927, %v996, %v1076
        %v1117 = vsel %vm927, %v998, %v1078
        %v1118 = vsel %vm927, %v1000, %v1080
        %v1119 = vsel %vm927, %v1002, %v1082
        %v1120 = vsel %vm927, %v1004, %v1084
        %v1121 = vsel %vm927, %v1006, %v1086
        %v1122 = vsel %vm927, %v1008, %v1088
        %v1123 = vsel %vm927, %v1010, %v1090
        %v1124 = vsel %vm927, %v1012, %v1092
        %v1125 = vpack.c.bf16 %v1014, %v1013
        %v1126 = vpack.c.bf16 %v1016, %v1015
        %v1127 = vpack.c.bf16 %v1018, %v1017
        %v1128 = vpack.c.bf16 %v1020, %v1019
        %v1129 = vpack.c.bf16 %v1022, %v1021
        %v1130 = vpack.c.bf16 %v1024, %v1023
        %v1131 = vpack.c.bf16 %v1026, %v1025
        %v1132 = vpack.c.bf16 %v1028, %v1027
        %v1133 = vpack.c.bf16 %v1110, %v1109
        %v1134 = vpack.c.bf16 %v1112, %v1111
        %v1135 = vpack.c.bf16 %v1114, %v1113
        %v1136 = vpack.c.bf16 %v1116, %v1115
        %v1137 = vpack.c.bf16 %v1118, %v1117
        %v1138 = vpack.c.bf16 %v1120, %v1119
        %v1139 = vpack.c.bf16 %v1122, %v1121
        %v1140 = vpack.c.bf16 %v1124, %v1123
        %1141 = vmatprep.subr.bf16.mxu0 0
        %1142 = vmatpush1.bf16.msra.mxu0 %v1133
        %1143 = vmatprep.subr.bf16.mxu0 0
        %1144 = vmatpush1.bf16.msra.mxu0 %v1134
        %1145 = vmatprep.subr.bf16.mxu0 0
        %1146 = vmatpush1.bf16.msra.mxu0 %v1135
        %1147 = vmatprep.subr.bf16.mxu0 0
        %1148 = vmatpush1.bf16.msra.mxu0 %v1136
        %1149 = vmatprep.subr.bf16.mxu0 0
        %1150 = vmatpush1.bf16.msra.mxu0 %v1137
        %1151 = vmatprep.subr.bf16.mxu0 0
        %1152 = vmatpush1.bf16.msra.mxu0 %v1138
        %1153 = vmatprep.subr.bf16.mxu0 0
        %1154 = vmatpush1.bf16.msra.mxu0 %v1139
        %1155 = vmatprep.subr.bf16.mxu0 0
        %1156 = vmatpush1.bf16.msra.mxu0 %v1140
        %1157 = vmatprep.subr.bf16.mxu0 0
        %1158 = vmatpush1.bf16.msra.mxu0 0
        %1159 = vmatprep.subr.bf16.mxu0 0
        %1160 = vmatpush1.bf16.msra.mxu0 0
        %1161 = vmatprep.subr.bf16.mxu0 0
        %1162 = vmatpush1.bf16.msra.mxu0 0
        %1163 = vmatprep.subr.bf16.mxu0 0
        %1164 = vmatpush1.bf16.msra.mxu0 0
        %1165 = vmatprep.subr.bf16.mxu0 0
        %1166 = vmatpush1.bf16.msra.mxu0 0
        %1167 = vmatprep.subr.bf16.mxu0 0
        %1168 = vmatpush1.bf16.msra.mxu0 0
        %1169 = vmatprep.subr.bf16.mxu0 0
        %1170 = vmatpush1.bf16.msra.mxu0 0
        %1171 = vmatprep.subr.bf16.mxu0 0
        %1172 = vmatpush1.bf16.msra.mxu0 0
        %1173 = vmatprep.mubr.bf16.mxu0 0
        %1174 = vmatmul.mubr.bf16.gmra.mrb[0].mxu0 %v1125
        %v1175 = vpop.f32.mrb[0].mxu0
        %v1176 = vadd.f32 0.0, %v1175
        %v1177 = vpop.f32.mrb[0].mxu0
        %v1178 = vpop.f32.mrb[0].mxu0
        %v1179 = vadd.f32 0.0, %v1178
        %v1180 = vpop.f32.mrb[0].mxu0
        %1181 = vmatprep.mubr.bf16.mxu0 0
        %1182 = vmatmul.mubr.bf16.gmra.mrb[0].mxu0 %v1126
        %v1183 = vpop.f32.mrb[0].mxu0
        %v1184 = vadd.f32 0.0, %v1183
        %v1185 = vpop.f32.mrb[0].mxu0
        %v1186 = vpop.f32.mrb[0].mxu0
        %v1187 = vadd.f32 0.0, %v1186
        %v1188 = vpop.f32.mrb[0].mxu0
        %1189 = vmatprep.mubr.bf16.mxu0 0
        %1190 = vmatmul.mubr.bf16.gmra.mrb[0].mxu0 %v1127
        %v1191 = vpop.f32.mrb[0].mxu0
        %v1192 = vadd.f32 0.0, %v1191
        %v1193 = vpop.f32.mrb[0].mxu0
        %v1194 = vpop.f32.mrb[0].mxu0
        %v1195 = vadd.f32 0.0, %v1194
        %v1196 = vpop.f32.mrb[0].mxu0
        %1197 = vmatprep.mubr.bf16.mxu0 0
        %1198 = vmatmul.mubr.bf16.gmra.mrb[0].mxu0 %v1128
        %v1199 = vpop.f32.mrb[0].mxu0
        %v1200 = vadd.f32 0.0, %v1199
        %v1201 = vpop.f32.mrb[0].mxu0
        %v1202 = vpop.f32.mrb[0].mxu0
        %v1203 = vadd.f32 0.0, %v1202
        %v1204 = vpop.f32.mrb[0].mxu0
        %1205 = vmatprep.mubr.bf16.mxu0 0
        %1206 = vmatmul.mubr.bf16.gmra.mrb[0].mxu0 %v1129
        %v1207 = vpop.f32.mrb[0].mxu0
        %v1208 = vadd.f32 0.0, %v1207
        %v1209 = vpop.f32.mrb[0].mxu0
        %v1210 = vpop.f32.mrb[0].mxu0
        %v1211 = vadd.f32 0.0, %v1210
        %v1212 = vpop.f32.mrb[0].mxu0
        %1213 = vmatprep.mubr.bf16.mxu0 0
        %1214 = vmatmul.mubr.bf16.gmra.mrb[0].mxu0 %v1130
        %v1215 = vpop.f32.mrb[0].mxu0
        %v1216 = vadd.f32 0.0, %v1215
        %v1217 = vpop.f32.mrb[0].mxu0
        %v1218 = vpop.f32.mrb[0].mxu0
        %v1219 = vadd.f32 0.0, %v1218
        %v1220 = vpop.f32.mrb[0].mxu0
        %1221 = vmatprep.mubr.bf16.mxu0 0
        %1222 = vmatmul.mubr.bf16.gmra.mrb[0].mxu0 %v1131
        %v1223 = vpop.f32.mrb[0].mxu0
        %v1224 = vadd.f32 0.0, %v1223
        %v1225 = vpop.f32.mrb[0].mxu0
        %v1226 = vpop.f32.mrb[0].mxu0
        %v1227 = vadd.f32 0.0, %v1226
        %v1228 = vpop.f32.mrb[0].mxu0
        %1229 = vmatprep.mubr.bf16.mxu0 0
        %1230 = vmatmul.mubr.bf16.gmra.mrb[0].mxu0 %v1132
        %v1231 = vpop.f32.mrb[0].mxu0
        %v1232 = vadd.f32 0.0, %v1231
        %v1233 = vpop.f32.mrb[0].mxu0
        %v1234 = vpop.f32.mrb[0].mxu0
        %v1235 = vadd.f32 0.0, %v1234
        %v1236 = vpop.f32.mrb[0].mxu0
        %1237 = vdwg.mxu0
        %v1238 = vrcp.pop %v1176
        %v1239 = vrcp.pop %v1179
        %v1240 = vrcp.pop %v1184
        %v1241 = vrcp.pop %v1187
        %v1242 = vrcp.pop %v1192
        %v1243 = vrcp.pop %v1195
        %v1244 = vrcp.pop %v1200
        %v1245 = vrcp.pop %v1203
        %v1246 = vrcp.pop %v1208
        %v1247 = vrcp.pop %v1211
        %v1248 = vrcp.pop %v1216
        %v1249 = vrcp.pop %v1219
        %v1250 = vrcp.pop %v1224
        %v1251 = vrcp.pop %v1227
        %v1252 = vrcp.pop %v1232
        %v1253 = vrcp.pop %v1235
        %1270 = vrot.lane.b32.xlu0 %v1238, 16
        %v1271 = vpop.permute.xlu0 %1270
        %1272 = vrot.lane.b32.xlu0 %v1239, 16
        %v1273 = vpop.permute.xlu0 %1272
        %1274 = vrot.lane.b32.xlu0 %v1240, 16
        %v1275 = vpop.permute.xlu0 %1274
        %1276 = vrot.lane.b32.xlu0 %v1241, 16
        %v1277 = vpop.permute.xlu0 %1276
        %1278 = vrot.lane.b32.xlu0 %v1242, 16
        %v1279 = vpop.permute.xlu0 %1278
        %1280 = vrot.lane.b32.xlu0 %v1243, 16
        %v1281 = vpop.permute.xlu0 %1280
        %1282 = vrot.lane.b32.xlu0 %v1244, 16
        %v1283 = vpop.permute.xlu0 %1282
        %1284 = vrot.lane.b32.xlu0 %v1245, 16
        %v1285 = vpop.permute.xlu0 %1284
        %1286 = vrot.lane.b32.xlu0 %v1246, 16
        %v1287 = vpop.permute.xlu0 %1286
        %1288 = vrot.lane.b32.xlu0 %v1247, 16
        %v1289 = vpop.permute.xlu0 %1288
        %1290 = vrot.lane.b32.xlu0 %v1248, 16
        %v1291 = vpop.permute.xlu0 %1290
        %1292 = vrot.lane.b32.xlu0 %v1249, 16
        %v1293 = vpop.permute.xlu0 %1292
        %1294 = vrot.lane.b32.xlu0 %v1250, 16
        %v1295 = vpop.permute.xlu0 %1294
        %1296 = vrot.lane.b32.xlu0 %v1251, 16
        %v1297 = vpop.permute.xlu0 %1296
        %1298 = vrot.lane.b32.xlu0 %v1252, 16
        %v1299 = vpop.permute.xlu0 %1298
        %1300 = vrot.lane.b32.xlu0 %v1253, 16
        %v1301 = vpop.permute.xlu0 %1300
        %v1318 = vmul.f32 %v1176, %v1271
        %v1319 = vmul.f32 %v1179, %v1273
        %v1320 = vmul.f32 %v1184, %v1275
        %v1321 = vmul.f32 %v1187, %v1277
        %v1322 = vmul.f32 %v1192, %v1279
        %v1323 = vmul.f32 %v1195, %v1281
        %v1324 = vmul.f32 %v1200, %v1283
        %v1325 = vmul.f32 %v1203, %v1285
        %v1326 = vmul.f32 %v1208, %v1287
        %v1327 = vmul.f32 %v1211, %v1289
        %v1328 = vmul.f32 %v1216, %v1291
        %v1329 = vmul.f32 %v1219, %v1293
        %v1330 = vmul.f32 %v1224, %v1295
        %v1331 = vmul.f32 %v1227, %v1297
        %v1332 = vmul.f32 %v1232, %v1299
        %v1333 = vmul.f32 %v1235, %v1301
        %1350 = vrot.lane.b32.xlu0 %v1318, 116
        %v1351 = vpop.permute.xlu0 %1350
        %1352 = vrot.lane.b32.xlu0 %v1319, 116
        %v1353 = vpop.permute.xlu0 %1352
        %1354 = vrot.lane.b32.xlu0 %v1320, 116
        %v1355 = vpop.permute.xlu0 %1354
        %1356 = vrot.lane.b32.xlu0 %v1321, 116
        %v1357 = vpop.permute.xlu0 %1356
        %1358 = vrot.lane.b32.xlu0 %v1322, 116
        %v1359 = vpop.permute.xlu0 %1358
        %1360 = vrot.lane.b32.xlu0 %v1323, 116
        %v1361 = vpop.permute.xlu0 %1360
        %1362 = vrot.lane.b32.xlu0 %v1324, 116
        %v1363 = vpop.permute.xlu0 %1362
        %1364 = vrot.lane.b32.xlu0 %v1325, 116
        %v1365 = vpop.permute.xlu0 %1364
        %1366 = vrot.lane.b32.xlu0 %v1326, 116
        %v1367 = vpop.permute.xlu0 %1366
        %1368 = vrot.lane.b32.xlu0 %v1327, 116
        %v1369 = vpop.permute.xlu0 %1368
        %1370 = vrot.lane.b32.xlu0 %v1328, 116
        %v1371 = vpop.permute.xlu0 %1370
        %1372 = vrot.lane.b32.xlu0 %v1329, 116
        %v1373 = vpop.permute.xlu0 %1372
        %1374 = vrot.lane.b32.xlu0 %v1330, 116
        %v1375 = vpop.permute.xlu0 %1374
        %1376 = vrot.lane.b32.xlu0 %v1331, 116
        %v1377 = vpop.permute.xlu0 %1376
        %1378 = vrot.lane.b32.xlu0 %v1332, 116
        %v1379 = vpop.permute.xlu0 %1378
        %1380 = vrot.lane.b32.xlu0 %v1333, 116
        %v1381 = vpop.permute.xlu0 %1380
        %v1398 = vsel %vm383, %v207, %v1351
        %v1399 = vsel %vm383, %v208, %v1353
        %v1400 = vsel %vm383, %v209, %v1355
        %v1401 = vsel %vm383, %v210, %v1357
        %v1402 = vsel %vm383, %v211, %v1359
        %v1403 = vsel %vm383, %v212, %v1361
        %v1404 = vsel %vm383, %v213, %v1363
        %v1405 = vsel %vm383, %v214, %v1365
        %v1406 = vsel %vm383, %v215, %v1367
        %v1407 = vsel %vm383, %v216, %v1369
        %v1408 = vsel %vm383, %v217, %v1371
        %v1409 = vsel %vm383, %v218, %v1373
        %v1410 = vsel %vm383, %v219, %v1375
        %v1411 = vsel %vm383, %v220, %v1377
        %v1412 = vsel %vm383, %v221, %v1379
        %v1413 = vsel %vm383, %v222, %v1381
        %v1414 = vld [vmem:[#allocation2 + $0x140] sm:$0xff]
        %v1415 = vld [vmem:[#allocation2 + $0x148] sm:$0xff]
        %v1416 = vld [vmem:[#allocation2 + $0x150] sm:$0xf]
        %v1417 = vpack.c.bf16 %v1399, %v1398
        %v1418 = vpack.c.bf16 %v1401, %v1400
        %v1419 = vpack.c.bf16 %v1403, %v1402
        %v1420 = vpack.c.bf16 %v1405, %v1404
        %v1421 = vpack.c.bf16 %v1407, %v1406
        %v1422 = vpack.c.bf16 %v1409, %v1408
        %v1423 = vpack.c.bf16 %v1411, %v1410
        %v1424 = vpack.c.bf16 %v1413, %v1412
        %v1425 = vpack.c.bf16 %v1415, %v1414
        %v1426 = vpack.c.bf16 %v1416, %v1416
        %v1427 = vld [vmem:[#allocation2 + $0x180] sm:$0x1]
        %v1428 = vlaneseq
        %v1429 = vshrl.u32 %v1428, 7
        %v1430 = vsub.s32 0, %v1429
        %v1431 = vrot.slane %v1427, %v1430
        %1434 = vrot.lane.b32.xlu0 %v1425, 6
        %v1435 = vpop.permute.xlu0 %1434
        %1436 = vrot.lane.b32.xlu0 %v1426, 6
        %v1437 = vpop.permute.xlu0 %1436
        %1440 = vrot.lane.b32.xlu0 %v1431, 64
        %v1441 = vpop.permute.xlu0 %1440
        %vm1443 = vcmask 162816
        %v1445 = vsel %vm1443, %v1417, 0
        %v1448 = vsel %vm1443, %v1418, 0
        %v1451 = vsel %vm1443, %v1419, 0
        %v1454 = vsel %vm1443, %v1420, 0
        %v1457 = vsel %vm1443, %v1421, 0
        %v1460 = vsel %vm1443, %v1422, 0
        %v1463 = vsel %vm1443, %v1423, 0
        %v1466 = vsel %vm1443, %v1424, 0
        %v1469 = vsel %vm408, %v1437, 0
        %1471 = vmatprep.subr.bf16.mxu0 0
        %1472 = vmatpush1.bf16.msra.mxu0 %v1435
        %1473 = vmatprep.subr.bf16.mxu0 0
        %1474 = vmatpush1.bf16.msra.mxu0 %v1469
        %1475 = vmatprep.subr.bf16.mxu0 0
        %1476 = vmatpush1.bf16.msra.mxu0 0
        %1477 = vmatprep.subr.bf16.mxu0 0
        %1478 = vmatpush1.bf16.msra.mxu0 0
        %1479 = vmatprep.subr.bf16.mxu0 0
        %1480 = vmatpush1.bf16.msra.mxu0 0
        %1481 = vmatprep.subr.bf16.mxu0 0
        %1482 = vmatpush1.bf16.msra.mxu0 0
        %1483 = vmatprep.subr.bf16.mxu0 0
        %1484 = vmatpush1.bf16.msra.mxu0 0
        %1485 = vmatprep.subr.bf16.mxu0 0
        %1486 = vmatpush1.bf16.msra.mxu0 0
        %1487 = vmatprep.subr.bf16.mxu0 0
        %1488 = vmatpush1.bf16.msra.mxu0 0
        %1489 = vmatprep.subr.bf16.mxu0 0
        %1490 = vmatpush1.bf16.msra.mxu0 0
        %1491 = vmatprep.subr.bf16.mxu0 0
        %1492 = vmatpush1.bf16.msra.mxu0 0
        %1493 = vmatprep.subr.bf16.mxu0 0
        %1494 = vmatpush1.bf16.msra.mxu0 0
        %1495 = vmatprep.subr.bf16.mxu0 0
        %1496 = vmatpush1.bf16.msra.mxu0 0
        %1497 = vmatprep.subr.bf16.mxu0 0
        %1498 = vmatpush1.bf16.msra.mxu0 0
        %1499 = vmatprep.subr.bf16.mxu0 0
        %1500 = vmatpush1.bf16.msra.mxu0 0
        %1501 = vmatprep.subr.bf16.mxu0 0
        %1502 = vmatpush1.bf16.msra.mxu0 0
        %1503 = vmatprep.mubr.bf16.mxu0 0
        %1504 = vmatmul.mubr.bf16.gmra.mrb[0].mxu0 %v1445
        %v1505 = vpop.f32.mrb[0].mxu0
        %v1506 = vadd.f32 %v1441, %v1505
        %v1507 = vpop.f32.mrb[0].mxu0
        %v1508 = vpop.f32.mrb[0].mxu0
        %v1509 = vadd.f32 %v1441, %v1508
        %v1510 = vpop.f32.mrb[0].mxu0
        %1511 = vmatprep.mubr.bf16.mxu0 0
        %1512 = vmatmul.mubr.bf16.gmra.mrb[0].mxu0 %v1448
        %v1513 = vpop.f32.mrb[0].mxu0
        %v1514 = vadd.f32 %v1441, %v1513
        %v1515 = vpop.f32.mrb[0].mxu0
        %v1516 = vpop.f32.mrb[0].mxu0
        %v1517 = vadd.f32 %v1441, %v1516
        %v1518 = vpop.f32.mrb[0].mxu0
        %1519 = vmatprep.mubr.bf16.mxu0 0
        %1520 = vmatmul.mubr.bf16.gmra.mrb[0].mxu0 %v1451
        %v1521 = vpop.f32.mrb[0].mxu0
        %v1522 = vadd.f32 %v1441, %v1521
        %v1523 = vpop.f32.mrb[0].mxu0
        %v1524 = vpop.f32.mrb[0].mxu0
        %v1525 = vadd.f32 %v1441, %v1524
        %v1526 = vpop.f32.mrb[0].mxu0
        %1527 = vmatprep.mubr.bf16.mxu0 0
        %1528 = vmatmul.mubr.bf16.gmra.mrb[0].mxu0 %v1454
        %v1529 = vpop.f32.mrb[0].mxu0
        %v1530 = vadd.f32 %v1441, %v1529
        %v1531 = vpop.f32.mrb[0].mxu0
        %v1532 = vpop.f32.mrb[0].mxu0
        %v1533 = vadd.f32 %v1441, %v1532
        %v1534 = vpop.f32.mrb[0].mxu0
        %1535 = vmatprep.mubr.bf16.mxu0 0
        %1536 = vmatmul.mubr.bf16.gmra.mrb[0].mxu0 %v1457
        %v1537 = vpop.f32.mrb[0].mxu0
        %v1538 = vadd.f32 %v1441, %v1537
        %v1539 = vpop.f32.mrb[0].mxu0
        %v1540 = vpop.f32.mrb[0].mxu0
        %v1541 = vadd.f32 %v1441, %v1540
        %v1542 = vpop.f32.mrb[0].mxu0
        %1543 = vmatprep.mubr.bf16.mxu0 0
        %1544 = vmatmul.mubr.bf16.gmra.mrb[0].mxu0 %v1460
        %v1545 = vpop.f32.mrb[0].mxu0
        %v1546 = vadd.f32 %v1441, %v1545
        %v1547 = vpop.f32.mrb[0].mxu0
        %v1548 = vpop.f32.mrb[0].mxu0
        %v1549 = vadd.f32 %v1441, %v1548
        %v1550 = vpop.f32.mrb[0].mxu0
        %1551 = vmatprep.mubr.bf16.mxu0 0
        %1552 = vmatmul.mubr.bf16.gmra.mrb[0].mxu0 %v1463
        %v1553 = vpop.f32.mrb[0].mxu0
        %v1554 = vadd.f32 %v1441, %v1553
        %v1555 = vpop.f32.mrb[0].mxu0
        %v1556 = vpop.f32.mrb[0].mxu0
        %v1557 = vadd.f32 %v1441, %v1556
        %v1558 = vpop.f32.mrb[0].mxu0
        %1559 = vmatprep.mubr.bf16.mxu0 0
        %1560 = vmatmul.mubr.bf16.gmra.mrb[0].mxu0 %v1466
        %v1561 = vpop.f32.mrb[0].mxu0
        %v1562 = vadd.f32 %v1441, %v1561
        %v1563 = vpop.f32.mrb[0].mxu0
        %v1564 = vpop.f32.mrb[0].mxu0
        %v1565 = vadd.f32 %v1441, %v1564
        %v1566 = vpop.f32.mrb[0].mxu0
        %1567 = vdwg.mxu0
        %v1568 = vmul.f32 %v1506, 0.5
        %v1569 = vmul.f32 %v1509, 0.5
        %v1570 = vmul.f32 %v1514, 0.5
        %v1571 = vmul.f32 %v1517, 0.5
        %v1572 = vmul.f32 %v1522, 0.5
        %v1573 = vmul.f32 %v1525, 0.5
        %v1574 = vmul.f32 %v1530, 0.5
        %v1575 = vmul.f32 %v1533, 0.5
        %v1576 = vmul.f32 %v1538, 0.5
        %v1577 = vmul.f32 %v1541, 0.5
        %v1578 = vmul.f32 %v1546, 0.5
        %v1579 = vmul.f32 %v1549, 0.5
        %v1580 = vmul.f32 %v1554, 0.5
        %v1581 = vmul.f32 %v1557, 0.5
        %v1582 = vmul.f32 %v1562, 0.5
        %v1583 = vmul.f32 %v1565, 0.5
        %v1584 = vmul.f32 %v1506, 0.044715
        %v1585 = vmul.f32 %v1509, 0.044715
        %v1586 = vmul.f32 %v1514, 0.044715
        %v1587 = vmul.f32 %v1517, 0.044715
        %v1588 = vmul.f32 %v1522, 0.044715
        %v1589 = vmul.f32 %v1525, 0.044715
        %v1590 = vmul.f32 %v1530, 0.044715
        %v1591 = vmul.f32 %v1533, 0.044715
        %v1592 = vmul.f32 %v1538, 0.044715
        %v1593 = vmul.f32 %v1541, 0.044715
        %v1594 = vmul.f32 %v1546, 0.044715
        %v1595 = vmul.f32 %v1549, 0.044715
        %v1596 = vmul.f32 %v1554, 0.044715
        %v1597 = vmul.f32 %v1557, 0.044715
        %v1598 = vmul.f32 %v1562, 0.044715
        %v1599 = vmul.f32 %v1565, 0.044715
        %v1600 = vmul.f32 %v1584, %v1506
        %v1601 = vmul.f32 %v1585, %v1509
        %v1602 = vmul.f32 %v1586, %v1514
        %v1603 = vmul.f32 %v1587, %v1517
        %v1604 = vmul.f32 %v1588, %v1522
        %v1605 = vmul.f32 %v1589, %v1525
        %v1606 = vmul.f32 %v1590, %v1530
        %v1607 = vmul.f32 %v1591, %v1533
        %v1608 = vmul.f32 %v1592, %v1538
        %v1609 = vmul.f32 %v1593, %v1541
        %v1610 = vmul.f32 %v1594, %v1546
        %v1611 = vmul.f32 %v1595, %v1549
        %v1612 = vmul.f32 %v1596, %v1554
        %v1613 = vmul.f32 %v1597, %v1557
        %v1614 = vmul.f32 %v1598, %v1562
        %v1615 = vmul.f32 %v1599, %v1565
        %v1616 = vmul.f32 %v1600, %v1506
        %v1617 = vmul.f32 %v1601, %v1509
        %v1618 = vmul.f32 %v1602, %v1514
        %v1619 = vmul.f32 %v1603, %v1517
        %v1620 = vmul.f32 %v1604, %v1522
        %v1621 = vmul.f32 %v1605, %v1525
        %v1622 = vmul.f32 %v1606, %v1530
        %v1623 = vmul.f32 %v1607, %v1533
        %v1624 = vmul.f32 %v1608, %v1538
        %v1625 = vmul.f32 %v1609, %v1541
        %v1626 = vmul.f32 %v1610, %v1546
        %v1627 = vmul.f32 %v1611, %v1549
        %v1628 = vmul.f32 %v1612, %v1554
        %v1629 = vmul.f32 %v1613, %v1557
        %v1630 = vmul.f32 %v1614, %v1562
        %v1631 = vmul.f32 %v1615, %v1565
        %v1632 = vadd.f32 %v1506, %v1616
        %v1633 = vadd.f32 %v1509, %v1617
        %v1634 = vadd.f32 %v1514, %v1618
        %v1635 = vadd.f32 %v1517, %v1619
        %v1636 = vadd.f32 %v1522, %v1620
        %v1637 = vadd.f32 %v1525, %v1621
        %v1638 = vadd.f32 %v1530, %v1622
        %v1639 = vadd.f32 %v1533, %v1623
        %v1640 = vadd.f32 %v1538, %v1624
        %v1641 = vadd.f32 %v1541, %v1625
        %v1642 = vadd.f32 %v1546, %v1626
        %v1643 = vadd.f32 %v1549, %v1627
        %v1644 = vadd.f32 %v1554, %v1628
        %v1645 = vadd.f32 %v1557, %v1629
        %v1646 = vadd.f32 %v1562, %v1630
        %v1647 = vadd.f32 %v1565, %v1631
        %v1648 = vmul.f32 %v1632, 0.7978846
        %v1649 = vmul.f32 %v1633, 0.7978846
        %v1650 = vmul.f32 %v1634, 0.7978846
        %v1651 = vmul.f32 %v1635, 0.7978846
        %v1652 = vmul.f32 %v1636, 0.7978846
        %v1653 = vmul.f32 %v1637, 0.7978846
        %v1654 = vmul.f32 %v1638, 0.7978846
        %v1655 = vmul.f32 %v1639, 0.7978846
        %v1656 = vmul.f32 %v1640, 0.7978846
        %v1657 = vmul.f32 %v1641, 0.7978846
        %v1658 = vmul.f32 %v1642, 0.7978846
        %v1659 = vmul.f32 %v1643, 0.7978846
        %v1660 = vmul.f32 %v1644, 0.7978846
        %v1661 = vmul.f32 %v1645, 0.7978846
        %v1662 = vmul.f32 %v1646, 0.7978846
        %v1663 = vmul.f32 %v1647, 0.7978846
        %v1664 = vtanh.pop %v1648
        %v1665 = vtanh.pop %v1649
        %v1666 = vtanh.pop %v1650
        %v1667 = vtanh.pop %v1651
        %v1668 = vtanh.pop %v1652
        %v1669 = vtanh.pop %v1653
        %v1670 = vtanh.pop %v1654
        %v1671 = vtanh.pop %v1655
        %v1672 = vtanh.pop %v1656
        %v1673 = vtanh.pop %v1657
        %v1674 = vtanh.pop %v1658
        %v1675 = vtanh.pop %v1659
        %v1676 = vtanh.pop %v1660
        %v1677 = vtanh.pop %v1661
        %v1678 = vtanh.pop %v1662
        %v1679 = vtanh.pop %v1663
        %v1680 = vadd.f32 %v1664, 1.0
        %v1681 = vadd.f32 %v1665, 1.0
        %v1682 = vadd.f32 %v1666, 1.0
        %v1683 = vadd.f32 %v1667, 1.0
        %v1684 = vadd.f32 %v1668, 1.0
        %v1685 = vadd.f32 %v1669, 1.0
        %v1686 = vadd.f32 %v1670, 1.0
        %v1687 = vadd.f32 %v1671, 1.0
        %v1688 = vadd.f32 %v1672, 1.0
        %v1689 = vadd.f32 %v1673, 1.0
        %v1690 = vadd.f32 %v1674, 1.0
        %v1691 = vadd.f32 %v1675, 1.0
        %v1692 = vadd.f32 %v1676, 1.0
        %v1693 = vadd.f32 %v1677, 1.0
        %v1694 = vadd.f32 %v1678, 1.0
        %v1695 = vadd.f32 %v1679, 1.0
        %v1696 = vmul.f32 %v1568, %v1680
        %v1697 = vmul.f32 %v1569, %v1681
        %v1698 = vmul.f32 %v1570, %v1682
        %v1699 = vmul.f32 %v1571, %v1683
        %v1700 = vmul.f32 %v1572, %v1684
        %v1701 = vmul.f32 %v1573, %v1685
        %v1702 = vmul.f32 %v1574, %v1686
        %v1703 = vmul.f32 %v1575, %v1687
        %v1704 = vmul.f32 %v1576, %v1688
        %v1705 = vmul.f32 %v1577, %v1689
        %v1706 = vmul.f32 %v1578, %v1690
        %v1707 = vmul.f32 %v1579, %v1691
        %v1708 = vmul.f32 %v1580, %v1692
        %v1709 = vmul.f32 %v1581, %v1693
        %v1710 = vmul.f32 %v1582, %v1694
        %v1711 = vmul.f32 %v1583, %v1695
        %v1712 = vld [vmem:[#allocation2 + $0x180] sm:$0xf]
        %v1713 = vpack.c.bf16 %v1697, %v1696
        %v1714 = vpack.c.bf16 %v1699, %v1698
        %v1715 = vpack.c.bf16 %v1701, %v1700
        %v1716 = vpack.c.bf16 %v1703, %v1702
        %v1717 = vpack.c.bf16 %v1705, %v1704
        %v1718 = vpack.c.bf16 %v1707, %v1706
        %v1719 = vpack.c.bf16 %v1709, %v1708
        %v1720 = vpack.c.bf16 %v1711, %v1710
        %v1721 = vpack.c.bf16 %v1712, %v1712
        %1723 = vrot.lane.b32.xlu0 %v1721, 60
        %v1724 = vpop.permute.xlu0 %1723
        %1725 = vrot.lane.b32.xlu0 %v1431, 56
        %v1726 = vpop.permute.xlu0 %1725
        %v1729 = vsel %vm383, %v1713, 0
        %v1732 = vsel %vm383, %v1714, 0
        %v1735 = vsel %vm383, %v1715, 0
        %v1738 = vsel %vm383, %v1716, 0
        %v1741 = vsel %vm383, %v1717, 0
        %v1744 = vsel %vm383, %v1718, 0
        %v1747 = vsel %vm383, %v1719, 0
        %v1750 = vsel %vm383, %v1720, 0
        %v1753 = vsel %vm408, %v1724, 0
        %1755 = vmatprep.subr.bf16.mxu0 0
        %1756 = vmatpush1.bf16.msra.mxu0 %v1753
        %1757 = vmatprep.subr.bf16.mxu0 0
        %1758 = vmatpush1.bf16.msra.mxu0 0
        %1759 = vmatprep.subr.bf16.mxu0 0
        %1760 = vmatpush1.bf16.msra.mxu0 0
        %1761 = vmatprep.subr.bf16.mxu0 0
        %1762 = vmatpush1.bf16.msra.mxu0 0
        %1763 = vmatprep.subr.bf16.mxu0 0
        %1764 = vmatpush1.bf16.msra.mxu0 0
        %1765 = vmatprep.subr.bf16.mxu0 0
        %1766 = vmatpush1.bf16.msra.mxu0 0
        %1767 = vmatprep.subr.bf16.mxu0 0
        %1768 = vmatpush1.bf16.msra.mxu0 0
        %1769 = vmatprep.subr.bf16.mxu0 0
        %1770 = vmatpush1.bf16.msra.mxu0 0
        %1771 = vmatprep.subr.bf16.mxu0 0
        %1772 = vmatpush1.bf16.msra.mxu0 0
        %1773 = vmatprep.subr.bf16.mxu0 0
        %1774 = vmatpush1.bf16.msra.mxu0 0
        %1775 = vmatprep.subr.bf16.mxu0 0
        %1776 = vmatpush1.bf16.msra.mxu0 0
        %1777 = vmatprep.subr.bf16.mxu0 0
        %1778 = vmatpush1.bf16.msra.mxu0 0
        %1779 = vmatprep.subr.bf16.mxu0 0
        %1780 = vmatpush1.bf16.msra.mxu0 0
        %1781 = vmatprep.subr.bf16.mxu0 0
        %1782 = vmatpush1.bf16.msra.mxu0 0
        %1783 = vmatprep.subr.bf16.mxu0 0
        %1784 = vmatpush1.bf16.msra.mxu0 0
        %1785 = vmatprep.subr.bf16.mxu0 0
        %1786 = vmatpush1.bf16.msra.mxu0 0
        %1787 = vmatprep.mubr.bf16.mxu0 0
        %1788 = vmatmul.mubr.bf16.gmra.mrb[0].mxu0 %v1729
        %v1789 = vpop.f32.mrb[0].mxu0
        %v1790 = vadd.f32 %v1726, %v1789
        %v1791 = vpop.f32.mrb[0].mxu0
        %v1792 = vpop.f32.mrb[0].mxu0
        %v1793 = vadd.f32 %v1726, %v1792
        %v1794 = vpop.f32.mrb[0].mxu0
        %1795 = vmatprep.mubr.bf16.mxu0 0
        %1796 = vmatmul.mubr.bf16.gmra.mrb[0].mxu0 %v1732
        %v1797 = vpop.f32.mrb[0].mxu0
        %v1798 = vadd.f32 %v1726, %v1797
        %v1799 = vpop.f32.mrb[0].mxu0
        %v1800 = vpop.f32.mrb[0].mxu0
        %v1801 = vadd.f32 %v1726, %v1800
        %v1802 = vpop.f32.mrb[0].mxu0
        %1803 = vmatprep.mubr.bf16.mxu0 0
        %1804 = vmatmul.mubr.bf16.gmra.mrb[0].mxu0 %v1735
        %v1805 = vpop.f32.mrb[0].mxu0
        %v1806 = vadd.f32 %v1726, %v1805
        %v1807 = vpop.f32.mrb[0].mxu0
        %v1808 = vpop.f32.mrb[0].mxu0
        %v1809 = vadd.f32 %v1726, %v1808
        %v1810 = vpop.f32.mrb[0].mxu0
        %1811 = vmatprep.mubr.bf16.mxu0 0
        %1812 = vmatmul.mubr.bf16.gmra.mrb[0].mxu0 %v1738
        %v1813 = vpop.f32.mrb[0].mxu0
        %v1814 = vadd.f32 %v1726, %v1813
        %v1815 = vpop.f32.mrb[0].mxu0
        %v1816 = vpop.f32.mrb[0].mxu0
        %v1817 = vadd.f32 %v1726, %v1816
        %v1818 = vpop.f32.mrb[0].mxu0
        %1819 = vmatprep.mubr.bf16.mxu0 0
        %1820 = vmatmul.mubr.bf16.gmra.mrb[0].mxu0 %v1741
        %v1821 = vpop.f32.mrb[0].mxu0
        %v1822 = vadd.f32 %v1726, %v1821
        %v1823 = vpop.f32.mrb[0].mxu0
        %v1824 = vpop.f32.mrb[0].mxu0
        %v1825 = vadd.f32 %v1726, %v1824
        %v1826 = vpop.f32.mrb[0].mxu0
        %1827 = vmatprep.mubr.bf16.mxu0 0
        %1828 = vmatmul.mubr.bf16.gmra.mrb[0].mxu0 %v1744
        %v1829 = vpop.f32.mrb[0].mxu0
        %v1830 = vadd.f32 %v1726, %v1829
        %v1831 = vpop.f32.mrb[0].mxu0
        %v1832 = vpop.f32.mrb[0].mxu0
        %v1833 = vadd.f32 %v1726, %v1832
        %v1834 = vpop.f32.mrb[0].mxu0
        %1835 = vmatprep.mubr.bf16.mxu0 0
        %1836 = vmatmul.mubr.bf16.gmra.mrb[0].mxu0 %v1747
        %v1837 = vpop.f32.mrb[0].mxu0
        %v1838 = vadd.f32 %v1726, %v1837
        %v1839 = vpop.f32.mrb[0].mxu0
        %v1840 = vpop.f32.mrb[0].mxu0
        %v1841 = vadd.f32 %v1726, %v1840
        %v1842 = vpop.f32.mrb[0].mxu0
        %1843 = vmatprep.mubr.bf16.mxu0 0
        %1844 = vmatmul.mubr.bf16.gmra.mrb[0].mxu0 %v1750
        %v1845 = vpop.f32.mrb[0].mxu0
        %v1846 = vadd.f32 %v1726, %v1845
        %v1847 = vpop.f32.mrb[0].mxu0
        %v1848 = vpop.f32.mrb[0].mxu0
        %v1849 = vadd.f32 %v1726, %v1848
        %v1850 = vpop.f32.mrb[0].mxu0
        %1851 = vdwg.mxu0
        %v1852 = vld [vmem:[#allocation2 + $0x100] sm:$0xff]
        %v1853 = vld [vmem:[#allocation2 + $0x108] sm:$0xff]
        %v1854 = vld [vmem:[#allocation2 + $0x110] sm:$0xff]
        %v1855 = vld [vmem:[#allocation2 + $0x118] sm:$0xff]
        %v1856 = vld [vmem:[#allocation2 + $0x120] sm:$0xff]
        %v1857 = vld [vmem:[#allocation2 + $0x128] sm:$0xff]
        %v1858 = vld [vmem:[#allocation2 + $0x130] sm:$0xff]
        %v1859 = vld [vmem:[#allocation2 + $0x138] sm:$0xff]
        %v1860 = vpack.c.bf16 %v1853, %v1852
        %v1861 = vpack.c.bf16 %v1855, %v1854
        %v1862 = vpack.c.bf16 %v1857, %v1856
        %v1863 = vpack.c.bf16 %v1859, %v1858
        %v1864 = vpack.c.bf16 %v1793, %v1790
        %v1865 = vpack.c.bf16 %v1801, %v1798
        %v1866 = vpack.c.bf16 %v1809, %v1806
        %v1867 = vpack.c.bf16 %v1817, %v1814
        %v1868 = vpack.c.bf16 %v1825, %v1822
        %v1869 = vpack.c.bf16 %v1833, %v1830
        %v1870 = vpack.c.bf16 %v1841, %v1838
        %v1871 = vpack.c.bf16 %v1849, %v1846
        %1873 = vset.pattern.permute.xlu0 72
        %1874 = vperm.xlu0 %1873, %v224
        %v1875 = vpop.permute.xlu0 %1874
        %1878 = vset.pattern.permute.xlu0 72
        %1879 = vperm.xlu0 %1878, %v225
        %v1880 = vpop.permute.xlu0 %1879
        %1883 = vset.pattern.permute.xlu0 72
        %1884 = vperm.xlu0 %1883, %v226
        %v1885 = vpop.permute.xlu0 %1884
        %1888 = vset.pattern.permute.xlu0 72
        %1889 = vperm.xlu0 %1888, %v227
        %v1890 = vpop.permute.xlu0 %1889
        %1893 = vset.pattern.permute.xlu0 72
        %1894 = vperm.xlu0 %1893, %v228
        %v1895 = vpop.permute.xlu0 %1894
        %1898 = vset.pattern.permute.xlu0 72
        %1899 = vperm.xlu0 %1898, %v229
        %v1900 = vpop.permute.xlu0 %1899
        %1903 = vset.pattern.permute.xlu0 72
        %1904 = vperm.xlu0 %1903, %v230
        %v1905 = vpop.permute.xlu0 %1904
        %1908 = vset.pattern.permute.xlu0 72
        %1909 = vperm.xlu0 %1908, %v231
        %v1910 = vpop.permute.xlu0 %1909
        %1912 = vmatprep.subr.bf16.mxu0 0
        %1913 = vmatpush1.bf16.msra.mxu0 %v1864
        %1914 = vmatprep.subr.bf16.mxu0 0
        %1915 = vmatpush1.bf16.msra.mxu0 %v1865
        %1916 = vmatprep.subr.bf16.mxu0 0
        %1917 = vmatpush1.bf16.msra.mxu0 %v1866
        %1918 = vmatprep.subr.bf16.mxu0 0
        %1919 = vmatpush1.bf16.msra.mxu0 %v1867
        %1920 = vmatprep.subr.bf16.mxu0 0
        %1921 = vmatpush1.bf16.msra.mxu0 %v1868
        %1922 = vmatprep.subr.bf16.mxu0 0
        %1923 = vmatpush1.bf16.msra.mxu0 %v1869
        %1924 = vmatprep.subr.bf16.mxu0 0
        %1925 = vmatpush1.bf16.msra.mxu0 %v1870
        %1926 = vmatprep.subr.bf16.mxu0 0
        %1927 = vmatpush1.bf16.msra.mxu0 %v1871
        %1928 = vmatprep.subr.bf16.mxu0 0
        %1929 = vmatpush1.bf16.msra.mxu0 0
        %1930 = vmatprep.subr.bf16.mxu0 0
        %1931 = vmatpush1.bf16.msra.mxu0 0
        %1932 = vmatprep.subr.bf16.mxu0 0
        %1933 = vmatpush1.bf16.msra.mxu0 0
        %1934 = vmatprep.subr.bf16.mxu0 0
        %1935 = vmatpush1.bf16.msra.mxu0 0
        %1936 = vmatprep.subr.bf16.mxu0 0
        %1937 = vmatpush1.bf16.msra.mxu0 0
        %1938 = vmatprep.subr.bf16.mxu0 0
        %1939 = vmatpush1.bf16.msra.mxu0 0
        %1940 = vmatprep.subr.bf16.mxu0 0
        %1941 = vmatpush1.bf16.msra.mxu0 0
        %1942 = vmatprep.subr.bf16.mxu0 0
        %1943 = vmatpush1.bf16.msra.mxu0 0
        %1944 = vmatprep.mubr.bf16.mxu0 0
        %1945 = vmatmul.mubr.bf16.gmra.mrb[0].mxu0 %v1860
        %v1946 = vpop.f32.mrb[0].mxu0
        %v1947 = vadd.f32 %v1875, %v1946
        %v1948 = vpop.f32.mrb[0].mxu0
        %v1949 = vpop.f32.mrb[0].mxu0
        %v1950 = vadd.f32 %v1880, %v1949
        %v1951 = vpop.f32.mrb[0].mxu0
        %1952 = vmatprep.mubr.bf16.mxu0 0
        %1953 = vmatmul.mubr.bf16.gmra.mrb[0].mxu0 %v1861
        %v1954 = vpop.f32.mrb[0].mxu0
        %v1955 = vadd.f32 %v1885, %v1954
        %v1956 = vpop.f32.mrb[0].mxu0
        %v1957 = vpop.f32.mrb[0].mxu0
        %v1958 = vadd.f32 %v1890, %v1957
        %v1959 = vpop.f32.mrb[0].mxu0
        %1960 = vmatprep.mubr.bf16.mxu0 0
        %1961 = vmatmul.mubr.bf16.gmra.mrb[0].mxu0 %v1862
        %v1962 = vpop.f32.mrb[0].mxu0
        %v1963 = vadd.f32 %v1895, %v1962
        %v1964 = vpop.f32.mrb[0].mxu0
        %v1965 = vpop.f32.mrb[0].mxu0
        %v1966 = vadd.f32 %v1900, %v1965
        %v1967 = vpop.f32.mrb[0].mxu0
        %1968 = vmatprep.mubr.bf16.mxu0 0
        %1969 = vmatmul.mubr.bf16.gmra.mrb[0].mxu0 %v1863
        %v1970 = vpop.f32.mrb[0].mxu0
        %v1971 = vadd.f32 %v1905, %v1970
        %v1972 = vpop.f32.mrb[0].mxu0
        %v1973 = vpop.f32.mrb[0].mxu0
        %v1974 = vadd.f32 %v1910, %v1973
        %v1975 = vpop.f32.mrb[0].mxu0
        %1976 = vdwg.mxu0
        %v1977 = vpack.c.bf16 %v225, %v224
        %v1978 = vpack.c.bf16 %v227, %v226
        %v1979 = vpack.c.bf16 %v229, %v228
        %v1980 = vpack.c.bf16 %v231, %v230
        %v1981 = vpack.c.bf16 %v223, %v223
        %1986 = vrot.lane.b32.xlu0 %v1977, 64
        %v1987 = vpop.permute.xlu0 %1986
        %1988 = vrot.lane.b32.xlu0 %v1978, 64
        %v1989 = vpop.permute.xlu0 %1988
        %1990 = vrot.lane.b32.xlu0 %v1979, 64
        %v1991 = vpop.permute.xlu0 %1990
        %1992 = vrot.lane.b32.xlu0 %v1980, 64
        %v1993 = vpop.permute.xlu0 %1992
        %vm1994 = vcmask 64512
        %v1996 = vsel %vm1994, %v1987, 0
        %v1999 = vsel %vm1994, %v1989, 0
        %v2002 = vsel %vm1994, %v1991, 0
        %v2005 = vsel %vm1994, %v1993, 0
        %vm2007 = vcmask 1043456
        %v2009 = vsel %vm2007, %v1981, 0
        %2011 = vmatprep.subr.bf16.mxu0 0
        %2012 = vmatpush1.bf16.msra.mxu0 %v2009
        %2013 = vmatprep.subr.bf16.mxu0 0
        %2014 = vmatpush1.bf16.msra.mxu0 0
        %2015 = vmatprep.subr.bf16.mxu0 0
        %2016 = vmatpush1.bf16.msra.mxu0 0
        %2017 = vmatprep.subr.bf16.mxu0 0
        %2018 = vmatpush1.bf16.msra.mxu0 0
        %2019 = vmatprep.subr.bf16.mxu0 0
        %2020 = vmatpush1.bf16.msra.mxu0 0
        %2021 = vmatprep.subr.bf16.mxu0 0
        %2022 = vmatpush1.bf16.msra.mxu0 0
        %2023 = vmatprep.subr.bf16.mxu0 0
        %2024 = vmatpush1.bf16.msra.mxu0 0
        %2025 = vmatprep.subr.bf16.mxu0 0
        %2026 = vmatpush1.bf16.msra.mxu0 0
        %2027 = vmatprep.subr.bf16.mxu0 0
        %2028 = vmatpush1.bf16.msra.mxu0 0
        %2029 = vmatprep.subr.bf16.mxu0 0
        %2030 = vmatpush1.bf16.msra.mxu0 0
        %2031 = vmatprep.subr.bf16.mxu0 0
        %2032 = vmatpush1.bf16.msra.mxu0 0
        %2033 = vmatprep.subr.bf16.mxu0 0
        %2034 = vmatpush1.bf16.msra.mxu0 0
        %2035 = vmatprep.subr.bf16.mxu0 0
        %2036 = vmatpush1.bf16.msra.mxu0 0
        %2037 = vmatprep.subr.bf16.mxu0 0
        %2038 = vmatpush1.bf16.msra.mxu0 0
        %2039 = vmatprep.subr.bf16.mxu0 0
        %2040 = vmatpush1.bf16.msra.mxu0 0
        %2041 = vmatprep.subr.bf16.mxu0 0
        %2042 = vmatpush1.bf16.msra.mxu0 0
        %2043 = vmatprep.mubr.bf16.mxu0 0
        %2044 = vmatmul.mubr.bf16.gmra.mrb[0].mxu0 %v1996
        %v2045 = vpop.f32.mrb[0].mxu0
        %v2046 = vadd.f32 0.0, %v2045
        %v2047 = vpop.f32.mrb[0].mxu0
        %v2048 = vpop.f32.mrb[0].mxu0
        %v2049 = vadd.f32 0.0, %v2048
        %v2050 = vpop.f32.mrb[0].mxu0
        %2051 = vmatprep.mubr.bf16.mxu0 0
        %2052 = vmatmul.mubr.bf16.gmra.mrb[0].mxu0 %v1999
        %v2053 = vpop.f32.mrb[0].mxu0
        %v2054 = vadd.f32 0.0, %v2053
        %v2055 = vpop.f32.mrb[0].mxu0
        %v2056 = vpop.f32.mrb[0].mxu0
        %v2057 = vadd.f32 0.0, %v2056
        %v2058 = vpop.f32.mrb[0].mxu0
        %2059 = vmatprep.mubr.bf16.mxu0 0
        %2060 = vmatmul.mubr.bf16.gmra.mrb[0].mxu0 %v2002
        %v2061 = vpop.f32.mrb[0].mxu0
        %v2062 = vadd.f32 0.0, %v2061
        %v2063 = vpop.f32.mrb[0].mxu0
        %v2064 = vpop.f32.mrb[0].mxu0
        %v2065 = vadd.f32 0.0, %v2064
        %v2066 = vpop.f32.mrb[0].mxu0
        %2067 = vmatprep.mubr.bf16.mxu0 0
        %2068 = vmatmul.mubr.bf16.gmra.mrb[0].mxu0 %v2005
        %v2069 = vpop.f32.mrb[0].mxu0
        %v2070 = vadd.f32 0.0, %v2069
        %v2071 = vpop.f32.mrb[0].mxu0
        %v2072 = vpop.f32.mrb[0].mxu0
        %v2073 = vadd.f32 0.0, %v2072
        %v2074 = vpop.f32.mrb[0].mxu0
        %2075 = vdwg.mxu0
        %v2076 = vld [vmem:[#allocation2 + $0x180] sm:$0xff]
        %v2077 = vpack.c.bf16 %v2049, %v2046
        %v2078 = vpack.c.bf16 %v2057, %v2054
        %v2079 = vpack.c.bf16 %v2065, %v2062
        %v2080 = vpack.c.bf16 %v2073, %v2070
        %v2081 = vpack.c.bf16 %v2076, %v2076
        %2083 = vrot.lane.b32.xlu0 %v2081, 52
        %v2084 = vpop.permute.xlu0 %2083
        %2085 = vrot.lane.b32.xlu0 %v1431, 36
        %v2086 = vpop.permute.xlu0 %2085
        %v2089 = vsel %vm1994, %v2077, 0
        %v2092 = vsel %vm1994, %v2078, 0
        %v2095 = vsel %vm1994, %v2079, 0
        %v2098 = vsel %vm1994, %v2080, 0
        %v2101 = vsel %vm2007, %v2084, 0
        %2103 = vmatprep.subr.bf16.mxu0 0
        %2104 = vmatpush1.bf16.msra.mxu0 %v2101
        %2105 = vmatprep.subr.bf16.mxu0 0
        %2106 = vmatpush1.bf16.msra.mxu0 0
        %2107 = vmatprep.subr.bf16.mxu0 0
        %2108 = vmatpush1.bf16.msra.mxu0 0
        %2109 = vmatprep.subr.bf16.mxu0 0
        %2110 = vmatpush1.bf16.msra.mxu0 0
        %2111 = vmatprep.subr.bf16.mxu0 0
        %2112 = vmatpush1.bf16.msra.mxu0 0
        %2113 = vmatprep.subr.bf16.mxu0 0
        %2114 = vmatpush1.bf16.msra.mxu0 0
        %2115 = vmatprep.subr.bf16.mxu0 0
        %2116 = vmatpush1.bf16.msra.mxu0 0
        %2117 = vmatprep.subr.bf16.mxu0 0
        %2118 = vmatpush1.bf16.msra.mxu0 0
        %2119 = vmatprep.subr.bf16.mxu0 0
        %2120 = vmatpush1.bf16.msra.mxu0 0
        %2121 = vmatprep.subr.bf16.mxu0 0
        %2122 = vmatpush1.bf16.msra.mxu0 0
        %2123 = vmatprep.subr.bf16.mxu0 0
        %2124 = vmatpush1.bf16.msra.mxu0 0
        %2125 = vmatprep.subr.bf16.mxu0 0
        %2126 = vmatpush1.bf16.msra.mxu0 0
        %2127 = vmatprep.subr.bf16.mxu0 0
        %2128 = vmatpush1.bf16.msra.mxu0 0
        %2129 = vmatprep.subr.bf16.mxu0 0
        %2130 = vmatpush1.bf16.msra.mxu0 0
        %2131 = vmatprep.subr.bf16.mxu0 0
        %2132 = vmatpush1.bf16.msra.mxu0 0
        %2133 = vmatprep.subr.bf16.mxu0 0
        %2134 = vmatpush1.bf16.msra.mxu0 0
        %2135 = vmatprep.mubr.bf16.mxu0 0
        %2136 = vmatmul.mubr.bf16.gmra.mrb[0].mxu0 %v2089
        %v2137 = vpop.f32.mrb[0].mxu0
        %v2138 = vadd.f32 %v2086, %v2137
        %v2139 = vpop.f32.mrb[0].mxu0
        %v2140 = vpop.f32.mrb[0].mxu0
        %v2141 = vadd.f32 %v2086, %v2140
        %v2142 = vpop.f32.mrb[0].mxu0
        %2143 = vmatprep.mubr.bf16.mxu0 0
        %2144 = vmatmul.mubr.bf16.gmra.mrb[0].mxu0 %v2092
        %v2145 = vpop.f32.mrb[0].mxu0
        %v2146 = vadd.f32 %v2086, %v2145
        %v2147 = vpop.f32.mrb[0].mxu0
        %v2148 = vpop.f32.mrb[0].mxu0
        %v2149 = vadd.f32 %v2086, %v2148
        %v2150 = vpop.f32.mrb[0].mxu0
        %2151 = vmatprep.mubr.bf16.mxu0 0
        %2152 = vmatmul.mubr.bf16.gmra.mrb[0].mxu0 %v2095
        %v2153 = vpop.f32.mrb[0].mxu0
        %v2154 = vadd.f32 %v2086, %v2153
        %v2155 = vpop.f32.mrb[0].mxu0
        %v2156 = vpop.f32.mrb[0].mxu0
        %v2157 = vadd.f32 %v2086, %v2156
        %v2158 = vpop.f32.mrb[0].mxu0
        %2159 = vmatprep.mubr.bf16.mxu0 0
        %2160 = vmatmul.mubr.bf16.gmra.mrb[0].mxu0 %v2098
        %v2161 = vpop.f32.mrb[0].mxu0
        %v2162 = vadd.f32 %v2086, %v2161
        %v2163 = vpop.f32.mrb[0].mxu0
        %v2164 = vpop.f32.mrb[0].mxu0
        %v2165 = vadd.f32 %v2086, %v2164
        %v2166 = vpop.f32.mrb[0].mxu0
        %2167 = vdwg.mxu0
        %2176 = vrot.lane.b32.xlu0 %v2138, 4
        %v2177 = vpop.permute.xlu0 %2176
        %2178 = vrot.lane.b32.xlu0 %v2141, 4
        %v2179 = vpop.permute.xlu0 %2178
        %2180 = vrot.lane.b32.xlu0 %v2146, 4
        %v2181 = vpop.permute.xlu0 %2180
        %2182 = vrot.lane.b32.xlu0 %v2149, 4
        %v2183 = vpop.permute.xlu0 %2182
        %2184 = vrot.lane.b32.xlu0 %v2154, 4
        %v2185 = vpop.permute.xlu0 %2184
        %2186 = vrot.lane.b32.xlu0 %v2157, 4
        %v2187 = vpop.permute.xlu0 %2186
        %2188 = vrot.lane.b32.xlu0 %v2162, 4
        %v2189 = vpop.permute.xlu0 %2188
        %2190 = vrot.lane.b32.xlu0 %v2165, 4
        %v2191 = vpop.permute.xlu0 %2190
        %v2200 = vsel %vm383, %v1947, %v2177
        %v2201 = vsel %vm383, %v1950, %v2179
        %v2202 = vsel %vm383, %v1955, %v2181
        %v2203 = vsel %vm383, %v1958, %v2183
        %v2204 = vsel %vm383, %v1963, %v2185
        %v2205 = vsel %vm383, %v1966, %v2187
        %v2206 = vsel %vm383, %v1971, %v2189
        %v2207 = vsel %vm383, %v1974, %v2191
        %v2208 = vld [vmem:[#allocation2 + $0x1c0] sm:$0xff]
        %v2209 = vld [vmem:[#allocation2 + $0x1c8] sm:$0xf]
        %v2210 = vpack.c.bf16 %v2201, %v2200
        %v2211 = vpack.c.bf16 %v2203, %v2202
        %v2212 = vpack.c.bf16 %v2205, %v2204
        %v2213 = vpack.c.bf16 %v2207, %v2206
        %v2214 = vpack.c.bf16 %v2209, %v2208
        %v2215 = vld [vmem:[#allocation2 + $0x1c0] sm:$0x1]
        %v2216 = vlaneseq
        %v2217 = vshrl.u32 %v2216, 7
        %v2218 = vsub.s32 0, %v2217
        %v2219 = vrot.slane %v2215, %v2218
        %2221 = vrot.lane.b32.xlu0 %v2219, 88
        %v2222 = vpop.permute.xlu0 %2221
        %vm2224 = vcmask 97280
        %v2226 = vsel %vm2224, %v2210, 0
        %v2229 = vsel %vm2224, %v2211, 0
        %v2232 = vsel %vm2224, %v2212, 0
        %v2235 = vsel %vm2224, %v2213, 0
        %vm2237 = vcmask 1045504
        %v2239 = vsel %vm2237, %v2214, 0
        %2241 = vmatprep.subr.bf16.mxu0 0
        %2242 = vmatpush1.bf16.msra.mxu0 %v2239
        %2243 = vmatprep.subr.bf16.mxu0 0
        %2244 = vmatpush1.bf16.msra.mxu0 0
        %2245 = vmatprep.subr.bf16.mxu0 0
        %2246 = vmatpush1.bf16.msra.mxu0 0
        %2247 = vmatprep.subr.bf16.mxu0 0
        %2248 = vmatpush1.bf16.msra.mxu0 0
        %2249 = vmatprep.subr.bf16.mxu0 0
        %2250 = vmatpush1.bf16.msra.mxu0 0
        %2251 = vmatprep.subr.bf16.mxu0 0
        %2252 = vmatpush1.bf16.msra.mxu0 0
        %2253 = vmatprep.subr.bf16.mxu0 0
        %2254 = vmatpush1.bf16.msra.mxu0 0
        %2255 = vmatprep.subr.bf16.mxu0 0
        %2256 = vmatpush1.bf16.msra.mxu0 0
        %2257 = vmatprep.subr.bf16.mxu0 0
        %2258 = vmatpush1.bf16.msra.mxu0 0
        %2259 = vmatprep.subr.bf16.mxu0 0
        %2260 = vmatpush1.bf16.msra.mxu0 0
        %2261 = vmatprep.subr.bf16.mxu0 0
        %2262 = vmatpush1.bf16.msra.mxu0 0
        %2263 = vmatprep.subr.bf16.mxu0 0
        %2264 = vmatpush1.bf16.msra.mxu0 0
        %2265 = vmatprep.subr.bf16.mxu0 0
        %2266 = vmatpush1.bf16.msra.mxu0 0
        %2267 = vmatprep.subr.bf16.mxu0 0
        %2268 = vmatpush1.bf16.msra.mxu0 0
        %2269 = vmatprep.subr.bf16.mxu0 0
        %2270 = vmatpush1.bf16.msra.mxu0 0
        %2271 = vmatprep.subr.bf16.mxu0 0
        %2272 = vmatpush1.bf16.msra.mxu0 0
        %2273 = vmatprep.mubr.bf16.mxu0 0
        %2274 = vmatmul.mubr.bf16.gmra.mrb[0].mxu0 %v2226
        %v2275 = vpop.f32.mrb[0].mxu0
        %v2276 = vadd.f32 %v2222, %v2275
        %v2277 = vpop.f32.mrb[0].mxu0
        %v2278 = vpop.f32.mrb[0].mxu0
        %v2279 = vadd.f32 %v2222, %v2278
        %v2280 = vpop.f32.mrb[0].mxu0
        %2281 = vmatprep.mubr.bf16.mxu0 0
        %2282 = vmatmul.mubr.bf16.gmra.mrb[0].mxu0 %v2229
        %v2283 = vpop.f32.mrb[0].mxu0
        %v2284 = vadd.f32 %v2222, %v2283
        %v2285 = vpop.f32.mrb[0].mxu0
        %v2286 = vpop.f32.mrb[0].mxu0
        %v2287 = vadd.f32 %v2222, %v2286
        %v2288 = vpop.f32.mrb[0].mxu0
        %2289 = vmatprep.mubr.bf16.mxu0 0
        %2290 = vmatmul.mubr.bf16.gmra.mrb[0].mxu0 %v2232
        %v2291 = vpop.f32.mrb[0].mxu0
        %v2292 = vadd.f32 %v2222, %v2291
        %v2293 = vpop.f32.mrb[0].mxu0
        %v2294 = vpop.f32.mrb[0].mxu0
        %v2295 = vadd.f32 %v2222, %v2294
        %v2296 = vpop.f32.mrb[0].mxu0
        %2297 = vmatprep.mubr.bf16.mxu0 0
        %2298 = vmatmul.mubr.bf16.gmra.mrb[0].mxu0 %v2235
        %v2299 = vpop.f32.mrb[0].mxu0
        %v2300 = vadd.f32 %v2222, %v2299
        %v2301 = vpop.f32.mrb[0].mxu0
        %v2302 = vpop.f32.mrb[0].mxu0
        %v2303 = vadd.f32 %v2222, %v2302
        %v2304 = vpop.f32.mrb[0].mxu0
        %2305 = vdwg.mxu0
        %v2306 = vmax.f32 %v2276, 0.0
        %v2307 = vmax.f32 %v2279, 0.0
        %v2308 = vmax.f32 %v2284, 0.0
        %v2309 = vmax.f32 %v2287, 0.0
        %v2310 = vmax.f32 %v2292, 0.0
        %v2311 = vmax.f32 %v2295, 0.0
        %v2312 = vmax.f32 %v2300, 0.0
        %v2313 = vmax.f32 %v2303, 0.0
        %v2314 = vld [vmem:[#allocation2 + $0x1d0] sm:$0xff]
        %v2315 = vld [vmem:[#allocation2 + $0x1d8] sm:$0xff]
        %v2316 = vld [vmem:[#allocation2 + $0x1e0] sm:$0xff]
        %v2317 = vld [vmem:[#allocation2 + $0x1e8] sm:$0xff]
        %v2318 = vpack.c.bf16 %v2307, %v2306
        %v2319 = vpack.c.bf16 %v2309, %v2308
        %v2320 = vpack.c.bf16 %v2311, %v2310
        %v2321 = vpack.c.bf16 %v2313, %v2312
        %v2322 = vpack.c.bf16 %v2315, %v2314
        %v2323 = vpack.c.bf16 %v2317, %v2316
        %2328 = vrot.lane.b32.xlu0 %v2318, 120
        %v2329 = vpop.permute.xlu0 %2328
        %2330 = vrot.lane.b32.xlu0 %v2319, 120
        %v2331 = vpop.permute.xlu0 %2330
        %2332 = vrot.lane.b32.xlu0 %v2320, 120
        %v2333 = vpop.permute.xlu0 %2332
        %2334 = vrot.lane.b32.xlu0 %v2321, 120
        %v2335 = vpop.permute.xlu0 %2334
        %2336 = vrot.lane.b32.xlu0 %v2219, 48
        %v2337 = vpop.permute.xlu0 %2336
        %vm2339 = vcmask 261120
        %v2341 = vsel %vm2339, %v2329, 0
        %v2344 = vsel %vm2339, %v2331, 0
        %v2347 = vsel %vm2339, %v2333, 0
        %v2350 = vsel %vm2339, %v2335, 0
        %2352 = vmatprep.subr.bf16.mxu0 0
        %2353 = vmatpush1.bf16.msra.mxu0 %v2322
        %2354 = vmatprep.subr.bf16.mxu0 0
        %2355 = vmatpush1.bf16.msra.mxu0 %v2323
        %2356 = vmatprep.subr.bf16.mxu0 0
        %2357 = vmatpush1.bf16.msra.mxu0 0
        %2358 = vmatprep.subr.bf16.mxu0 0
        %2359 = vmatpush1.bf16.msra.mxu0 0
        %2360 = vmatprep.subr.bf16.mxu0 0
        %2361 = vmatpush1.bf16.msra.mxu0 0
        %2362 = vmatprep.subr.bf16.mxu0 0
        %2363 = vmatpush1.bf16.msra.mxu0 0
        %2364 = vmatprep.subr.bf16.mxu0 0
        %2365 = vmatpush1.bf16.msra.mxu0 0
        %2366 = vmatprep.subr.bf16.mxu0 0
        %2367 = vmatpush1.bf16.msra.mxu0 0
        %2368 = vmatprep.subr.bf16.mxu0 0
        %2369 = vmatpush1.bf16.msra.mxu0 0
        %2370 = vmatprep.subr.bf16.mxu0 0
        %2371 = vmatpush1.bf16.msra.mxu0 0
        %2372 = vmatprep.subr.bf16.mxu0 0
        %2373 = vmatpush1.bf16.msra.mxu0 0
        %2374 = vmatprep.subr.bf16.mxu0 0
        %2375 = vmatpush1.bf16.msra.mxu0 0
        %2376 = vmatprep.subr.bf16.mxu0 0
        %2377 = vmatpush1.bf16.msra.mxu0 0
        %2378 = vmatprep.subr.bf16.mxu0 0
        %2379 = vmatpush1.bf16.msra.mxu0 0
        %2380 = vmatprep.subr.bf16.mxu0 0
        %2381 = vmatpush1.bf16.msra.mxu0 0
        %2382 = vmatprep.subr.bf16.mxu0 0
        %2383 = vmatpush1.bf16.msra.mxu0 0
        %2384 = vmatprep.mubr.bf16.mxu0 0
        %2385 = vmatmul.mubr.bf16.gmra.mrb[0].mxu0 %v2341
        %v2386 = vpop.f32.mrb[0].mxu0
        %v2387 = vadd.f32 %v2337, %v2386
        %v2388 = vpop.f32.mrb[0].mxu0
        %v2389 = vpop.f32.mrb[0].mxu0
        %v2390 = vadd.f32 %v2337, %v2389
        %v2391 = vpop.f32.mrb[0].mxu0
        %2392 = vmatprep.mubr.bf16.mxu0 0
        %2393 = vmatmul.mubr.bf16.gmra.mrb[0].mxu0 %v2344
        %v2394 = vpop.f32.mrb[0].mxu0
        %v2395 = vadd.f32 %v2337, %v2394
        %v2396 = vpop.f32.mrb[0].mxu0
        %v2397 = vpop.f32.mrb[0].mxu0
        %v2398 = vadd.f32 %v2337, %v2397
        %v2399 = vpop.f32.mrb[0].mxu0
        %2400 = vmatprep.mubr.bf16.mxu0 0
        %2401 = vmatmul.mubr.bf16.gmra.mrb[0].mxu0 %v2347
        %v2402 = vpop.f32.mrb[0].mxu0
        %v2403 = vadd.f32 %v2337, %v2402
        %v2404 = vpop.f32.mrb[0].mxu0
        %v2405 = vpop.f32.mrb[0].mxu0
        %v2406 = vadd.f32 %v2337, %v2405
        %v2407 = vpop.f32.mrb[0].mxu0
        %2408 = vmatprep.mubr.bf16.mxu0 0
        %2409 = vmatmul.mubr.bf16.gmra.mrb[0].mxu0 %v2350
        %v2410 = vpop.f32.mrb[0].mxu0
        %v2411 = vadd.f32 %v2337, %v2410
        %v2412 = vpop.f32.mrb[0].mxu0
        %v2413 = vpop.f32.mrb[0].mxu0
        %v2414 = vadd.f32 %v2337, %v2413
        %v2415 = vpop.f32.mrb[0].mxu0
        %2416 = vdwg.mxu0
        %v2417 = vadd.f32 %v2276, %v2387
        %v2418 = vadd.f32 %v2279, %v2390
        %v2419 = vadd.f32 %v2284, %v2395
        %v2420 = vadd.f32 %v2287, %v2398
        %v2421 = vadd.f32 %v2292, %v2403
        %v2422 = vadd.f32 %v2295, %v2406
        %v2423 = vadd.f32 %v2300, %v2411
        %v2424 = vadd.f32 %v2303, %v2414
        %v2425 = vsel %vm1994, %v2417, 0.0
        %2426 = vadd.xlane.f32.xlu0 %v2425
        %v2427 = vpop.xlane.xlu0 %2426
        %v2428 = vsel %vm1994, %v2418, 0.0
        %2429 = vadd.xlane.f32.xlu0 %v2428
        %v2430 = vpop.xlane.xlu0 %2429
        %v2431 = vsel %vm1994, %v2419, 0.0
        %2432 = vadd.xlane.f32.xlu0 %v2431
        %v2433 = vpop.xlane.xlu0 %2432
        %v2434 = vsel %vm1994, %v2420, 0.0
        %2435 = vadd.xlane.f32.xlu0 %v2434
        %v2436 = vpop.xlane.xlu0 %2435
        %v2437 = vsel %vm1994, %v2421, 0.0
        %2438 = vadd.xlane.f32.xlu0 %v2437
        %v2439 = vpop.xlane.xlu0 %2438
        %v2440 = vsel %vm1994, %v2422, 0.0
        %2441 = vadd.xlane.f32.xlu0 %v2440
        %v2442 = vpop.xlane.xlu0 %2441
        %v2443 = vsel %vm1994, %v2423, 0.0
        %2444 = vadd.xlane.f32.xlu0 %v2443
        %v2445 = vpop.xlane.xlu0 %2444
        %v2446 = vsel %vm1994, %v2424, 0.0
        %2447 = vadd.xlane.f32.xlu0 %v2446
        %v2448 = vpop.xlane.xlu0 %2447
        %v2449 = vmul.f32 %v2417, %v2417
        %v2450 = vmul.f32 %v2418, %v2418
        %v2451 = vmul.f32 %v2419, %v2419
        %v2452 = vmul.f32 %v2420, %v2420
        %v2453 = vmul.f32 %v2421, %v2421
        %v2454 = vmul.f32 %v2422, %v2422
        %v2455 = vmul.f32 %v2423, %v2423
        %v2456 = vmul.f32 %v2424, %v2424
        %v2457 = vsel %vm1994, %v2449, 0.0
        %2458 = vadd.xlane.f32.xlu0 %v2457
        %v2459 = vpop.xlane.xlu0 %2458
        %v2460 = vsel %vm1994, %v2450, 0.0
        %2461 = vadd.xlane.f32.xlu0 %v2460
        %v2462 = vpop.xlane.xlu0 %2461
        %v2463 = vsel %vm1994, %v2451, 0.0
        %2464 = vadd.xlane.f32.xlu0 %v2463
        %v2465 = vpop.xlane.xlu0 %2464
        %v2466 = vsel %vm1994, %v2452, 0.0
        %2467 = vadd.xlane.f32.xlu0 %v2466
        %v2468 = vpop.xlane.xlu0 %2467
        %v2469 = vsel %vm1994, %v2453, 0.0
        %2470 = vadd.xlane.f32.xlu0 %v2469
        %v2471 = vpop.xlane.xlu0 %2470
        %v2472 = vsel %vm1994, %v2454, 0.0
        %2473 = vadd.xlane.f32.xlu0 %v2472
        %v2474 = vpop.xlane.xlu0 %2473
        %v2475 = vsel %vm1994, %v2455, 0.0
        %2476 = vadd.xlane.f32.xlu0 %v2475
        %v2477 = vpop.xlane.xlu0 %2476
        %v2478 = vsel %vm1994, %v2456, 0.0
        %2479 = vadd.xlane.f32.xlu0 %v2478
        %v2480 = vpop.xlane.xlu0 %2479
        %vm2481 = vcmask 7168
        %v2482 = vsel %vm2481, %v2427, %v2459
        %v2483 = vsel %vm2481, %v2430, %v2462
        %v2484 = vsel %vm2481, %v2433, %v2465
        %v2485 = vsel %vm2481, %v2436, %v2468
        %v2486 = vsel %vm2481, %v2439, %v2471
        %v2487 = vsel %vm2481, %v2442, %v2474
        %v2488 = vsel %vm2481, %v2445, %v2477
        %v2489 = vsel %vm2481, %v2448, %v2480
        %vm2490 = vcmask 523264
        %v2491 = vsel %vm2490, %v224, 0
        %v2493 = vsel %vm2490, %v225, 0
        %v2495 = vsel %vm2490, %v226, 0
        %v2497 = vsel %vm2490, %v227, 0
        %v2499 = vsel %vm2490, %v228, 0
        %v2501 = vsel %vm2490, %v229, 0
        %v2503 = vsel %vm2490, %v230, 0
        %v2505 = vsel %vm2490, %v231, 0
        %2507 = vmatprep.subr.mxu0 0.0
        %2508 = vmatpush1.msra.mxu0 %v2482
        %2509 = vmatprep.subr.mxu0 0.0
        %2510 = vmatpush1.msra.mxu0 %v2483
        %2511 = vmatprep.subr.mxu0 0.0
        %2512 = vmatpush1.msra.mxu0 %v2484
        %2513 = vmatprep.subr.mxu0 0.0
        %2514 = vmatpush1.msra.mxu0 %v2485
        %2515 = vmatprep.subr.mxu0 0.0
        %2516 = vmatpush1.msra.mxu0 %v2486
        %2517 = vmatprep.subr.mxu0 0.0
        %2518 = vmatpush1.msra.mxu0 %v2487
        %2519 = vmatprep.subr.mxu0 0.0
        %2520 = vmatpush1.msra.mxu0 %v2488
        %2521 = vmatprep.subr.mxu0 0.0
        %2522 = vmatpush1.msra.mxu0 %v2489
        %2523 = vmatprep.subr.mxu0 0.0
        %2524 = vmatpush1.msra.mxu0 0.0
        %2525 = vmatprep.subr.mxu0 0.0
        %2526 = vmatpush1.msra.mxu0 0.0
        %2527 = vmatprep.subr.mxu0 0.0
        %2528 = vmatpush1.msra.mxu0 0.0
        %2529 = vmatprep.subr.mxu0 0.0
        %2530 = vmatpush1.msra.mxu0 0.0
        %2531 = vmatprep.subr.mxu0 0.0
        %2532 = vmatpush1.msra.mxu0 0.0
        %2533 = vmatprep.subr.mxu0 0.0
        %2534 = vmatpush1.msra.mxu0 0.0
        %2535 = vmatprep.subr.mxu0 0.0
        %2536 = vmatpush1.msra.mxu0 0.0
        %2537 = vmatprep.subr.mxu0 0.0
        %2538 = vmatpush1.msra.mxu0 0.0
        %2539 = vmatprep.subr.mxu0 0.0
        %2540 = vmatpush1.msra.mxu0 0.0
        %2541 = vmatprep.subr.mxu0 0.0
        %2542 = vmatpush1.msra.mxu0 0.0
        %2543 = vmatprep.subr.mxu0 0.0
        %2544 = vmatpush1.msra.mxu0 0.0
        %2545 = vmatprep.subr.mxu0 0.0
        %2546 = vmatpush1.msra.mxu0 0.0
        %2547 = vmatprep.subr.mxu0 0.0
        %2548 = vmatpush1.msra.mxu0 0.0
        %2549 = vmatprep.subr.mxu0 0.0
        %2550 = vmatpush1.msra.mxu0 0.0
        %2551 = vmatprep.subr.mxu0 0.0
        %2552 = vmatpush1.msra.mxu0 0.0
        %2553 = vmatprep.subr.mxu0 0.0
        %2554 = vmatpush1.msra.mxu0 0.0
        %2555 = vmatprep.subr.mxu0 0.0
        %2556 = vmatpush1.msra.mxu0 0.0
        %2557 = vmatprep.subr.mxu0 0.0
        %2558 = vmatpush1.msra.mxu0 0.0
        %2559 = vmatprep.subr.mxu0 0.0
        %2560 = vmatpush1.msra.mxu0 0.0
        %2561 = vmatprep.subr.mxu0 0.0
        %2562 = vmatpush1.msra.mxu0 0.0
        %2563 = vmatprep.subr.mxu0 0.0
        %2564 = vmatpush1.msra.mxu0 0.0
        %2565 = vmatprep.subr.mxu0 0.0
        %2566 = vmatpush1.msra.mxu0 0.0
        %2567 = vmatprep.subr.mxu0 0.0
        %2568 = vmatpush1.msra.mxu0 0.0
        %2569 = vmatprep.subr.mxu0 0.0
        %2570 = vmatpush1.msra.mxu0 0.0
        %2571 = vmatprep.mubr.f32.mxu0 0.0
        %2572 = vmatmul.mubr.f32.gmra.mrb[0].mxu0 %v2491
        %v2573 = vpop.f32.mrb[0].mxu0
        %v2574 = vadd.f32 0.0, %v2573
        %v2575 = vpop.f32.mrb[0].mxu0
        %2576 = vmatprep.mubr.f32.mxu0 0.0
        %2577 = vmatmul.mubr.f32.gmra.mrb[0].mxu0 %v2493
        %v2578 = vpop.f32.mrb[0].mxu0
        %v2579 = vadd.f32 0.0, %v2578
        %v2580 = vpop.f32.mrb[0].mxu0
        %2581 = vmatprep.mubr.f32.mxu0 0.0
        %2582 = vmatmul.mubr.f32.gmra.mrb[0].mxu0 %v2495
        %v2583 = vpop.f32.mrb[0].mxu0
        %v2584 = vadd.f32 0.0, %v2583
        %v2585 = vpop.f32.mrb[0].mxu0
        %2586 = vmatprep.mubr.f32.mxu0 0.0
        %2587 = vmatmul.mubr.f32.gmra.mrb[0].mxu0 %v2497
        %v2588 = vpop.f32.mrb[0].mxu0
        %v2589 = vadd.f32 0.0, %v2588
        %v2590 = vpop.f32.mrb[0].mxu0
        %2591 = vmatprep.mubr.f32.mxu0 0.0
        %2592 = vmatmul.mubr.f32.gmra.mrb[0].mxu0 %v2499
        %v2593 = vpop.f32.mrb[0].mxu0
        %v2594 = vadd.f32 0.0, %v2593
        %v2595 = vpop.f32.mrb[0].mxu0
        %2596 = vmatprep.mubr.f32.mxu0 0.0
        %2597 = vmatmul.mubr.f32.gmra.mrb[0].mxu0 %v2501
        %v2598 = vpop.f32.mrb[0].mxu0
        %v2599 = vadd.f32 0.0, %v2598
        %v2600 = vpop.f32.mrb[0].mxu0
        %2601 = vmatprep.mubr.f32.mxu0 0.0
        %2602 = vmatmul.mubr.f32.gmra.mrb[0].mxu0 %v2503
        %v2603 = vpop.f32.mrb[0].mxu0
        %v2604 = vadd.f32 0.0, %v2603
        %v2605 = vpop.f32.mrb[0].mxu0
        %2606 = vmatprep.mubr.f32.mxu0 0.0
        %2607 = vmatmul.mubr.f32.gmra.mrb[0].mxu0 %v2505
        %v2608 = vpop.f32.mrb[0].mxu0
        %v2609 = vadd.f32 0.0, %v2608
        %v2610 = vpop.f32.mrb[0].mxu0
        %2611 = vdwg.mxu0
        %v2612 = vmul.f32 %v2574, %v2574
        %v2613 = vmul.f32 %v2579, %v2579
        %v2614 = vmul.f32 %v2584, %v2584
        %v2615 = vmul.f32 %v2589, %v2589
        %v2616 = vmul.f32 %v2594, %v2594
        %v2617 = vmul.f32 %v2599, %v2599
        %v2618 = vmul.f32 %v2604, %v2604
        %v2619 = vmul.f32 %v2609, %v2609
        %2628 = vrot.lane.b32.xlu0 %v2612, 1
        %v2629 = vpop.permute.xlu0 %2628
        %2630 = vrot.lane.b32.xlu0 %v2613, 1
        %v2631 = vpop.permute.xlu0 %2630
        %2632 = vrot.lane.b32.xlu0 %v2614, 1
        %v2633 = vpop.permute.xlu0 %2632
        %2634 = vrot.lane.b32.xlu0 %v2615, 1
        %v2635 = vpop.permute.xlu0 %2634
        %2636 = vrot.lane.b32.xlu0 %v2616, 1
        %v2637 = vpop.permute.xlu0 %2636
        %2638 = vrot.lane.b32.xlu0 %v2617, 1
        %v2639 = vpop.permute.xlu0 %2638
        %2640 = vrot.lane.b32.xlu0 %v2618, 1
        %v2641 = vpop.permute.xlu0 %2640
        %2642 = vrot.lane.b32.xlu0 %v2619, 1
        %v2643 = vpop.permute.xlu0 %2642
        %v2652 = vsub.f32 %v2574, %v2629
        %v2653 = vsub.f32 %v2579, %v2631
        %v2654 = vsub.f32 %v2584, %v2633
        %v2655 = vsub.f32 %v2589, %v2635
        %v2656 = vsub.f32 %v2594, %v2637
        %v2657 = vsub.f32 %v2599, %v2639
        %v2658 = vsub.f32 %v2604, %v2641
        %v2659 = vsub.f32 %v2609, %v2643
        %2661 = vset.pattern.permute.xlu0 0
        %2662 = vperm.xlu0 %2661, %v2574
        %v2663 = vpop.permute.xlu0 %2662
        %2666 = vset.pattern.permute.xlu0 0
        %2667 = vperm.xlu0 %2666, %v2579
        %v2668 = vpop.permute.xlu0 %2667
        %2671 = vset.pattern.permute.xlu0 0
        %2672 = vperm.xlu0 %2671, %v2584
        %v2673 = vpop.permute.xlu0 %2672
        %2676 = vset.pattern.permute.xlu0 0
        %2677 = vperm.xlu0 %2676, %v2589
        %v2678 = vpop.permute.xlu0 %2677
        %2681 = vset.pattern.permute.xlu0 0
        %2682 = vperm.xlu0 %2681, %v2594
        %v2683 = vpop.permute.xlu0 %2682
        %2686 = vset.pattern.permute.xlu0 0
        %2687 = vperm.xlu0 %2686, %v2599
        %v2688 = vpop.permute.xlu0 %2687
        %2691 = vset.pattern.permute.xlu0 0
        %2692 = vperm.xlu0 %2691, %v2604
        %v2693 = vpop.permute.xlu0 %2692
        %2696 = vset.pattern.permute.xlu0 0
        %2697 = vperm.xlu0 %2696, %v2609
        %v2698 = vpop.permute.xlu0 %2697
        %v2700 = vsub.f32 %v2417, %v2663
        %v2701 = vsub.f32 %v2418, %v2668
        %v2702 = vsub.f32 %v2419, %v2673
        %v2703 = vsub.f32 %v2420, %v2678
        %v2704 = vsub.f32 %v2421, %v2683
        %v2705 = vsub.f32 %v2422, %v2688
        %v2706 = vsub.f32 %v2423, %v2693
        %v2707 = vsub.f32 %v2424, %v2698
        %v2708 = vadd.f32 %v2652, 1e-05
        %v2709 = vadd.f32 %v2653, 1e-05
        %v2710 = vadd.f32 %v2654, 1e-05
        %v2711 = vadd.f32 %v2655, 1e-05
        %v2712 = vadd.f32 %v2656, 1e-05
        %v2713 = vadd.f32 %v2657, 1e-05
        %v2714 = vadd.f32 %v2658, 1e-05
        %v2715 = vadd.f32 %v2659, 1e-05
        %v2716 = vrsqrt.pop %v2708
        %v2717 = vrsqrt.pop %v2709
        %v2718 = vrsqrt.pop %v2710
        %v2719 = vrsqrt.pop %v2711
        %v2720 = vrsqrt.pop %v2712
        %v2721 = vrsqrt.pop %v2713
        %v2722 = vrsqrt.pop %v2714
        %v2723 = vrsqrt.pop %v2715
        %2725 = vset.pattern.permute.xlu0 1
        %2726 = vperm.xlu0 %2725, %v2716
        %v2727 = vpop.permute.xlu0 %2726
        %2730 = vset.pattern.permute.xlu0 1
        %2731 = vperm.xlu0 %2730, %v2717
        %v2732 = vpop.permute.xlu0 %2731
        %2735 = vset.pattern.permute.xlu0 1
        %2736 = vperm.xlu0 %2735, %v2718
        %v2737 = vpop.permute.xlu0 %2736
        %2740 = vset.pattern.permute.xlu0 1
        %2741 = vperm.xlu0 %2740, %v2719
        %v2742 = vpop.permute.xlu0 %2741
        %2745 = vset.pattern.permute.xlu0 1
        %2746 = vperm.xlu0 %2745, %v2720
        %v2747 = vpop.permute.xlu0 %2746
        %2750 = vset.pattern.permute.xlu0 1
        %2751 = vperm.xlu0 %2750, %v2721
        %v2752 = vpop.permute.xlu0 %2751
        %2755 = vset.pattern.permute.xlu0 1
        %2756 = vperm.xlu0 %2755, %v2722
        %v2757 = vpop.permute.xlu0 %2756
        %2760 = vset.pattern.permute.xlu0 1
        %2761 = vperm.xlu0 %2760, %v2723
        %v2762 = vpop.permute.xlu0 %2761
        %v2764 = vmul.f32 %v2700, %v2727
        %v2765 = vmul.f32 %v2701, %v2732
        %v2766 = vmul.f32 %v2702, %v2737
        %v2767 = vmul.f32 %v2703, %v2742
        %v2768 = vmul.f32 %v2704, %v2747
        %v2769 = vmul.f32 %v2705, %v2752
        %v2770 = vmul.f32 %v2706, %v2757
        %v2771 = vmul.f32 %v2707, %v2762
        %v2772 = vld [vmem:[#allocation2 + $0x1f0] sm:$0xff]
        %v2773 = vld [vmem:[#allocation2 + $0x1f8] sm:$0xff]
        %v2774 = vld [vmem:[#allocation2 + $0x200] sm:$0xff]
        %v2775 = vld [vmem:[#allocation2 + $0x208] sm:$0xff]
        %v2776 = vld [vmem:[#allocation2 + $0x210] sm:$0xff]
        %v2777 = vld [vmem:[#allocation2 + $0x218] sm:$0xff]
        %v2778 = vld [vmem:[#allocation2 + $0x220] sm:$0xff]
        %v2779 = vld [vmem:[#allocation2 + $0x228] sm:$0xff]
        %v2780 = vmul.f32 %v2764, %v2772
        %v2781 = vmul.f32 %v2765, %v2773
        %v2782 = vmul.f32 %v2766, %v2774
        %v2783 = vmul.f32 %v2767, %v2775
        %v2784 = vmul.f32 %v2768, %v2776
        %v2785 = vmul.f32 %v2769, %v2777
        %v2786 = vmul.f32 %v2770, %v2778
        %v2787 = vmul.f32 %v2771, %v2779
        %2796 = vrot.lane.b32.xlu0 %v2772, 120
        %v2797 = vpop.permute.xlu0 %2796
        %2798 = vrot.lane.b32.xlu0 %v2773, 120
        %v2799 = vpop.permute.xlu0 %2798
        %2800 = vrot.lane.b32.xlu0 %v2774, 120
        %v2801 = vpop.permute.xlu0 %2800
        %2802 = vrot.lane.b32.xlu0 %v2775, 120
        %v2803 = vpop.permute.xlu0 %2802
        %2804 = vrot.lane.b32.xlu0 %v2776, 120
        %v2805 = vpop.permute.xlu0 %2804
        %2806 = vrot.lane.b32.xlu0 %v2777, 120
        %v2807 = vpop.permute.xlu0 %2806
        %2808 = vrot.lane.b32.xlu0 %v2778, 120
        %v2809 = vpop.permute.xlu0 %2808
        %2810 = vrot.lane.b32.xlu0 %v2779, 120
        %v2811 = vpop.permute.xlu0 %2810
        %v2820 = vadd.f32 %v2780, %v2797
        %v2821 = vadd.f32 %v2781, %v2799
        %v2822 = vadd.f32 %v2782, %v2801
        %v2823 = vadd.f32 %v2783, %v2803
        %v2824 = vadd.f32 %v2784, %v2805
        %v2825 = vadd.f32 %v2785, %v2807
        %v2826 = vadd.f32 %v2786, %v2809
        %v2827 = vadd.f32 %v2787, %v2811
        %v2828 = vld [vmem:[#allocation2 + $0x180] sm:$0xff]
        %v2829 = vld [vmem:[#allocation2 + $0x188] sm:$0xff]
        %v2830 = vld [vmem:[#allocation2 + $0x190] sm:$0xff]
        %v2831 = vld [vmem:[#allocation2 + $0x198] sm:$0xff]
        %v2832 = vld [vmem:[#allocation2 + $0x1a0] sm:$0xff]
        %v2833 = vld [vmem:[#allocation2 + $0x1a8] sm:$0xff]
        %v2834 = vld [vmem:[#allocation2 + $0x1b0] sm:$0xff]
        %v2835 = vld [vmem:[#allocation2 + $0x1b8] sm:$0xff]
        %v2836 = vpack.c.bf16 %v2829, %v2828
        %v2837 = vpack.c.bf16 %v2831, %v2830
        %v2838 = vpack.c.bf16 %v2833, %v2832
        %v2839 = vpack.c.bf16 %v2835, %v2834
        %v2840 = vpack.c.bf16 %v2821, %v2820
        %v2841 = vpack.c.bf16 %v2823, %v2822
        %v2842 = vpack.c.bf16 %v2825, %v2824
        %v2843 = vpack.c.bf16 %v2827, %v2826
        %2844 = vset.pattern.permute.xlu0 73
        %2845 = vperm.xlu0 %2844, %v224
        %v2846 = vpop.permute.xlu0 %2845
        %2848 = vset.pattern.permute.xlu0 73
        %2849 = vperm.xlu0 %2848, %v225
        %v2850 = vpop.permute.xlu0 %2849
        %2852 = vset.pattern.permute.xlu0 73
        %2853 = vperm.xlu0 %2852, %v226
        %v2854 = vpop.permute.xlu0 %2853
        %2856 = vset.pattern.permute.xlu0 73
        %2857 = vperm.xlu0 %2856, %v227
        %v2858 = vpop.permute.xlu0 %2857
        %2860 = vset.pattern.permute.xlu0 73
        %2861 = vperm.xlu0 %2860, %v228
        %v2862 = vpop.permute.xlu0 %2861
        %2864 = vset.pattern.permute.xlu0 73
        %2865 = vperm.xlu0 %2864, %v229
        %v2866 = vpop.permute.xlu0 %2865
        %2868 = vset.pattern.permute.xlu0 73
        %2869 = vperm.xlu0 %2868, %v230
        %v2870 = vpop.permute.xlu0 %2869
        %2872 = vset.pattern.permute.xlu0 73
        %2873 = vperm.xlu0 %2872, %v231
        %v2874 = vpop.permute.xlu0 %2873
        %v2877 = vsel %vm2490, %v2836, 0
        %v2880 = vsel %vm2490, %v2837, 0
        %v2883 = vsel %vm2490, %v2838, 0
        %v2886 = vsel %vm2490, %v2839, 0
        %2888 = vmatprep.subr.bf16.mxu0 0
        %2889 = vmatpush1.bf16.msra.mxu0 %v2840
        %2890 = vmatprep.subr.bf16.mxu0 0
        %2891 = vmatpush1.bf16.msra.mxu0 %v2841
        %2892 = vmatprep.subr.bf16.mxu0 0
        %2893 = vmatpush1.bf16.msra.mxu0 %v2842
        %2894 = vmatprep.subr.bf16.mxu0 0
        %2895 = vmatpush1.bf16.msra.mxu0 %v2843
        %2896 = vmatprep.subr.bf16.mxu0 0
        %2897 = vmatpush1.bf16.msra.mxu0 0
        %2898 = vmatprep.subr.bf16.mxu0 0
        %2899 = vmatpush1.bf16.msra.mxu0 0
        %2900 = vmatprep.subr.bf16.mxu0 0
        %2901 = vmatpush1.bf16.msra.mxu0 0
        %2902 = vmatprep.subr.bf16.mxu0 0
        %2903 = vmatpush1.bf16.msra.mxu0 0
        %2904 = vmatprep.subr.bf16.mxu0 0
        %2905 = vmatpush1.bf16.msra.mxu0 0
        %2906 = vmatprep.subr.bf16.mxu0 0
        %2907 = vmatpush1.bf16.msra.mxu0 0
        %2908 = vmatprep.subr.bf16.mxu0 0
        %2909 = vmatpush1.bf16.msra.mxu0 0
        %2910 = vmatprep.subr.bf16.mxu0 0
        %2911 = vmatpush1.bf16.msra.mxu0 0
        %2912 = vmatprep.subr.bf16.mxu0 0
        %2913 = vmatpush1.bf16.msra.mxu0 0
        %2914 = vmatprep.subr.bf16.mxu0 0
        %2915 = vmatpush1.bf16.msra.mxu0 0
        %2916 = vmatprep.subr.bf16.mxu0 0
        %2917 = vmatpush1.bf16.msra.mxu0 0
        %2918 = vmatprep.subr.bf16.mxu0 0
        %2919 = vmatpush1.bf16.msra.mxu0 0
        %2920 = vmatprep.mubr.bf16.mxu0 0
        %2921 = vmatmul.mubr.bf16.gmra.mrb[0].mxu0 %v2877
        %v2922 = vpop.f32.mrb[0].mxu0
        %v2923 = vadd.f32 %v2846, %v2922
        %v2924 = vpop.f32.mrb[0].mxu0
        %v2925 = vpop.f32.mrb[0].mxu0
        %v2926 = vadd.f32 %v2850, %v2925
        %v2927 = vpop.f32.mrb[0].mxu0
        %2928 = vmatprep.mubr.bf16.mxu0 0
        %2929 = vmatmul.mubr.bf16.gmra.mrb[0].mxu0 %v2880
        %v2930 = vpop.f32.mrb[0].mxu0
        %v2931 = vadd.f32 %v2854, %v2930
        %v2932 = vpop.f32.mrb[0].mxu0
        %v2933 = vpop.f32.mrb[0].mxu0
        %v2934 = vadd.f32 %v2858, %v2933
        %v2935 = vpop.f32.mrb[0].mxu0
        %2936 = vmatprep.mubr.bf16.mxu0 0
        %2937 = vmatmul.mubr.bf16.gmra.mrb[0].mxu0 %v2883
        %v2938 = vpop.f32.mrb[0].mxu0
        %v2939 = vadd.f32 %v2862, %v2938
        %v2940 = vpop.f32.mrb[0].mxu0
        %v2941 = vpop.f32.mrb[0].mxu0
        %v2942 = vadd.f32 %v2866, %v2941
        %v2943 = vpop.f32.mrb[0].mxu0
        %2944 = vmatprep.mubr.bf16.mxu0 0
        %2945 = vmatmul.mubr.bf16.gmra.mrb[0].mxu0 %v2886
        %v2946 = vpop.f32.mrb[0].mxu0
        %v2947 = vadd.f32 %v2870, %v2946
        %v2948 = vpop.f32.mrb[0].mxu0
        %v2949 = vpop.f32.mrb[0].mxu0
        %v2950 = vadd.f32 %v2874, %v2949
        %v2951 = vpop.f32.mrb[0].mxu0
        %2952 = vdwg.mxu0
        %v2953 = vmax.f32 %v2923, 0.0
        %v2954 = vmax.f32 %v2926, 0.0
        %v2955 = vmax.f32 %v2931, 0.0
        %v2956 = vmax.f32 %v2934, 0.0
        %v2957 = vmax.f32 %v2939, 0.0
        %v2958 = vmax.f32 %v2942, 0.0
        %v2959 = vmax.f32 %v2947, 0.0
        %v2960 = vmax.f32 %v2950, 0.0
        %v2961 = vadd.f32 %v2820, %v2953
        %v2962 = vadd.f32 %v2821, %v2954
        %v2963 = vadd.f32 %v2822, %v2955
        %v2964 = vadd.f32 %v2823, %v2956
        %v2965 = vadd.f32 %v2824, %v2957
        %v2966 = vadd.f32 %v2825, %v2958
        %v2967 = vadd.f32 %v2826, %v2959
        %v2968 = vadd.f32 %v2827, %v2960
        %v2969 = vsel %vm1994, %v2961, 0.0
        %2970 = vadd.xlane.f32.xlu0 %v2969
        %v2971 = vpop.xlane.xlu0 %2970
        %v2972 = vsel %vm1994, %v2962, 0.0
        %2973 = vadd.xlane.f32.xlu0 %v2972
        %v2974 = vpop.xlane.xlu0 %2973
        %v2975 = vsel %vm1994, %v2963, 0.0
        %2976 = vadd.xlane.f32.xlu0 %v2975
        %v2977 = vpop.xlane.xlu0 %2976
        %v2978 = vsel %vm1994, %v2964, 0.0
        %2979 = vadd.xlane.f32.xlu0 %v2978
        %v2980 = vpop.xlane.xlu0 %2979
        %v2981 = vsel %vm1994, %v2965, 0.0
        %2982 = vadd.xlane.f32.xlu0 %v2981
        %v2983 = vpop.xlane.xlu0 %2982
        %v2984 = vsel %vm1994, %v2966, 0.0
        %2985 = vadd.xlane.f32.xlu0 %v2984
        %v2986 = vpop.xlane.xlu0 %2985
        %v2987 = vsel %vm1994, %v2967, 0.0
        %2988 = vadd.xlane.f32.xlu0 %v2987
        %v2989 = vpop.xlane.xlu0 %2988
        %v2990 = vsel %vm1994, %v2968, 0.0
        %2991 = vadd.xlane.f32.xlu0 %v2990
        %v2992 = vpop.xlane.xlu0 %2991
        %v2993 = vmul.f32 %v2961, %v2961
        %v2994 = vmul.f32 %v2962, %v2962
        %v2995 = vmul.f32 %v2963, %v2963
        %v2996 = vmul.f32 %v2964, %v2964
        %v2997 = vmul.f32 %v2965, %v2965
        %v2998 = vmul.f32 %v2966, %v2966
        %v2999 = vmul.f32 %v2967, %v2967
        %v3000 = vmul.f32 %v2968, %v2968
        %v3001 = vsel %vm1994, %v2993, 0.0
        %3002 = vadd.xlane.f32.xlu0 %v3001
        %v3003 = vpop.xlane.xlu0 %3002
        %v3004 = vsel %vm1994, %v2994, 0.0
        %3005 = vadd.xlane.f32.xlu0 %v3004
        %v3006 = vpop.xlane.xlu0 %3005
        %v3007 = vsel %vm1994, %v2995, 0.0
        %3008 = vadd.xlane.f32.xlu0 %v3007
        %v3009 = vpop.xlane.xlu0 %3008
        %v3010 = vsel %vm1994, %v2996, 0.0
        %3011 = vadd.xlane.f32.xlu0 %v3010
        %v3012 = vpop.xlane.xlu0 %3011
        %v3013 = vsel %vm1994, %v2997, 0.0
        %3014 = vadd.xlane.f32.xlu0 %v3013
        %v3015 = vpop.xlane.xlu0 %3014
        %v3016 = vsel %vm1994, %v2998, 0.0
        %3017 = vadd.xlane.f32.xlu0 %v3016
        %v3018 = vpop.xlane.xlu0 %3017
        %v3019 = vsel %vm1994, %v2999, 0.0
        %3020 = vadd.xlane.f32.xlu0 %v3019
        %v3021 = vpop.xlane.xlu0 %3020
        %v3022 = vsel %vm1994, %v3000, 0.0
        %3023 = vadd.xlane.f32.xlu0 %v3022
        %v3024 = vpop.xlane.xlu0 %3023
        %v3025 = vsel %vm2481, %v2971, %v3003
        %v3026 = vsel %vm2481, %v2974, %v3006
        %v3027 = vsel %vm2481, %v2977, %v3009
        %v3028 = vsel %vm2481, %v2980, %v3012
        %v3029 = vsel %vm2481, %v2983, %v3015
        %v3030 = vsel %vm2481, %v2986, %v3018
        %v3031 = vsel %vm2481, %v2989, %v3021
        %v3032 = vsel %vm2481, %v2992, %v3024
        %3033 = vmatprep.subr.mxu0 0.0
        %3034 = vmatpush1.msra.mxu0 %v3025
        %3035 = vmatprep.subr.mxu0 0.0
        %3036 = vmatpush1.msra.mxu0 %v3026
        %3037 = vmatprep.subr.mxu0 0.0
        %3038 = vmatpush1.msra.mxu0 %v3027
        %3039 = vmatprep.subr.mxu0 0.0
        %3040 = vmatpush1.msra.mxu0 %v3028
        %3041 = vmatprep.subr.mxu0 0.0
        %3042 = vmatpush1.msra.mxu0 %v3029
        %3043 = vmatprep.subr.mxu0 0.0
        %3044 = vmatpush1.msra.mxu0 %v3030
        %3045 = vmatprep.subr.mxu0 0.0
        %3046 = vmatpush1.msra.mxu0 %v3031
        %3047 = vmatprep.subr.mxu0 0.0
        %3048 = vmatpush1.msra.mxu0 %v3032
        %3049 = vmatprep.subr.mxu0 0.0
        %3050 = vmatpush1.msra.mxu0 0.0
        %3051 = vmatprep.subr.mxu0 0.0
        %3052 = vmatpush1.msra.mxu0 0.0
        %3053 = vmatprep.subr.mxu0 0.0
        %3054 = vmatpush1.msra.mxu0 0.0
        %3055 = vmatprep.subr.mxu0 0.0
        %3056 = vmatpush1.msra.mxu0 0.0
        %3057 = vmatprep.subr.mxu0 0.0
        %3058 = vmatpush1.msra.mxu0 0.0
        %3059 = vmatprep.subr.mxu0 0.0
        %3060 = vmatpush1.msra.mxu0 0.0
        %3061 = vmatprep.subr.mxu0 0.0
        %3062 = vmatpush1.msra.mxu0 0.0
        %3063 = vmatprep.subr.mxu0 0.0
        %3064 = vmatpush1.msra.mxu0 0.0
        %3065 = vmatprep.subr.mxu0 0.0
        %3066 = vmatpush1.msra.mxu0 0.0
        %3067 = vmatprep.subr.mxu0 0.0
        %3068 = vmatpush1.msra.mxu0 0.0
        %3069 = vmatprep.subr.mxu0 0.0
        %3070 = vmatpush1.msra.mxu0 0.0
        %3071 = vmatprep.subr.mxu0 0.0
        %3072 = vmatpush1.msra.mxu0 0.0
        %3073 = vmatprep.subr.mxu0 0.0
        %3074 = vmatpush1.msra.mxu0 0.0
        %3075 = vmatprep.subr.mxu0 0.0
        %3076 = vmatpush1.msra.mxu0 0.0
        %3077 = vmatprep.subr.mxu0 0.0
        %3078 = vmatpush1.msra.mxu0 0.0
        %3079 = vmatprep.subr.mxu0 0.0
        %3080 = vmatpush1.msra.mxu0 0.0
        %3081 = vmatprep.subr.mxu0 0.0
        %3082 = vmatpush1.msra.mxu0 0.0
        %3083 = vmatprep.subr.mxu0 0.0
        %3084 = vmatpush1.msra.mxu0 0.0
        %3085 = vmatprep.subr.mxu0 0.0
        %3086 = vmatpush1.msra.mxu0 0.0
        %3087 = vmatprep.subr.mxu0 0.0
        %3088 = vmatpush1.msra.mxu0 0.0
        %3089 = vmatprep.subr.mxu0 0.0
        %3090 = vmatpush1.msra.mxu0 0.0
        %3091 = vmatprep.subr.mxu0 0.0
        %3092 = vmatpush1.msra.mxu0 0.0
        %3093 = vmatprep.subr.mxu0 0.0
        %3094 = vmatpush1.msra.mxu0 0.0
        %3095 = vmatprep.subr.mxu0 0.0
        %3096 = vmatpush1.msra.mxu0 0.0
        %3097 = vmatprep.mubr.f32.mxu0 0.0
        %3098 = vmatmul.mubr.f32.gmra.mrb[0].mxu0 %v2491
        %v3099 = vpop.f32.mrb[0].mxu0
        %v3100 = vadd.f32 0.0, %v3099
        %v3101 = vpop.f32.mrb[0].mxu0
        %3102 = vmatprep.mubr.f32.mxu0 0.0
        %3103 = vmatmul.mubr.f32.gmra.mrb[0].mxu0 %v2493
        %v3104 = vpop.f32.mrb[0].mxu0
        %v3105 = vadd.f32 0.0, %v3104
        %v3106 = vpop.f32.mrb[0].mxu0
        %3107 = vmatprep.mubr.f32.mxu0 0.0
        %3108 = vmatmul.mubr.f32.gmra.mrb[0].mxu0 %v2495
        %v3109 = vpop.f32.mrb[0].mxu0
        %v3110 = vadd.f32 0.0, %v3109
        %v3111 = vpop.f32.mrb[0].mxu0
        %3112 = vmatprep.mubr.f32.mxu0 0.0
        %3113 = vmatmul.mubr.f32.gmra.mrb[0].mxu0 %v2497
        %v3114 = vpop.f32.mrb[0].mxu0
        %v3115 = vadd.f32 0.0, %v3114
        %v3116 = vpop.f32.mrb[0].mxu0
        %3117 = vmatprep.mubr.f32.mxu0 0.0
        %3118 = vmatmul.mubr.f32.gmra.mrb[0].mxu0 %v2499
        %v3119 = vpop.f32.mrb[0].mxu0
        %v3120 = vadd.f32 0.0, %v3119
        %v3121 = vpop.f32.mrb[0].mxu0
        %3122 = vmatprep.mubr.f32.mxu0 0.0
        %3123 = vmatmul.mubr.f32.gmra.mrb[0].mxu0 %v2501
        %v3124 = vpop.f32.mrb[0].mxu0
        %v3125 = vadd.f32 0.0, %v3124
        %v3126 = vpop.f32.mrb[0].mxu0
        %3127 = vmatprep.mubr.f32.mxu0 0.0
        %3128 = vmatmul.mubr.f32.gmra.mrb[0].mxu0 %v2503
        %v3129 = vpop.f32.mrb[0].mxu0
        %v3130 = vadd.f32 0.0, %v3129
        %v3131 = vpop.f32.mrb[0].mxu0
        %3132 = vmatprep.mubr.f32.mxu0 0.0
        %3133 = vmatmul.mubr.f32.gmra.mrb[0].mxu0 %v2505
        %v3134 = vpop.f32.mrb[0].mxu0
        %v3135 = vadd.f32 0.0, %v3134
        %v3136 = vpop.f32.mrb[0].mxu0
        %3137 = vdwg.mxu0
        %v3138 = vmul.f32 %v3100, %v3100
        %v3139 = vmul.f32 %v3105, %v3105
        %v3140 = vmul.f32 %v3110, %v3110
        %v3141 = vmul.f32 %v3115, %v3115
        %v3142 = vmul.f32 %v3120, %v3120
        %v3143 = vmul.f32 %v3125, %v3125
        %v3144 = vmul.f32 %v3130, %v3130
        %v3145 = vmul.f32 %v3135, %v3135
        %3154 = vrot.lane.b32.xlu0 %v3138, 1
        %v3155 = vpop.permute.xlu0 %3154
        %3156 = vrot.lane.b32.xlu0 %v3139, 1
        %v3157 = vpop.permute.xlu0 %3156
        %3158 = vrot.lane.b32.xlu0 %v3140, 1
        %v3159 = vpop.permute.xlu0 %3158
        %3160 = vrot.lane.b32.xlu0 %v3141, 1
        %v3161 = vpop.permute.xlu0 %3160
        %3162 = vrot.lane.b32.xlu0 %v3142, 1
        %v3163 = vpop.permute.xlu0 %3162
        %3164 = vrot.lane.b32.xlu0 %v3143, 1
        %v3165 = vpop.permute.xlu0 %3164
        %3166 = vrot.lane.b32.xlu0 %v3144, 1
        %v3167 = vpop.permute.xlu0 %3166
        %3168 = vrot.lane.b32.xlu0 %v3145, 1
        %v3169 = vpop.permute.xlu0 %3168
        %v3178 = vsub.f32 %v3100, %v3155
        %v3179 = vsub.f32 %v3105, %v3157
        %v3180 = vsub.f32 %v3110, %v3159
        %v3181 = vsub.f32 %v3115, %v3161
        %v3182 = vsub.f32 %v3120, %v3163
        %v3183 = vsub.f32 %v3125, %v3165
        %v3184 = vsub.f32 %v3130, %v3167
        %v3185 = vsub.f32 %v3135, %v3169
        %3187 = vset.pattern.permute.xlu0 0
        %3188 = vperm.xlu0 %3187, %v3100
        %v3189 = vpop.permute.xlu0 %3188
        %3192 = vset.pattern.permute.xlu0 0
        %3193 = vperm.xlu0 %3192, %v3105
        %v3194 = vpop.permute.xlu0 %3193
        %3197 = vset.pattern.permute.xlu0 0
        %3198 = vperm.xlu0 %3197, %v3110
        %v3199 = vpop.permute.xlu0 %3198
        %3202 = vset.pattern.permute.xlu0 0
        %3203 = vperm.xlu0 %3202, %v3115
        %v3204 = vpop.permute.xlu0 %3203
        %3207 = vset.pattern.permute.xlu0 0
        %3208 = vperm.xlu0 %3207, %v3120
        %v3209 = vpop.permute.xlu0 %3208
        %3212 = vset.pattern.permute.xlu0 0
        %3213 = vperm.xlu0 %3212, %v3125
        %v3214 = vpop.permute.xlu0 %3213
        %3217 = vset.pattern.permute.xlu0 0
        %3218 = vperm.xlu0 %3217, %v3130
        %v3219 = vpop.permute.xlu0 %3218
        %3222 = vset.pattern.permute.xlu0 0
        %3223 = vperm.xlu0 %3222, %v3135
        %v3224 = vpop.permute.xlu0 %3223
        %v3226 = vsub.f32 %v2961, %v3189
        %v3227 = vsub.f32 %v2962, %v3194
        %v3228 = vsub.f32 %v2963, %v3199
        %v3229 = vsub.f32 %v2964, %v3204
        %v3230 = vsub.f32 %v2965, %v3209
        %v3231 = vsub.f32 %v2966, %v3214
        %v3232 = vsub.f32 %v2967, %v3219
        %v3233 = vsub.f32 %v2968, %v3224
        %v3234 = vadd.f32 %v3178, 1e-05
        %v3235 = vadd.f32 %v3179, 1e-05
        %v3236 = vadd.f32 %v3180, 1e-05
        %v3237 = vadd.f32 %v3181, 1e-05
        %v3238 = vadd.f32 %v3182, 1e-05
        %v3239 = vadd.f32 %v3183, 1e-05
        %v3240 = vadd.f32 %v3184, 1e-05
        %v3241 = vadd.f32 %v3185, 1e-05
        %v3242 = vrsqrt.pop %v3234
        %v3243 = vrsqrt.pop %v3235
        %v3244 = vrsqrt.pop %v3236
        %v3245 = vrsqrt.pop %v3237
        %v3246 = vrsqrt.pop %v3238
        %v3247 = vrsqrt.pop %v3239
        %v3248 = vrsqrt.pop %v3240
        %v3249 = vrsqrt.pop %v3241
        %3251 = vset.pattern.permute.xlu0 1
        %3252 = vperm.xlu0 %3251, %v3242
        %v3253 = vpop.permute.xlu0 %3252
        %3256 = vset.pattern.permute.xlu0 1
        %3257 = vperm.xlu0 %3256, %v3243
        %v3258 = vpop.permute.xlu0 %3257
        %3261 = vset.pattern.permute.xlu0 1
        %3262 = vperm.xlu0 %3261, %v3244
        %v3263 = vpop.permute.xlu0 %3262
        %3266 = vset.pattern.permute.xlu0 1
        %3267 = vperm.xlu0 %3266, %v3245
        %v3268 = vpop.permute.xlu0 %3267
        %3271 = vset.pattern.permute.xlu0 1
        %3272 = vperm.xlu0 %3271, %v3246
        %v3273 = vpop.permute.xlu0 %3272
        %3276 = vset.pattern.permute.xlu0 1
        %3277 = vperm.xlu0 %3276, %v3247
        %v3278 = vpop.permute.xlu0 %3277
        %3281 = vset.pattern.permute.xlu0 1
        %3282 = vperm.xlu0 %3281, %v3248
        %v3283 = vpop.permute.xlu0 %3282
        %3286 = vset.pattern.permute.xlu0 1
        %3287 = vperm.xlu0 %3286, %v3249
        %v3288 = vpop.permute.xlu0 %3287
        %v3290 = vmul.f32 %v3226, %v3253
        %v3291 = vmul.f32 %v3227, %v3258
        %v3292 = vmul.f32 %v3228, %v3263
        %v3293 = vmul.f32 %v3229, %v3268
        %v3294 = vmul.f32 %v3230, %v3273
        %v3295 = vmul.f32 %v3231, %v3278
        %v3296 = vmul.f32 %v3232, %v3283
        %v3297 = vmul.f32 %v3233, %v3288
        %3306 = vrot.lane.b32.xlu0 %v2828, 20
        %v3307 = vpop.permute.xlu0 %3306
        %3308 = vrot.lane.b32.xlu0 %v2829, 20
        %v3309 = vpop.permute.xlu0 %3308
        %3310 = vrot.lane.b32.xlu0 %v2830, 20
        %v3311 = vpop.permute.xlu0 %3310
        %3312 = vrot.lane.b32.xlu0 %v2831, 20
        %v3313 = vpop.permute.xlu0 %3312
        %3314 = vrot.lane.b32.xlu0 %v2832, 20
        %v3315 = vpop.permute.xlu0 %3314
        %3316 = vrot.lane.b32.xlu0 %v2833, 20
        %v3317 = vpop.permute.xlu0 %3316
        %3318 = vrot.lane.b32.xlu0 %v2834, 20
        %v3319 = vpop.permute.xlu0 %3318
        %3320 = vrot.lane.b32.xlu0 %v2835, 20
        %v3321 = vpop.permute.xlu0 %3320
        %v3330 = vmul.f32 %v3290, %v3307
        %v3331 = vmul.f32 %v3291, %v3309
        %v3332 = vmul.f32 %v3292, %v3311
        %v3333 = vmul.f32 %v3293, %v3313
        %v3334 = vmul.f32 %v3294, %v3315
        %v3335 = vmul.f32 %v3295, %v3317
        %v3336 = vmul.f32 %v3296, %v3319
        %v3337 = vmul.f32 %v3297, %v3321
        %3338 = vrot.lane.b32.xlu0 %v2828, 12
        %v3339 = vpop.permute.xlu0 %3338
        %3340 = vrot.lane.b32.xlu0 %v2829, 12
        %v3341 = vpop.permute.xlu0 %3340
        %3342 = vrot.lane.b32.xlu0 %v2830, 12
        %v3343 = vpop.permute.xlu0 %3342
        %3344 = vrot.lane.b32.xlu0 %v2831, 12
        %v3345 = vpop.permute.xlu0 %3344
        %3346 = vrot.lane.b32.xlu0 %v2832, 12
        %v3347 = vpop.permute.xlu0 %3346
        %3348 = vrot.lane.b32.xlu0 %v2833, 12
        %v3349 = vpop.permute.xlu0 %3348
        %3350 = vrot.lane.b32.xlu0 %v2834, 12
        %v3351 = vpop.permute.xlu0 %3350
        %3352 = vrot.lane.b32.xlu0 %v2835, 12
        %v3353 = vpop.permute.xlu0 %3352
        %v3362 = vadd.f32 %v3330, %v3339
        %v3363 = vadd.f32 %v3331, %v3341
        %v3364 = vadd.f32 %v3332, %v3343
        %v3365 = vadd.f32 %v3333, %v3345
        %v3366 = vadd.f32 %v3334, %v3347
        %v3367 = vadd.f32 %v3335, %v3349
        %v3368 = vadd.f32 %v3336, %v3351
        %v3369 = vadd.f32 %v3337, %v3353
        %v3370 = vsel %vm1994, %v3362, %v2138
        %v3371 = vsel %vm1994, %v3363, %v2141
        %v3372 = vsel %vm1994, %v3364, %v2146
        %v3373 = vsel %vm1994, %v3365, %v2149
        %v3374 = vsel %vm1994, %v3366, %v2154
        %v3375 = vsel %vm1994, %v3367, %v2157
        %v3376 = vsel %vm1994, %v3368, %v2162
        %v3377 = vsel %vm1994, %v3369, %v2165
        %v3378 = vld [vmem:[#allocation2 + $0x1c0] sm:$0xff]
        %v3379 = vld [vmem:[#allocation2 + $0x1c8] sm:$0xff]
        %v3380 = vpack.c.bf16 %v3371, %v3370
        %v3381 = vpack.c.bf16 %v3373, %v3372
        %v3382 = vpack.c.bf16 %v3375, %v3374
        %v3383 = vpack.c.bf16 %v3377, %v3376
        %v3384 = vpack.c.bf16 %v3379, %v3378
        %v3385 = vld [vmem:[#allocation2 + $0x1d0] sm:$0x1]
        %v3386 = vlaneseq
        %v3387 = vshrl.u32 %v3386, 7
        %v3388 = vsub.s32 0, %v3387
        %v3389 = vrot.slane %v3385, %v3388
        %3391 = vrot.lane.b32.xlu0 %v3384, 40
        %v3392 = vpop.permute.xlu0 %3391
        %3395 = vrot.lane.b32.xlu0 %v3389, 120
        %v3396 = vpop.permute.xlu0 %3395
        %v3399 = vsel %vm927, %v3380, 0
        %v3402 = vsel %vm927, %v3381, 0
        %v3405 = vsel %vm927, %v3382, 0
        %v3408 = vsel %vm927, %v3383, 0
        %3410 = vmatprep.subr.bf16.mxu0 0
        %3411 = vmatpush1.bf16.msra.mxu0 %v3392
        %3412 = vmatprep.subr.bf16.mxu0 0
        %3413 = vmatpush1.bf16.msra.mxu0 0
        %3414 = vmatprep.subr.bf16.mxu0 0
        %3415 = vmatpush1.bf16.msra.mxu0 0
        %3416 = vmatprep.subr.bf16.mxu0 0
        %3417 = vmatpush1.bf16.msra.mxu0 0
        %3418 = vmatprep.subr.bf16.mxu0 0
        %3419 = vmatpush1.bf16.msra.mxu0 0
        %3420 = vmatprep.subr.bf16.mxu0 0
        %3421 = vmatpush1.bf16.msra.mxu0 0
        %3422 = vmatprep.subr.bf16.mxu0 0
        %3423 = vmatpush1.bf16.msra.mxu0 0
        %3424 = vmatprep.subr.bf16.mxu0 0
        %3425 = vmatpush1.bf16.msra.mxu0 0
        %3426 = vmatprep.subr.bf16.mxu0 0
        %3427 = vmatpush1.bf16.msra.mxu0 0
        %3428 = vmatprep.subr.bf16.mxu0 0
        %3429 = vmatpush1.bf16.msra.mxu0 0
        %3430 = vmatprep.subr.bf16.mxu0 0
        %3431 = vmatpush1.bf16.msra.mxu0 0
        %3432 = vmatprep.subr.bf16.mxu0 0
        %3433 = vmatpush1.bf16.msra.mxu0 0
        %3434 = vmatprep.subr.bf16.mxu0 0
        %3435 = vmatpush1.bf16.msra.mxu0 0
        %3436 = vmatprep.subr.bf16.mxu0 0
        %3437 = vmatpush1.bf16.msra.mxu0 0
        %3438 = vmatprep.subr.bf16.mxu0 0
        %3439 = vmatpush1.bf16.msra.mxu0 0
        %3440 = vmatprep.subr.bf16.mxu0 0
        %3441 = vmatpush1.bf16.msra.mxu0 0
        %3442 = vmatprep.mubr.bf16.mxu0 0
        %3443 = vmatmul.mubr.bf16.gmra.mrb[0].mxu0 %v3399
        %v3444 = vpop.f32.mrb[0].mxu0
        %v3445 = vadd.f32 %v3396, %v3444
        %v3446 = vpop.f32.mrb[0].mxu0
        %v3447 = vpop.f32.mrb[0].mxu0
        %v3448 = vadd.f32 %v3396, %v3447
        %v3449 = vpop.f32.mrb[0].mxu0
        %3450 = vmatprep.mubr.bf16.mxu0 0
        %3451 = vmatmul.mubr.bf16.gmra.mrb[0].mxu0 %v3402
        %v3452 = vpop.f32.mrb[0].mxu0
        %v3453 = vadd.f32 %v3396, %v3452
        %v3454 = vpop.f32.mrb[0].mxu0
        %v3455 = vpop.f32.mrb[0].mxu0
        %v3456 = vadd.f32 %v3396, %v3455
        %v3457 = vpop.f32.mrb[0].mxu0
        %3458 = vmatprep.mubr.bf16.mxu0 0
        %3459 = vmatmul.mubr.bf16.gmra.mrb[0].mxu0 %v3405
        %v3460 = vpop.f32.mrb[0].mxu0
        %v3461 = vadd.f32 %v3396, %v3460
        %v3462 = vpop.f32.mrb[0].mxu0
        %v3463 = vpop.f32.mrb[0].mxu0
        %v3464 = vadd.f32 %v3396, %v3463
        %v3465 = vpop.f32.mrb[0].mxu0
        %3466 = vmatprep.mubr.bf16.mxu0 0
        %3467 = vmatmul.mubr.bf16.gmra.mrb[0].mxu0 %v3408
        %v3468 = vpop.f32.mrb[0].mxu0
        %v3469 = vadd.f32 %v3396, %v3468
        %v3470 = vpop.f32.mrb[0].mxu0
        %v3471 = vpop.f32.mrb[0].mxu0
        %v3472 = vadd.f32 %v3396, %v3471
        %v3473 = vpop.f32.mrb[0].mxu0
        %3474 = vdwg.mxu0
        %v3475 = vmax.f32 %v3445, 0.0
        %v3476 = vmax.f32 %v3448, 0.0
        %v3477 = vmax.f32 %v3453, 0.0
        %v3478 = vmax.f32 %v3456, 0.0
        %v3479 = vmax.f32 %v3461, 0.0
        %v3480 = vmax.f32 %v3464, 0.0
        %v3481 = vmax.f32 %v3469, 0.0
        %v3482 = vmax.f32 %v3472, 0.0
        %v3483 = vpack.c.bf16 %v3476, %v3475
        %v3484 = vpack.c.bf16 %v3478, %v3477
        %v3485 = vpack.c.bf16 %v3480, %v3479
        %v3486 = vpack.c.bf16 %v3482, %v3481
        %3491 = vrot.lane.b32.xlu0 %v3483, 120
        %v3492 = vpop.permute.xlu0 %3491
        %3493 = vrot.lane.b32.xlu0 %v3484, 120
        %v3494 = vpop.permute.xlu0 %3493
        %3495 = vrot.lane.b32.xlu0 %v3485, 120
        %v3496 = vpop.permute.xlu0 %3495
        %3497 = vrot.lane.b32.xlu0 %v3486, 120
        %v3498 = vpop.permute.xlu0 %3497
        %3501 = vrot.lane.b32.xlu0 %v2322, 80
        %v3502 = vpop.permute.xlu0 %3501
        %3503 = vrot.lane.b32.xlu0 %v2323, 80
        %v3504 = vpop.permute.xlu0 %3503
        %3507 = vrot.lane.b32.xlu0 %v3389, 72
        %v3508 = vpop.permute.xlu0 %3507
        %v3511 = vsel %vm2339, %v3492, 0
        %v3514 = vsel %vm2339, %v3494, 0
        %v3517 = vsel %vm2339, %v3496, 0
        %v3520 = vsel %vm2339, %v3498, 0
        %3522 = vmatprep.subr.bf16.mxu0 0
        %3523 = vmatpush1.bf16.msra.mxu0 %v3502
        %3524 = vmatprep.subr.bf16.mxu0 0
        %3525 = vmatpush1.bf16.msra.mxu0 %v3504
        %3526 = vmatprep.subr.bf16.mxu0 0
        %3527 = vmatpush1.bf16.msra.mxu0 0
        %3528 = vmatprep.subr.bf16.mxu0 0
        %3529 = vmatpush1.bf16.msra.mxu0 0
        %3530 = vmatprep.subr.bf16.mxu0 0
        %3531 = vmatpush1.bf16.msra.mxu0 0
        %3532 = vmatprep.subr.bf16.mxu0 0
        %3533 = vmatpush1.bf16.msra.mxu0 0
        %3534 = vmatprep.subr.bf16.mxu0 0
        %3535 = vmatpush1.bf16.msra.mxu0 0
        %3536 = vmatprep.subr.bf16.mxu0 0
        %3537 = vmatpush1.bf16.msra.mxu0 0
        %3538 = vmatprep.subr.bf16.mxu0 0
        %3539 = vmatpush1.bf16.msra.mxu0 0
        %3540 = vmatprep.subr.bf16.mxu0 0
        %3541 = vmatpush1.bf16.msra.mxu0 0
        %3542 = vmatprep.subr.bf16.mxu0 0
        %3543 = vmatpush1.bf16.msra.mxu0 0
        %3544 = vmatprep.subr.bf16.mxu0 0
        %3545 = vmatpush1.bf16.msra.mxu0 0
        %3546 = vmatprep.subr.bf16.mxu0 0
        %3547 = vmatpush1.bf16.msra.mxu0 0
        %3548 = vmatprep.subr.bf16.mxu0 0
        %3549 = vmatpush1.bf16.msra.mxu0 0
        %3550 = vmatprep.subr.bf16.mxu0 0
        %3551 = vmatpush1.bf16.msra.mxu0 0
        %3552 = vmatprep.subr.bf16.mxu0 0
        %3553 = vmatpush1.bf16.msra.mxu0 0
        %3554 = vmatprep.mubr.bf16.mxu0 0
        %3555 = vmatmul.mubr.bf16.gmra.mrb[0].mxu0 %v3511
        %v3556 = vpop.f32.mrb[0].mxu0
        %v3557 = vadd.f32 %v3508, %v3556
        %v3558 = vpop.f32.mrb[0].mxu0
        %v3559 = vpop.f32.mrb[0].mxu0
        %v3560 = vadd.f32 %v3508, %v3559
        %v3561 = vpop.f32.mrb[0].mxu0
        %3562 = vmatprep.mubr.bf16.mxu0 0
        %3563 = vmatmul.mubr.bf16.gmra.mrb[0].mxu0 %v3514
        %v3564 = vpop.f32.mrb[0].mxu0
        %v3565 = vadd.f32 %v3508, %v3564
        %v3566 = vpop.f32.mrb[0].mxu0
        %v3567 = vpop.f32.mrb[0].mxu0
        %v3568 = vadd.f32 %v3508, %v3567
        %v3569 = vpop.f32.mrb[0].mxu0
        %3570 = vmatprep.mubr.bf16.mxu0 0
        %3571 = vmatmul.mubr.bf16.gmra.mrb[0].mxu0 %v3517
        %v3572 = vpop.f32.mrb[0].mxu0
        %v3573 = vadd.f32 %v3508, %v3572
        %v3574 = vpop.f32.mrb[0].mxu0
        %v3575 = vpop.f32.mrb[0].mxu0
        %v3576 = vadd.f32 %v3508, %v3575
        %v3577 = vpop.f32.mrb[0].mxu0
        %3578 = vmatprep.mubr.bf16.mxu0 0
        %3579 = vmatmul.mubr.bf16.gmra.mrb[0].mxu0 %v3520
        %v3580 = vpop.f32.mrb[0].mxu0
        %v3581 = vadd.f32 %v3508, %v3580
        %v3582 = vpop.f32.mrb[0].mxu0
        %v3583 = vpop.f32.mrb[0].mxu0
        %v3584 = vadd.f32 %v3508, %v3583
        %v3585 = vpop.f32.mrb[0].mxu0
        %3586 = vdwg.mxu0
        %v3587 = vadd.f32 %v3445, %v3557
        %v3588 = vadd.f32 %v3448, %v3560
        %v3589 = vadd.f32 %v3453, %v3565
        %v3590 = vadd.f32 %v3456, %v3568
        %v3591 = vadd.f32 %v3461, %v3573
        %v3592 = vadd.f32 %v3464, %v3576
        %v3593 = vadd.f32 %v3469, %v3581
        %v3594 = vadd.f32 %v3472, %v3584
        %v3595 = vsel %vm1994, %v3587, 0.0
        %3596 = vadd.xlane.f32.xlu0 %v3595
        %v3597 = vpop.xlane.xlu0 %3596
        %v3598 = vsel %vm1994, %v3588, 0.0
        %3599 = vadd.xlane.f32.xlu0 %v3598
        %v3600 = vpop.xlane.xlu0 %3599
        %v3601 = vsel %vm1994, %v3589, 0.0
        %3602 = vadd.xlane.f32.xlu0 %v3601
        %v3603 = vpop.xlane.xlu0 %3602
        %v3604 = vsel %vm1994, %v3590, 0.0
        %3605 = vadd.xlane.f32.xlu0 %v3604
        %v3606 = vpop.xlane.xlu0 %3605
        %v3607 = vsel %vm1994, %v3591, 0.0
        %3608 = vadd.xlane.f32.xlu0 %v3607
        %v3609 = vpop.xlane.xlu0 %3608
        %v3610 = vsel %vm1994, %v3592, 0.0
        %3611 = vadd.xlane.f32.xlu0 %v3610
        %v3612 = vpop.xlane.xlu0 %3611
        %v3613 = vsel %vm1994, %v3593, 0.0
        %3614 = vadd.xlane.f32.xlu0 %v3613
        %v3615 = vpop.xlane.xlu0 %3614
        %v3616 = vsel %vm1994, %v3594, 0.0
        %3617 = vadd.xlane.f32.xlu0 %v3616
        %v3618 = vpop.xlane.xlu0 %3617
        %v3619 = vmul.f32 %v3587, %v3587
        %v3620 = vmul.f32 %v3588, %v3588
        %v3621 = vmul.f32 %v3589, %v3589
        %v3622 = vmul.f32 %v3590, %v3590
        %v3623 = vmul.f32 %v3591, %v3591
        %v3624 = vmul.f32 %v3592, %v3592
        %v3625 = vmul.f32 %v3593, %v3593
        %v3626 = vmul.f32 %v3594, %v3594
        %v3627 = vsel %vm1994, %v3619, 0.0
        %3628 = vadd.xlane.f32.xlu0 %v3627
        %v3629 = vpop.xlane.xlu0 %3628
        %v3630 = vsel %vm1994, %v3620, 0.0
        %3631 = vadd.xlane.f32.xlu0 %v3630
        %v3632 = vpop.xlane.xlu0 %3631
        %v3633 = vsel %vm1994, %v3621, 0.0
        %3634 = vadd.xlane.f32.xlu0 %v3633
        %v3635 = vpop.xlane.xlu0 %3634
        %v3636 = vsel %vm1994, %v3622, 0.0
        %3637 = vadd.xlane.f32.xlu0 %v3636
        %v3638 = vpop.xlane.xlu0 %3637
        %v3639 = vsel %vm1994, %v3623, 0.0
        %3640 = vadd.xlane.f32.xlu0 %v3639
        %v3641 = vpop.xlane.xlu0 %3640
        %v3642 = vsel %vm1994, %v3624, 0.0
        %3643 = vadd.xlane.f32.xlu0 %v3642
        %v3644 = vpop.xlane.xlu0 %3643
        %v3645 = vsel %vm1994, %v3625, 0.0
        %3646 = vadd.xlane.f32.xlu0 %v3645
        %v3647 = vpop.xlane.xlu0 %3646
        %v3648 = vsel %vm1994, %v3626, 0.0
        %3649 = vadd.xlane.f32.xlu0 %v3648
        %v3650 = vpop.xlane.xlu0 %3649
        %v3651 = vsel %vm2481, %v3597, %v3629
        %v3652 = vsel %vm2481, %v3600, %v3632
        %v3653 = vsel %vm2481, %v3603, %v3635
        %v3654 = vsel %vm2481, %v3606, %v3638
        %v3655 = vsel %vm2481, %v3609, %v3641
        %v3656 = vsel %vm2481, %v3612, %v3644
        %v3657 = vsel %vm2481, %v3615, %v3647
        %v3658 = vsel %vm2481, %v3618, %v3650
        %3659 = vmatprep.subr.mxu0 0.0
        %3660 = vmatpush1.msra.mxu0 %v3651
        %3661 = vmatprep.subr.mxu0 0.0
        %3662 = vmatpush1.msra.mxu0 %v3652
        %3663 = vmatprep.subr.mxu0 0.0
        %3664 = vmatpush1.msra.mxu0 %v3653
        %3665 = vmatprep.subr.mxu0 0.0
        %3666 = vmatpush1.msra.mxu0 %v3654
        %3667 = vmatprep.subr.mxu0 0.0
        %3668 = vmatpush1.msra.mxu0 %v3655
        %3669 = vmatprep.subr.mxu0 0.0
        %3670 = vmatpush1.msra.mxu0 %v3656
        %3671 = vmatprep.subr.mxu0 0.0
        %3672 = vmatpush1.msra.mxu0 %v3657
        %3673 = vmatprep.subr.mxu0 0.0
        %3674 = vmatpush1.msra.mxu0 %v3658
        %3675 = vmatprep.subr.mxu0 0.0
        %3676 = vmatpush1.msra.mxu0 0.0
        %3677 = vmatprep.subr.mxu0 0.0
        %3678 = vmatpush1.msra.mxu0 0.0
        %3679 = vmatprep.subr.mxu0 0.0
        %3680 = vmatpush1.msra.mxu0 0.0
        %3681 = vmatprep.subr.mxu0 0.0
        %3682 = vmatpush1.msra.mxu0 0.0
        %3683 = vmatprep.subr.mxu0 0.0
        %3684 = vmatpush1.msra.mxu0 0.0
        %3685 = vmatprep.subr.mxu0 0.0
        %3686 = vmatpush1.msra.mxu0 0.0
        %3687 = vmatprep.subr.mxu0 0.0
        %3688 = vmatpush1.msra.mxu0 0.0
        %3689 = vmatprep.subr.mxu0 0.0
        %3690 = vmatpush1.msra.mxu0 0.0
        %3691 = vmatprep.subr.mxu0 0.0
        %3692 = vmatpush1.msra.mxu0 0.0
        %3693 = vmatprep.subr.mxu0 0.0
        %3694 = vmatpush1.msra.mxu0 0.0
        %3695 = vmatprep.subr.mxu0 0.0
        %3696 = vmatpush1.msra.mxu0 0.0
        %3697 = vmatprep.subr.mxu0 0.0
        %3698 = vmatpush1.msra.mxu0 0.0
        %3699 = vmatprep.subr.mxu0 0.0
        %3700 = vmatpush1.msra.mxu0 0.0
        %3701 = vmatprep.subr.mxu0 0.0
        %3702 = vmatpush1.msra.mxu0 0.0
        %3703 = vmatprep.subr.mxu0 0.0
        %3704 = vmatpush1.msra.mxu0 0.0
        %3705 = vmatprep.subr.mxu0 0.0
        %3706 = vmatpush1.msra.mxu0 0.0
        %3707 = vmatprep.subr.mxu0 0.0
        %3708 = vmatpush1.msra.mxu0 0.0
        %3709 = vmatprep.subr.mxu0 0.0
        %3710 = vmatpush1.msra.mxu0 0.0
        %3711 = vmatprep.subr.mxu0 0.0
        %3712 = vmatpush1.msra.mxu0 0.0
        %3713 = vmatprep.subr.mxu0 0.0
        %3714 = vmatpush1.msra.mxu0 0.0
        %3715 = vmatprep.subr.mxu0 0.0
        %3716 = vmatpush1.msra.mxu0 0.0
        %3717 = vmatprep.subr.mxu0 0.0
        %3718 = vmatpush1.msra.mxu0 0.0
        %3719 = vmatprep.subr.mxu0 0.0
        %3720 = vmatpush1.msra.mxu0 0.0
        %3721 = vmatprep.subr.mxu0 0.0
        %3722 = vmatpush1.msra.mxu0 0.0
        %3723 = vmatprep.mubr.f32.mxu0 0.0
        %3724 = vmatmul.mubr.f32.gmra.mrb[0].mxu0 %v2491
        %v3725 = vpop.f32.mrb[0].mxu0
        %v3726 = vadd.f32 0.0, %v3725
        %v3727 = vpop.f32.mrb[0].mxu0
        %3728 = vmatprep.mubr.f32.mxu0 0.0
        %3729 = vmatmul.mubr.f32.gmra.mrb[0].mxu0 %v2493
        %v3730 = vpop.f32.mrb[0].mxu0
        %v3731 = vadd.f32 0.0, %v3730
        %v3732 = vpop.f32.mrb[0].mxu0
        %3733 = vmatprep.mubr.f32.mxu0 0.0
        %3734 = vmatmul.mubr.f32.gmra.mrb[0].mxu0 %v2495
        %v3735 = vpop.f32.mrb[0].mxu0
        %v3736 = vadd.f32 0.0, %v3735
        %v3737 = vpop.f32.mrb[0].mxu0
        %3738 = vmatprep.mubr.f32.mxu0 0.0
        %3739 = vmatmul.mubr.f32.gmra.mrb[0].mxu0 %v2497
        %v3740 = vpop.f32.mrb[0].mxu0
        %v3741 = vadd.f32 0.0, %v3740
        %v3742 = vpop.f32.mrb[0].mxu0
        %3743 = vmatprep.mubr.f32.mxu0 0.0
        %3744 = vmatmul.mubr.f32.gmra.mrb[0].mxu0 %v2499
        %v3745 = vpop.f32.mrb[0].mxu0
        %v3746 = vadd.f32 0.0, %v3745
        %v3747 = vpop.f32.mrb[0].mxu0
        %3748 = vmatprep.mubr.f32.mxu0 0.0
        %3749 = vmatmul.mubr.f32.gmra.mrb[0].mxu0 %v2501
        %v3750 = vpop.f32.mrb[0].mxu0
        %v3751 = vadd.f32 0.0, %v3750
        %v3752 = vpop.f32.mrb[0].mxu0
        %3753 = vmatprep.mubr.f32.mxu0 0.0
        %3754 = vmatmul.mubr.f32.gmra.mrb[0].mxu0 %v2503
        %v3755 = vpop.f32.mrb[0].mxu0
        %v3756 = vadd.f32 0.0, %v3755
        %v3757 = vpop.f32.mrb[0].mxu0
        %3758 = vmatprep.mubr.f32.mxu0 0.0
        %3759 = vmatmul.mubr.f32.gmra.mrb[0].mxu0 %v2505
        %v3760 = vpop.f32.mrb[0].mxu0
        %v3761 = vadd.f32 0.0, %v3760
        %v3762 = vpop.f32.mrb[0].mxu0
        %3763 = vdwg.mxu0
        %v3764 = vmul.f32 %v3726, %v3726
        %v3765 = vmul.f32 %v3731, %v3731
        %v3766 = vmul.f32 %v3736, %v3736
        %v3767 = vmul.f32 %v3741, %v3741
        %v3768 = vmul.f32 %v3746, %v3746
        %v3769 = vmul.f32 %v3751, %v3751
        %v3770 = vmul.f32 %v3756, %v3756
        %v3771 = vmul.f32 %v3761, %v3761
        %3780 = vrot.lane.b32.xlu0 %v3764, 1
        %v3781 = vpop.permute.xlu0 %3780
        %3782 = vrot.lane.b32.xlu0 %v3765, 1
        %v3783 = vpop.permute.xlu0 %3782
        %3784 = vrot.lane.b32.xlu0 %v3766, 1
        %v3785 = vpop.permute.xlu0 %3784
        %3786 = vrot.lane.b32.xlu0 %v3767, 1
        %v3787 = vpop.permute.xlu0 %3786
        %3788 = vrot.lane.b32.xlu0 %v3768, 1
        %v3789 = vpop.permute.xlu0 %3788
        %3790 = vrot.lane.b32.xlu0 %v3769, 1
        %v3791 = vpop.permute.xlu0 %3790
        %3792 = vrot.lane.b32.xlu0 %v3770, 1
        %v3793 = vpop.permute.xlu0 %3792
        %3794 = vrot.lane.b32.xlu0 %v3771, 1
        %v3795 = vpop.permute.xlu0 %3794
        %v3804 = vsub.f32 %v3726, %v3781
        %v3805 = vsub.f32 %v3731, %v3783
        %v3806 = vsub.f32 %v3736, %v3785
        %v3807 = vsub.f32 %v3741, %v3787
        %v3808 = vsub.f32 %v3746, %v3789
        %v3809 = vsub.f32 %v3751, %v3791
        %v3810 = vsub.f32 %v3756, %v3793
        %v3811 = vsub.f32 %v3761, %v3795
        %3813 = vset.pattern.permute.xlu0 0
        %3814 = vperm.xlu0 %3813, %v3726
        %v3815 = vpop.permute.xlu0 %3814
        %3818 = vset.pattern.permute.xlu0 0
        %3819 = vperm.xlu0 %3818, %v3731
        %v3820 = vpop.permute.xlu0 %3819
        %3823 = vset.pattern.permute.xlu0 0
        %3824 = vperm.xlu0 %3823, %v3736
        %v3825 = vpop.permute.xlu0 %3824
        %3828 = vset.pattern.permute.xlu0 0
        %3829 = vperm.xlu0 %3828, %v3741
        %v3830 = vpop.permute.xlu0 %3829
        %3833 = vset.pattern.permute.xlu0 0
        %3834 = vperm.xlu0 %3833, %v3746
        %v3835 = vpop.permute.xlu0 %3834
        %3838 = vset.pattern.permute.xlu0 0
        %3839 = vperm.xlu0 %3838, %v3751
        %v3840 = vpop.permute.xlu0 %3839
        %3843 = vset.pattern.permute.xlu0 0
        %3844 = vperm.xlu0 %3843, %v3756
        %v3845 = vpop.permute.xlu0 %3844
        %3848 = vset.pattern.permute.xlu0 0
        %3849 = vperm.xlu0 %3848, %v3761
        %v3850 = vpop.permute.xlu0 %3849
        %v3852 = vsub.f32 %v3587, %v3815
        %v3853 = vsub.f32 %v3588, %v3820
        %v3854 = vsub.f32 %v3589, %v3825
        %v3855 = vsub.f32 %v3590, %v3830
        %v3856 = vsub.f32 %v3591, %v3835
        %v3857 = vsub.f32 %v3592, %v3840
        %v3858 = vsub.f32 %v3593, %v3845
        %v3859 = vsub.f32 %v3594, %v3850
        %v3860 = vadd.f32 %v3804, 1e-05
        %v3861 = vadd.f32 %v3805, 1e-05
        %v3862 = vadd.f32 %v3806, 1e-05
        %v3863 = vadd.f32 %v3807, 1e-05
        %v3864 = vadd.f32 %v3808, 1e-05
        %v3865 = vadd.f32 %v3809, 1e-05
        %v3866 = vadd.f32 %v3810, 1e-05
        %v3867 = vadd.f32 %v3811, 1e-05
        %v3868 = vrsqrt.pop %v3860
        %v3869 = vrsqrt.pop %v3861
        %v3870 = vrsqrt.pop %v3862
        %v3871 = vrsqrt.pop %v3863
        %v3872 = vrsqrt.pop %v3864
        %v3873 = vrsqrt.pop %v3865
        %v3874 = vrsqrt.pop %v3866
        %v3875 = vrsqrt.pop %v3867
        %3877 = vset.pattern.permute.xlu0 1
        %3878 = vperm.xlu0 %3877, %v3868
        %v3879 = vpop.permute.xlu0 %3878
        %3882 = vset.pattern.permute.xlu0 1
        %3883 = vperm.xlu0 %3882, %v3869
        %v3884 = vpop.permute.xlu0 %3883
        %3887 = vset.pattern.permute.xlu0 1
        %3888 = vperm.xlu0 %3887, %v3870
        %v3889 = vpop.permute.xlu0 %3888
        %3892 = vset.pattern.permute.xlu0 1
        %3893 = vperm.xlu0 %3892, %v3871
        %v3894 = vpop.permute.xlu0 %3893
        %3897 = vset.pattern.permute.xlu0 1
        %3898 = vperm.xlu0 %3897, %v3872
        %v3899 = vpop.permute.xlu0 %3898
        %3902 = vset.pattern.permute.xlu0 1
        %3903 = vperm.xlu0 %3902, %v3873
        %v3904 = vpop.permute.xlu0 %3903
        %3907 = vset.pattern.permute.xlu0 1
        %3908 = vperm.xlu0 %3907, %v3874
        %v3909 = vpop.permute.xlu0 %3908
        %3912 = vset.pattern.permute.xlu0 1
        %3913 = vperm.xlu0 %3912, %v3875
        %v3914 = vpop.permute.xlu0 %3913
        %v3916 = vmul.f32 %v3852, %v3879
        %v3917 = vmul.f32 %v3853, %v3884
        %v3918 = vmul.f32 %v3854, %v3889
        %v3919 = vmul.f32 %v3855, %v3894
        %v3920 = vmul.f32 %v3856, %v3899
        %v3921 = vmul.f32 %v3857, %v3904
        %v3922 = vmul.f32 %v3858, %v3909
        %v3923 = vmul.f32 %v3859, %v3914
        %3924 = vrot.lane.b32.xlu0 %v2772, 112
        %v3925 = vpop.permute.xlu0 %3924
        %3926 = vrot.lane.b32.xlu0 %v2773, 112
        %v3927 = vpop.permute.xlu0 %3926
        %3928 = vrot.lane.b32.xlu0 %v2774, 112
        %v3929 = vpop.permute.xlu0 %3928
        %3930 = vrot.lane.b32.xlu0 %v2775, 112
        %v3931 = vpop.permute.xlu0 %3930
        %3932 = vrot.lane.b32.xlu0 %v2776, 112
        %v3933 = vpop.permute.xlu0 %3932
        %3934 = vrot.lane.b32.xlu0 %v2777, 112
        %v3935 = vpop.permute.xlu0 %3934
        %3936 = vrot.lane.b32.xlu0 %v2778, 112
        %v3937 = vpop.permute.xlu0 %3936
        %3938 = vrot.lane.b32.xlu0 %v2779, 112
        %v3939 = vpop.permute.xlu0 %3938
        %v3948 = vmul.f32 %v3916, %v3925
        %v3949 = vmul.f32 %v3917, %v3927
        %v3950 = vmul.f32 %v3918, %v3929
        %v3951 = vmul.f32 %v3919, %v3931
        %v3952 = vmul.f32 %v3920, %v3933
        %v3953 = vmul.f32 %v3921, %v3935
        %v3954 = vmul.f32 %v3922, %v3937
        %v3955 = vmul.f32 %v3923, %v3939
        %3956 = vrot.lane.b32.xlu0 %v2772, 104
        %v3957 = vpop.permute.xlu0 %3956
        %3958 = vrot.lane.b32.xlu0 %v2773, 104
        %v3959 = vpop.permute.xlu0 %3958
        %3960 = vrot.lane.b32.xlu0 %v2774, 104
        %v3961 = vpop.permute.xlu0 %3960
        %3962 = vrot.lane.b32.xlu0 %v2775, 104
        %v3963 = vpop.permute.xlu0 %3962
        %3964 = vrot.lane.b32.xlu0 %v2776, 104
        %v3965 = vpop.permute.xlu0 %3964
        %3966 = vrot.lane.b32.xlu0 %v2777, 104
        %v3967 = vpop.permute.xlu0 %3966
        %3968 = vrot.lane.b32.xlu0 %v2778, 104
        %v3969 = vpop.permute.xlu0 %3968
        %3970 = vrot.lane.b32.xlu0 %v2779, 104
        %v3971 = vpop.permute.xlu0 %3970
        %v3980 = vadd.f32 %v3948, %v3957
        %v3981 = vadd.f32 %v3949, %v3959
        %v3982 = vadd.f32 %v3950, %v3961
        %v3983 = vadd.f32 %v3951, %v3963
        %v3984 = vadd.f32 %v3952, %v3965
        %v3985 = vadd.f32 %v3953, %v3967
        %v3986 = vadd.f32 %v3954, %v3969
        %v3987 = vadd.f32 %v3955, %v3971
        %v3988 = vpack.c.bf16 %v3981, %v3980
        %v3989 = vpack.c.bf16 %v3983, %v3982
        %v3990 = vpack.c.bf16 %v3985, %v3984
        %v3991 = vpack.c.bf16 %v3987, %v3986
        %3992 = vrot.lane.b32.xlu0 %v2081, 4
        %v3993 = vpop.permute.xlu0 %3992
        %3994 = vrot.lane.b32.xlu0 %v3389, 64
        %v3995 = vpop.permute.xlu0 %3994
        %v3998 = vsel %vm1994, %v3988, 0
        %v4001 = vsel %vm1994, %v3989, 0
        %v4004 = vsel %vm1994, %v3990, 0
        %v4007 = vsel %vm1994, %v3991, 0
        %v4010 = vsel %vm2007, %v3993, 0
        %4012 = vmatprep.subr.bf16.mxu0 0
        %4013 = vmatpush1.bf16.msra.mxu0 %v4010
        %4014 = vmatprep.subr.bf16.mxu0 0
        %4015 = vmatpush1.bf16.msra.mxu0 0
        %4016 = vmatprep.subr.bf16.mxu0 0
        %4017 = vmatpush1.bf16.msra.mxu0 0
        %4018 = vmatprep.subr.bf16.mxu0 0
        %4019 = vmatpush1.bf16.msra.mxu0 0
        %4020 = vmatprep.subr.bf16.mxu0 0
        %4021 = vmatpush1.bf16.msra.mxu0 0
        %4022 = vmatprep.subr.bf16.mxu0 0
        %4023 = vmatpush1.bf16.msra.mxu0 0
        %4024 = vmatprep.subr.bf16.mxu0 0
        %4025 = vmatpush1.bf16.msra.mxu0 0
        %4026 = vmatprep.subr.bf16.mxu0 0
        %4027 = vmatpush1.bf16.msra.mxu0 0
        %4028 = vmatprep.subr.bf16.mxu0 0
        %4029 = vmatpush1.bf16.msra.mxu0 0
        %4030 = vmatprep.subr.bf16.mxu0 0
        %4031 = vmatpush1.bf16.msra.mxu0 0
        %4032 = vmatprep.subr.bf16.mxu0 0
        %4033 = vmatpush1.bf16.msra.mxu0 0
        %4034 = vmatprep.subr.bf16.mxu0 0
        %4035 = vmatpush1.bf16.msra.mxu0 0
        %4036 = vmatprep.subr.bf16.mxu0 0
        %4037 = vmatpush1.bf16.msra.mxu0 0
        %4038 = vmatprep.subr.bf16.mxu0 0
        %4039 = vmatpush1.bf16.msra.mxu0 0
        %4040 = vmatprep.subr.bf16.mxu0 0
        %4041 = vmatpush1.bf16.msra.mxu0 0
        %4042 = vmatprep.subr.bf16.mxu0 0
        %4043 = vmatpush1.bf16.msra.mxu0 0
        %4044 = vmatprep.mubr.bf16.mxu0 0
        %4045 = vmatmul.mubr.bf16.gmra.mrb[0].mxu0 %v3998
        %v4046 = vpop.f32.mrb[0].mxu0
        %v4047 = vadd.f32 %v3995, %v4046
        %v4048 = vpop.f32.mrb[0].mxu0
        %v4049 = vpop.f32.mrb[0].mxu0
        %v4050 = vadd.f32 %v3995, %v4049
        %v4051 = vpop.f32.mrb[0].mxu0
        %4052 = vmatprep.mubr.bf16.mxu0 0
        %4053 = vmatmul.mubr.bf16.gmra.mrb[0].mxu0 %v4001
        %v4054 = vpop.f32.mrb[0].mxu0
        %v4055 = vadd.f32 %v3995, %v4054
        %v4056 = vpop.f32.mrb[0].mxu0
        %v4057 = vpop.f32.mrb[0].mxu0
        %v4058 = vadd.f32 %v3995, %v4057
        %v4059 = vpop.f32.mrb[0].mxu0
        %4060 = vmatprep.mubr.bf16.mxu0 0
        %4061 = vmatmul.mubr.bf16.gmra.mrb[0].mxu0 %v4004
        %v4062 = vpop.f32.mrb[0].mxu0
        %v4063 = vadd.f32 %v3995, %v4062
        %v4064 = vpop.f32.mrb[0].mxu0
        %v4065 = vpop.f32.mrb[0].mxu0
        %v4066 = vadd.f32 %v3995, %v4065
        %v4067 = vpop.f32.mrb[0].mxu0
        %4068 = vmatprep.mubr.bf16.mxu0 0
        %4069 = vmatmul.mubr.bf16.gmra.mrb[0].mxu0 %v4007
        %v4070 = vpop.f32.mrb[0].mxu0
        %v4071 = vadd.f32 %v3995, %v4070
        %v4072 = vpop.f32.mrb[0].mxu0
        %v4073 = vpop.f32.mrb[0].mxu0
        %v4074 = vadd.f32 %v3995, %v4073
        %v4075 = vpop.f32.mrb[0].mxu0
        %4076 = vdwg.mxu0
        %4077 = vst.msk [vmem:[%s204] sm:$0xff] %vm383, %v4047
        %4078 = vst.msk [vmem:[%s204 + $0x8] sm:$0xff] %vm383, %v4050
        %4079 = vst.msk [vmem:[%s204 + $0x10] sm:$0xff] %vm383, %v4055
        %4080 = vst.msk [vmem:[%s204 + $0x18] sm:$0xff] %vm383, %v4058
        %4081 = vst.msk [vmem:[%s204 + $0x20] sm:$0xff] %vm383, %v4063
        %4082 = vst.msk [vmem:[%s204 + $0x28] sm:$0xff] %vm383, %v4066
        %4083 = vst.msk [vmem:[%s204 + $0x30] sm:$0xff] %vm383, %v4071
        %4084 = vst.msk [vmem:[%s204 + $0x38] sm:$0xff] %vm383, %v4074
        %s4085 = smul.u32 8, %s15
        %p4086 = scmp.lt.s32.totalorder %s4085, 15
        %s4087 = scalar_select %p4086, %s4085, 15
        %s4088 = smul.addr %s4087, 8
        %s4089 = scalar_lea.vmem %s3, %s4088
        // Predicated region
        $region37: #{tpu_custom_call.1} parent=31 // pred_check
          %p4090 = pneg %p106
        $region38: #{tpu_custom_call.1} parent=31 // pred_check_branch
          %4092 = sbr.rel (%p4090) target = $region40
        $region39: #{tpu_custom_call.1} parent=31 // pred_region
          %s4093 = smul.u32 8, %s15
        $region40: #{tpu_custom_call.1} parent=31 // pred_fallthru
          _
      $region32: #{tpu_custom_call.1} parent=5 // pred_fallthru
        _
      %p4094 = scmp.le.s32.totalorder 2, %s10
      // Predicated region
      $region41: #{tpu_custom_call.1} parent=5 // pred_check
        %p4095 = pneg %p4094
      $region42: #{tpu_custom_call.1} parent=5 // pred_check_branch
        %4097 = sbr.rel (%p4095) target = $region44
      $region43: #{tpu_custom_call.1} parent=5 // pred_region
        %s4098 = ssub.s32 %s10, 2
        // Predicated region
        $region45: #{tpu_custom_call.1} parent=43 // pred_check
          %p4099 = pneg %p112
        $region46: #{tpu_custom_call.1} parent=43 // pred_check_branch
          %4101 = sbr.rel (%p4099) target = $region48
        $region47: #{tpu_custom_call.1} parent=43 // pred_region
          %s4102 = smul.u32 8, %s16
          %p4103 = scmp.lt.s32.totalorder %s4102, 15
          %s4104 = scalar_select %p4103, %s4102, 15
          %s4105 = smul.addr %s4104, 8
          %s4106 = scalar_lea.vmem %s3, %s4105
        $region48: #{tpu_custom_call.1} parent=43 // pred_fallthru
          _
      $region44: #{tpu_custom_call.1} parent=5 // pred_fallthru
        _
    $region6: #{tpu_custom_call.1} parent=1 // loop_footer
      %s14 = sadd.s32 1, %s10
    $region7: #{tpu_custom_call.1} parent=1 // loop_footer_branch
      %9 = sbr.rel target = $region3
    $region8: #{tpu_custom_call.1} parent=1 // loop_exit
      _
    %4107 = vsyncpa [#allocation3], 1
    %s4108 = scalar_lea.sflag [#allocation3], 1
    %4109 = vsyncpa %s4108, 1

</llo_original>
